<compile_context>
chip_gen: v7x
topology: tpu7x:2x2x1
jax: 0.10.0
libtpu: 0.0.40
codegen_flags: <defaults>
</compile_context>

<pallas_src>
import functools

import numpy as np

import jax
import jax.numpy as jnp
from jax import lax
from jax.experimental import pallas as pl
from jax.experimental.pallas import tpu as pltpu

EPS = 1e-5          # nn.BatchNorm2d default eps
NEG_SLOPE = 0.2     # LeakyReLU negative slope (assumed act_fn)
# MXU operand dtype. bf16 is the native full-rate MXU dtype on v6e/v7x
# (accumulation stays f32 via preferred_element_type). Set to jnp.float32 to
# match the f32 reference to ~1e-5.
MATMUL_DTYPE = jnp.bfloat16

_ORDER = ("conv1", "conv2_a", "conv2_b", "conv2_c", "conv3")


# ---------------------------------------------------------------------------
# Weight repacking: 3x3 conv -> 3 banded ("block-Toeplitz") matrices so that a
# whole padded image row maps to a whole output row with ONE matmul per kh.
# ---------------------------------------------------------------------------
def _banded_conv3x3_weights(w_hwio, w_spatial):
    """Repack (3,3,Cin,Cout) weights into B of shape (3, W*Cin, W*Cout) with
    B[kh][w_src*Cin + ci, w_dst*Cout + co] = w[kh, w_src - w_dst + 1, ci, co]
    (zero outside the 3-tap band). Horizontal zero-padding of the conv is
    folded into the band, so the kernel only needs vertical (row) padding and
    the matmul output is directly lane-dense over W*Cout."""
    kh_n, kw_n, cin, cout = w_hwio.shape
    KH, KW, CI, WD, CO = np.meshgrid(
        np.arange(kh_n), np.arange(kw_n), np.arange(cin),
        np.arange(w_spatial), np.arange(cout), indexing="ij")
    w_src = WD + KW - 1                                   # padding = 1
    valid = (w_src >= 0) & (w_src < w_spatial)
    rows = np.where(valid, w_src, 0) * cin + CI
    cols = WD * cout + CO
    vals = w_hwio[KH, KW, CI, CO] * jnp.asarray(valid, w_hwio.dtype)
    banded = jnp.zeros((kh_n, w_spatial * cin, w_spatial * cout), w_hwio.dtype)
    return banded.at[KH, rows, cols].add(vals)


# ---------------------------------------------------------------------------
# Fused Pallas kernel: 5 x (conv3x3 + BN [+ LeakyReLU]) + residual add.
# ---------------------------------------------------------------------------
def _fused_block_kernel(x_ref, w1_ref, w2a_ref, w2b_ref, w2c_ref, w3_ref,
                        gam_ref, bet_ref, o_ref,
                        s_in, s_a, s_b,
                        *, N, H, W, CIN, COUT):
    HP = H + 2                      # h-padded rows per sample
    WC = W * COUT                   # activation lane width (128 for W=16, C=8)
    inv_cnt = 1.0 / float(N * H * W)

    # One-hot "sum over w per channel" matrix and its transpose (channel ->
    # lane broadcast), built once from 2-D iota; lane l carries channel l%COUT.
    lane_c = lax.broadcasted_iota(jnp.int32, (WC, COUT), 0) % COUT
    chan_c = lax.broadcasted_iota(jnp.int32, (WC, COUT), 1)
    pool = (lane_c == chan_c).astype(jnp.float32)         # (WC, COUT)
    lane_r = lax.broadcasted_iota(jnp.int32, (COUT, WC), 1) % COUT
    chan_r = lax.broadcasted_iota(jnp.int32, (COUT, WC), 0)
    bcast = (lane_r == chan_r).astype(jnp.float32)        # (COUT, WC)

    def write_rows(dst_ref, y):
        # Store (N*H, lanes) activations into the h-interior of a padded buffer
        # (in-kernel padding: pad rows stay zero).
        for n in range(N):
            dst_ref[n * HP + 1:n * HP + 1 + H, :] = y[n * H:(n + 1) * H, :]

    def conv_bn(src_ref, w_ref, idx, act):
        # 3x3 conv (stride 1, pad 1) as 3 banded matmuls + training-mode BN
        # (+ optional LeakyReLU). Conv bias omitted: it cancels exactly in
        # (x - batch_mean) under batch-stat BatchNorm.
        acc = jnp.zeros((N * H, WC), jnp.float32)
        for kh in range(3):
            rows = [src_ref[n * HP + kh:n * HP + kh + H, :] for n in range(N)]
            lhs = rows[0] if N == 1 else jnp.concatenate(rows, axis=0)
            acc = acc + jnp.dot(lhs.astype(MATMUL_DTYPE), w_ref[kh],
                                preferred_element_type=jnp.float32)

        # BatchNorm2d, batch statistics over (N, H, W), biased variance.
        row_sum = jnp.sum(acc, axis=0, keepdims=True)              # (1, WC)
        mean_c = jnp.dot(row_sum, pool) * inv_cnt                  # (1, COUT)
        centered = acc - jnp.dot(mean_c, bcast)
        sq_sum = jnp.sum(centered * centered, axis=0, keepdims=True)
        var_c = jnp.dot(sq_sum, pool) * inv_cnt                    # (1, COUT)
        scale_c = gam_ref[idx] * lax.rsqrt(var_c + EPS)            # (1, COUT)
        y = centered * jnp.dot(scale_c, bcast) + jnp.dot(bet_ref[idx], bcast)
        if act:
            y = jnp.where(y > 0, y, NEG_SLOPE * y)                 # LeakyReLU(0.2)
        return y                                                   # (N*H, WC) f32

    # Zero the padded scratch buffers (pad rows must read as zero).
    s_in[...] = jnp.zeros_like(s_in)
    s_a[...] = jnp.zeros_like(s_a)
    s_b[...] = jnp.zeros_like(s_b)

    write_rows(s_in, x_ref[...])                                   # pad input in-kernel

    conv_1 = conv_bn(s_in, w1_ref, 0, act=True)                    # conv_block
    write_rows(s_a, conv_1)
    h = conv_bn(s_a, w2a_ref, 1, act=True)                         # conv_block_3 [0]
    write_rows(s_b, h)
    h = conv_bn(s_b, w2b_ref, 2, act=True)                         # conv_block_3 [1]
    write_rows(s_a, h)                                             # s_a reused
    conv_2 = conv_bn(s_a, w2c_ref, 3, act=False)                   # conv + BN, no act
    write_rows(s_b, conv_1 + conv_2)                               # fused residual add
    o_ref[...] = conv_bn(s_b, w3_ref, 4, act=True)                 # conv_block, 128-lane store


# ---------------------------------------------------------------------------
# Parameter init (deterministic, PyTorch-like defaults) and module forward
# ---------------------------------------------------------------------------
def init_conv_bn(key, cin, cout):
    kw_, kb_ = jax.random.split(key)
    fan_in = cin * 9
    bound = 1.0 / jnp.sqrt(jnp.float32(fan_in))
    w = jax.random.uniform(kw_, (3, 3, cin, cout), jnp.float32, -bound, bound)
    b = jax.random.uniform(kb_, (cout,), jnp.float32, -bound, bound)
    gamma = jnp.ones((cout,), jnp.float32)
    beta = jnp.zeros((cout,), jnp.float32)
    return dict(w=w, b=b, gamma=gamma, beta=beta)


def init_conv_residual_conv(key, in_dim, out_dim):
    keys = jax.random.split(key, 5)
    return dict(
        conv1=init_conv_bn(keys[0], in_dim, out_dim),
        conv2_a=init_conv_bn(keys[1], out_dim, out_dim),
        conv2_b=init_conv_bn(keys[2], out_dim, out_dim),
        conv2_c=init_conv_bn(keys[3], out_dim, out_dim),
        conv3=init_conv_bn(keys[4], out_dim, out_dim),
    )


def conv_residual_conv(params, x_nchw):
    """Forward pass matching the PyTorch module (NCHW in / NCHW out)."""
    N, CIN, H, W = x_nchw.shape
    COUT = params["conv1"]["w"].shape[-1]

    # Boundary relayout only: NCHW -> NHWC -> (N*H, W*C) rows whose lane axis
    # is 128-dense for C=8, W=16. Surrounding NHWC layers could skip this.
    x_rows = jnp.transpose(x_nchw, (0, 2, 3, 1)).reshape(N * H, W * CIN)

    wbs = [_banded_conv3x3_weights(params[k]["w"], W).astype(MATMUL_DTYPE)
           for k in _ORDER]
    gam = jnp.stack([params[k]["gamma"].reshape(1, COUT) for k in _ORDER])
    bet = jnp.stack([params[k]["beta"].reshape(1, COUT) for k in _ORDER])
    # params[k]['b'] (conv bias) intentionally unused: cancels under BN.

    kern = functools.partial(_fused_block_kernel,
                             N=N, H=H, W=W, CIN=CIN, COUT=COUT)
    vspec = pl.BlockSpec(memory_space=pltpu.MemorySpace.VMEM)
    out_rows = pl.pallas_call(
        kern,
        out_shape=jax.ShapeDtypeStruct((N * H, W * COUT), jnp.float32),
        in_specs=[vspec] * 8,
        out_specs=vspec,
        scratch_shapes=[
            pltpu.VMEM((N * (H + 2), W * CIN), jnp.float32),   # padded input
            pltpu.VMEM((N * (H + 2), W * COUT), jnp.float32),  # ping buffer
            pltpu.VMEM((N * (H + 2), W * COUT), jnp.float32),  # pong buffer
        ],
    )(x_rows, *wbs, gam, bet)

    return jnp.transpose(out_rows.reshape(N, H, W, COUT), (0, 3, 1, 2))


# ---------------------------------------------------------------------------
# Pure-JAX f32 reference (PyTorch-faithful) for a correctness sanity check
# ---------------------------------------------------------------------------
def _ref_block(p, x, act):
    y = lax.conv_general_dilated(
        x, p["w"], window_strides=(1, 1), padding="SAME",
        dimension_numbers=("NHWC", "HWIO", "NHWC")) + p["b"]
    mean = y.mean(axis=(0, 1, 2))
    var = ((y - mean) ** 2).mean(axis=(0, 1, 2))
    y = (y - mean) * (p["gamma"] / jnp.sqrt(var + EPS)) + p["beta"]
    if act:
        y = jnp.where(y > 0, y, NEG_SLOPE * y)
    return y


def conv_residual_conv_ref(params, x_nchw):
    x = jnp.transpose(x_nchw, (0, 2, 3, 1))
    c1 = _ref_block(params["conv1"], x, True)
    h = _ref_block(params["conv2_a"], c1, True)
    h = _ref_block(params["conv2_b"], h, True)
    c2 = _ref_block(params["conv2_c"], h, False)
    c3 = _ref_block(params["conv3"], c1 + c2, True)
    return jnp.transpose(c3, (0, 3, 1, 2))


if __name__ == "__main__":
    key = jax.random.PRNGKey(0)
    k_param, k_x = jax.random.split(key)

    in_dim, out_dim = 4, 8
    N, H, W = 2, 16, 16
    x = jax.random.normal(k_x, (N, in_dim, H, W), jnp.float32)   # NCHW input

    params = init_conv_residual_conv(k_param, in_dim, out_dim)

    out = jax.block_until_ready(jax.jit(conv_residual_conv)(params, x))
    assert out.shape == (N, out_dim, H, W), out.shape

    ref = jax.block_until_ready(conv_residual_conv_ref(params, x))
    # bf16 MXU operands (f32 accumulation) through 5 conv+BN layers vs. the
    # f32 reference: allow a few 1e-2 of drift on unit-variance outputs.
    # (Set MATMUL_DTYPE = jnp.float32 above for ~1e-5 agreement.)
    max_err = float(jnp.max(jnp.abs(out - ref)))
    assert jnp.allclose(out, ref, atol=5e-2, rtol=5e-2), max_err

    print("KERNEL_OK")
</pallas_src>

<mosaic_0001>
module attributes {stable_mosaic.version = 11 : i64} {
  func.func private @main(%arg0: i32) attributes {dimension_semantics = [#tpu.dimension_semantics<core_parallel>], iteration_bounds = array<i64: 2>, tpu.core_type = #tpu.core_type<sc_scalar_subcore>, window_params = []} {
    return
  }
}

module attributes {stable_mosaic.version = 11 : i64} {
  func.func private @main(%arg0: i32) attributes {dimension_semantics = [#tpu.dimension_semantics<core_parallel>], iteration_bounds = array<i64: 2>, tpu.core_type = #tpu.core_type<sc_scalar_subcore>, window_params = []} {
    return
  }
}

module attributes {stable_mosaic.version = 11 : i64} {
  func.func @_fused_block_kernel(%arg0: memref<32x64xf32, #tpu.memory_space<vmem>>, %arg1: memref<3x64x128xbf16, #tpu.memory_space<vmem>>, %arg2: memref<3x128x128xbf16, #tpu.memory_space<vmem>>, %arg3: memref<3x128x128xbf16, #tpu.memory_space<vmem>>, %arg4: memref<3x128x128xbf16, #tpu.memory_space<vmem>>, %arg5: memref<3x128x128xbf16, #tpu.memory_space<vmem>>, %arg6: memref<5x1x8xf32, #tpu.memory_space<vmem>>, %arg7: memref<5x1x8xf32, #tpu.memory_space<vmem>>, %arg8: memref<32x128xf32, #tpu.memory_space<vmem>>, %arg9: memref<36x64xf32, #tpu.memory_space<vmem>>, %arg10: memref<36x128xf32, #tpu.memory_space<vmem>>, %arg11: memref<36x128xf32, #tpu.memory_space<vmem>>) attributes {dimension_semantics = [], scalar_prefetch = 0 : i64, scratch_operands = 3 : i64, tpu.core_type = #tpu.core_type<tc>} {
    %0 = tpu.iota {dimensions = array<i32: 0>} : vector<128x8xi32>
    %c8_i32 = arith.constant 8 : i32
    %c0_i32 = arith.constant 0 : i32
    %1 = arith.cmpi eq, %c8_i32, %c0_i32 : i32
    %c1_i32 = arith.constant 1 : i32
    %2 = arith.select %1, %c1_i32, %c8_i32 : i32
    %3 = vector.broadcast %2 : i32 to vector<128x8xi32>
    %4 = arith.remsi %0, %3 : vector<128x8xi32>
    %c0_i32_0 = arith.constant 0 : i32
    %5 = vector.broadcast %c0_i32_0 : i32 to vector<128x8xi32>
    %6 = arith.cmpi ne, %4, %5 : vector<128x8xi32>
    %c0_i32_1 = arith.constant 0 : i32
    %7 = vector.broadcast %c0_i32_1 : i32 to vector<128x8xi32>
    %8 = arith.cmpi slt, %4, %7 : vector<128x8xi32>
    %c0_i32_2 = arith.constant 0 : i32
    %9 = arith.cmpi slt, %2, %c0_i32_2 : i32
    %10 = vector.broadcast %9 : i1 to vector<128x8xi1>
    %11 = vector.broadcast %10 : vector<128x8xi1> to vector<128x8xi1>
    %12 = arith.xori %8, %11 : vector<128x8xi1>
    %13 = arith.andi %12, %6 : vector<128x8xi1>
    %14 = vector.broadcast %2 : i32 to vector<128x8xi32>
    %15 = arith.addi %4, %14 : vector<128x8xi32>
    %16 = arith.select %13, %15, %4 : vector<128x8xi1>, vector<128x8xi32>
    %17 = tpu.iota {dimensions = array<i32: 1>} : vector<128x8xi32>
    %18 = arith.cmpi eq, %16, %17 : vector<128x8xi32>
    %19 = arith.extui %18 : vector<128x8xi1> to vector<128x8xi32>
    %20 = arith.sitofp %19 : vector<128x8xi32> to vector<128x8xf32>
    %21 = tpu.iota {dimensions = array<i32: 1>} : vector<8x128xi32>
    %c8_i32_3 = arith.constant 8 : i32
    %c0_i32_4 = arith.constant 0 : i32
    %22 = arith.cmpi eq, %c8_i32_3, %c0_i32_4 : i32
    %c1_i32_5 = arith.constant 1 : i32
    %23 = arith.select %22, %c1_i32_5, %c8_i32_3 : i32
    %24 = vector.broadcast %23 : i32 to vector<8x128xi32>
    %25 = arith.remsi %21, %24 : vector<8x128xi32>
    %c0_i32_6 = arith.constant 0 : i32
    %26 = vector.broadcast %c0_i32_6 : i32 to vector<8x128xi32>
    %27 = arith.cmpi ne, %25, %26 : vector<8x128xi32>
    %c0_i32_7 = arith.constant 0 : i32
    %28 = vector.broadcast %c0_i32_7 : i32 to vector<8x128xi32>
    %29 = arith.cmpi slt, %25, %28 : vector<8x128xi32>
    %c0_i32_8 = arith.constant 0 : i32
    %30 = arith.cmpi slt, %23, %c0_i32_8 : i32
    %31 = vector.broadcast %30 : i1 to vector<8x128xi1>
    %32 = vector.broadcast %31 : vector<8x128xi1> to vector<8x128xi1>
    %33 = arith.xori %29, %32 : vector<8x128xi1>
    %34 = arith.andi %33, %27 : vector<8x128xi1>
    %35 = vector.broadcast %23 : i32 to vector<8x128xi32>
    %36 = arith.addi %25, %35 : vector<8x128xi32>
    %37 = arith.select %34, %36, %25 : vector<8x128xi1>, vector<8x128xi32>
    %38 = tpu.iota {dimensions = array<i32: 0>} : vector<8x128xi32>
    %39 = arith.cmpi eq, %37, %38 : vector<8x128xi32>
    %40 = arith.extui %39 : vector<8x128xi1> to vector<8x128xi32>
    %41 = arith.sitofp %40 : vector<8x128xi32> to vector<8x128xf32>
    %cst = arith.constant 0.000000e+00 : f32
    %42 = vector.broadcast %cst : f32 to vector<36x64xf32>
    %c0 = arith.constant 0 : index
    %c0_9 = arith.constant 0 : index
    %43 = vector.load %arg9[%c0, %c0_9] : memref<36x64xf32, #tpu.memory_space<vmem>>, vector<36x64xf32>
    tpu.vector_store %arg9[%c0, %c0_9], %42 {strides = array<i32>} : memref<36x64xf32, #tpu.memory_space<vmem>>, vector<36x64xf32>,
    %cst_10 = arith.constant 0.000000e+00 : f32
    %44 = vector.broadcast %cst_10 : f32 to vector<36x128xf32>
    %c0_11 = arith.constant 0 : index
    %c0_12 = arith.constant 0 : index
    %45 = vector.load %arg10[%c0_11, %c0_12] : memref<36x128xf32, #tpu.memory_space<vmem>>, vector<36x128xf32>
    tpu.vector_store %arg10[%c0_11, %c0_12], %44 {strides = array<i32>} : memref<36x128xf32, #tpu.memory_space<vmem>>, vector<36x128xf32>,
    %cst_13 = arith.constant 0.000000e+00 : f32
    %46 = vector.broadcast %cst_13 : f32 to vector<36x128xf32>
    %c0_14 = arith.constant 0 : index
    %c0_15 = arith.constant 0 : index
    %47 = vector.load %arg11[%c0_14, %c0_15] : memref<36x128xf32, #tpu.memory_space<vmem>>, vector<36x128xf32>
    tpu.vector_store %arg11[%c0_14, %c0_15], %46 {strides = array<i32>} : memref<36x128xf32, #tpu.memory_space<vmem>>, vector<36x128xf32>,
    %c0_16 = arith.constant 0 : index
    %c0_17 = arith.constant 0 : index
    %48 = vector.load %arg0[%c0_16, %c0_17] : memref<32x64xf32, #tpu.memory_space<vmem>>, vector<32x64xf32>
    %49 = vector.extract_strided_slice %48 {offsets = [0, 0], sizes = [16, 64], strides = [1, 1]} : vector<32x64xf32> to vector<16x64xf32>
    %c1 = arith.constant 1 : index
    %c0_18 = arith.constant 0 : index
    %50 = vector.load %arg9[%c1, %c0_18] : memref<36x64xf32, #tpu.memory_space<vmem>>, vector<16x64xf32>
    tpu.vector_store %arg9[%c1, %c0_18], %49 {strides = array<i32>} : memref<36x64xf32, #tpu.memory_space<vmem>>, vector<16x64xf32>,
    %51 = vector.extract_strided_slice %48 {offsets = [16, 0], sizes = [16, 64], strides = [1, 1]} : vector<32x64xf32> to vector<16x64xf32>
    %c19 = arith.constant 19 : index
    %c0_19 = arith.constant 0 : index
    %52 = vector.load %arg9[%c19, %c0_19] : memref<36x64xf32, #tpu.memory_space<vmem>>, vector<16x64xf32>
    tpu.vector_store %arg9[%c19, %c0_19], %51 {strides = array<i32>} : memref<36x64xf32, #tpu.memory_space<vmem>>, vector<16x64xf32>,
    %cst_20 = arith.constant 0.000000e+00 : f32
    %53 = vector.broadcast %cst_20 : f32 to vector<32x128xf32>
    %c0_21 = arith.constant 0 : index
    %c0_22 = arith.constant 0 : index
    %54 = vector.load %arg9[%c0_21, %c0_22] : memref<36x64xf32, #tpu.memory_space<vmem>>, vector<16x64xf32>
    %c18 = arith.constant 18 : index
    %c0_23 = arith.constant 0 : index
    %55 = vector.load %arg9[%c18, %c0_23] : memref<36x64xf32, #tpu.memory_space<vmem>>, vector<16x64xf32>
    %56 = tpu.concatenate %54, %55 in 0 : vector<16x64xf32>, vector<16x64xf32> -> vector<32x64xf32>
    %57 = arith.truncf %56 : vector<32x64xf32> to vector<32x64xbf16>
    %c0_24 = arith.constant 0 : index
    %c0_25 = arith.constant 0 : index
    %c0_26 = arith.constant 0 : index
    %58 = vector.load %arg1[%c0_24, %c0_25, %c0_26] : memref<3x64x128xbf16, #tpu.memory_space<vmem>>, vector<1x64x128xbf16>
    %59 = vector.shape_cast %58 : vector<1x64x128xbf16> to vector<64x128xbf16>
    %cst_27 = arith.constant dense<0.000000e+00> : vector<32x128xf32>
    %60 = tpu.matmul %57, %59, %cst_27 {dimension_numbers = #tpu.dot_dimension_numbers<[1], [0], [0], [1], [0, 0, 1, 1], [], []>} : vector<32x64xbf16>, vector<64x128xbf16>, vector<32x128xf32> -> vector<32x128xf32>
    %61 = arith.addf %53, %60 : vector<32x128xf32>
    %c1_28 = arith.constant 1 : index
    %c0_29 = arith.constant 0 : index
    %62 = vector.load %arg9[%c1_28, %c0_29] : memref<36x64xf32, #tpu.memory_space<vmem>>, vector<16x64xf32>
    %c19_30 = arith.constant 19 : index
    %c0_31 = arith.constant 0 : index
    %63 = vector.load %arg9[%c19_30, %c0_31] : memref<36x64xf32, #tpu.memory_space<vmem>>, vector<16x64xf32>
    %64 = tpu.concatenate %62, %63 in 0 : vector<16x64xf32>, vector<16x64xf32> -> vector<32x64xf32>
    %65 = arith.truncf %64 : vector<32x64xf32> to vector<32x64xbf16>
    %c1_32 = arith.constant 1 : index
    %c0_33 = arith.constant 0 : index
    %c0_34 = arith.constant 0 : index
    %66 = vector.load %arg1[%c1_32, %c0_33, %c0_34] : memref<3x64x128xbf16, #tpu.memory_space<vmem>>, vector<1x64x128xbf16>
    %67 = vector.shape_cast %66 : vector<1x64x128xbf16> to vector<64x128xbf16>
    %cst_35 = arith.constant dense<0.000000e+00> : vector<32x128xf32>
    %68 = tpu.matmul %65, %67, %cst_35 {dimension_numbers = #tpu.dot_dimension_numbers<[1], [0], [0], [1], [0, 0, 1, 1], [], []>} : vector<32x64xbf16>, vector<64x128xbf16>, vector<32x128xf32> -> vector<32x128xf32>
    %69 = arith.addf %61, %68 : vector<32x128xf32>
    %c2 = arith.constant 2 : index
    %c0_36 = arith.constant 0 : index
    %70 = vector.load %arg9[%c2, %c0_36] : memref<36x64xf32, #tpu.memory_space<vmem>>, vector<16x64xf32>
    %c20 = arith.constant 20 : index
    %c0_37 = arith.constant 0 : index
    %71 = vector.load %arg9[%c20, %c0_37] : memref<36x64xf32, #tpu.memory_space<vmem>>, vector<16x64xf32>
    %72 = tpu.concatenate %70, %71 in 0 : vector<16x64xf32>, vector<16x64xf32> -> vector<32x64xf32>
    %73 = arith.truncf %72 : vector<32x64xf32> to vector<32x64xbf16>
    %c2_38 = arith.constant 2 : index
    %c0_39 = arith.constant 0 : index
    %c0_40 = arith.constant 0 : index
    %74 = vector.load %arg1[%c2_38, %c0_39, %c0_40] : memref<3x64x128xbf16, #tpu.memory_space<vmem>>, vector<1x64x128xbf16>
    %75 = vector.shape_cast %74 : vector<1x64x128xbf16> to vector<64x128xbf16>
    %cst_41 = arith.constant dense<0.000000e+00> : vector<32x128xf32>
    %76 = tpu.matmul %73, %75, %cst_41 {dimension_numbers = #tpu.dot_dimension_numbers<[1], [0], [0], [1], [0, 0, 1, 1], [], []>} : vector<32x64xbf16>, vector<64x128xbf16>, vector<32x128xf32> -> vector<32x128xf32>
    %77 = arith.addf %69, %76 : vector<32x128xf32>
    %cst_42 = arith.constant dense<0.000000e+00> : vector<128xf32>
    %78 = vector.multi_reduction <add>, %77, %cst_42 [0] : vector<32x128xf32> to vector<128xf32>
    %79 = vector.shape_cast %78 : vector<128xf32> to vector<1x128xf32>
    %cst_43 = arith.constant dense<0.000000e+00> : vector<1x8xf32>
    %80 = tpu.matmul %79, %20, %cst_43 {dimension_numbers = #tpu.dot_dimension_numbers<[1], [0], [0], [1], [0, 0, 1, 1], [], []>} : vector<1x128xf32>, vector<128x8xf32>, vector<1x8xf32> -> vector<1x8xf32>
    %cst_44 = arith.constant 0.001953125 : f32
    %81 = vector.broadcast %cst_44 : f32 to vector<1x8xf32>
    %82 = arith.mulf %80, %81 : vector<1x8xf32>
    %cst_45 = arith.constant dense<0.000000e+00> : vector<1x128xf32>
    %83 = tpu.matmul %82, %41, %cst_45 {dimension_numbers = #tpu.dot_dimension_numbers<[1], [0], [0], [1], [0, 0, 1, 1], [], []>} : vector<1x8xf32>, vector<8x128xf32>, vector<1x128xf32> -> vector<1x128xf32>
    %84 = vector.broadcast %83 : vector<1x128xf32> to vector<32x128xf32>
    %85 = arith.subf %77, %84 : vector<32x128xf32>
    %86 = arith.mulf %85, %85 : vector<32x128xf32>
    %cst_46 = arith.constant dense<0.000000e+00> : vector<128xf32>
    %87 = vector.multi_reduction <add>, %86, %cst_46 [0] : vector<32x128xf32> to vector<128xf32>
    %88 = vector.shape_cast %87 : vector<128xf32> to vector<1x128xf32>
    %cst_47 = arith.constant dense<0.000000e+00> : vector<1x8xf32>
    %89 = tpu.matmul %88, %20, %cst_47 {dimension_numbers = #tpu.dot_dimension_numbers<[1], [0], [0], [1], [0, 0, 1, 1], [], []>} : vector<1x128xf32>, vector<128x8xf32>, vector<1x8xf32> -> vector<1x8xf32>
    %cst_48 = arith.constant 0.001953125 : f32
    %90 = vector.broadcast %cst_48 : f32 to vector<1x8xf32>
    %91 = arith.mulf %89, %90 : vector<1x8xf32>
    %c0_49 = arith.constant 0 : index
    %c0_50 = arith.constant 0 : index
    %c0_51 = arith.constant 0 : index
    %92 = vector.load %arg6[%c0_49, %c0_50, %c0_51] : memref<5x1x8xf32, #tpu.memory_space<vmem>>, vector<1x1x8xf32>
    %93 = vector.shape_cast %92 : vector<1x1x8xf32> to vector<1x8xf32>
    %cst_52 = arith.constant 9.99999974E-6 : f32
    %94 = vector.broadcast %cst_52 : f32 to vector<1x8xf32>
    %95 = arith.addf %91, %94 : vector<1x8xf32>
    %96 = math.rsqrt %95 : vector<1x8xf32>
    %97 = arith.mulf %93, %96 : vector<1x8xf32>
    %cst_53 = arith.constant dense<0.000000e+00> : vector<1x128xf32>
    %98 = tpu.matmul %97, %41, %cst_53 {dimension_numbers = #tpu.dot_dimension_numbers<[1], [0], [0], [1], [0, 0, 1, 1], [], []>} : vector<1x8xf32>, vector<8x128xf32>, vector<1x128xf32> -> vector<1x128xf32>
    %99 = vector.broadcast %98 : vector<1x128xf32> to vector<32x128xf32>
    %100 = arith.mulf %85, %99 : vector<32x128xf32>
    %c0_54 = arith.constant 0 : index
    %c0_55 = arith.constant 0 : index
    %c0_56 = arith.constant 0 : index
    %101 = vector.load %arg7[%c0_54, %c0_55, %c0_56] : memref<5x1x8xf32, #tpu.memory_space<vmem>>, vector<1x1x8xf32>
    %102 = vector.shape_cast %101 : vector<1x1x8xf32> to vector<1x8xf32>
    %cst_57 = arith.constant dense<0.000000e+00> : vector<1x128xf32>
    %103 = tpu.matmul %102, %41, %cst_57 {dimension_numbers = #tpu.dot_dimension_numbers<[1], [0], [0], [1], [0, 0, 1, 1], [], []>} : vector<1x8xf32>, vector<8x128xf32>, vector<1x128xf32> -> vector<1x128xf32>
    %104 = vector.broadcast %103 : vector<1x128xf32> to vector<32x128xf32>
    %105 = arith.addf %100, %104 : vector<32x128xf32>
    %cst_58 = arith.constant 0.000000e+00 : f32
    %106 = vector.broadcast %cst_58 : f32 to vector<32x128xf32>
    %107 = arith.cmpf ogt, %105, %106 : vector<32x128xf32>
    %cst_59 = arith.constant 2.000000e-01 : f32
    %108 = vector.broadcast %cst_59 : f32 to vector<32x128xf32>
    %109 = arith.mulf %108, %105 : vector<32x128xf32>
    %110 = arith.select %107, %105, %109 : vector<32x128xi1>, vector<32x128xf32>
    %111 = vector.extract_strided_slice %110 {offsets = [0, 0], sizes = [16, 128], strides = [1, 1]} : vector<32x128xf32> to vector<16x128xf32>
    %c1_60 = arith.constant 1 : index
    %c0_61 = arith.constant 0 : index
    %112 = vector.load %arg10[%c1_60, %c0_61] : memref<36x128xf32, #tpu.memory_space<vmem>>, vector<16x128xf32>
    tpu.vector_store %arg10[%c1_60, %c0_61], %111 {strides = array<i32>} : memref<36x128xf32, #tpu.memory_space<vmem>>, vector<16x128xf32>,
    %113 = vector.extract_strided_slice %110 {offsets = [16, 0], sizes = [16, 128], strides = [1, 1]} : vector<32x128xf32> to vector<16x128xf32>
    %c19_62 = arith.constant 19 : index
    %c0_63 = arith.constant 0 : index
    %114 = vector.load %arg10[%c19_62, %c0_63] : memref<36x128xf32, #tpu.memory_space<vmem>>, vector<16x128xf32>
    tpu.vector_store %arg10[%c19_62, %c0_63], %113 {strides = array<i32>} : memref<36x128xf32, #tpu.memory_space<vmem>>, vector<16x128xf32>,
    %cst_64 = arith.constant 0.000000e+00 : f32
    %115 = vector.broadcast %cst_64 : f32 to vector<32x128xf32>
    %c0_65 = arith.constant 0 : index
    %c0_66 = arith.constant 0 : index
    %116 = vector.load %arg10[%c0_65, %c0_66] : memref<36x128xf32, #tpu.memory_space<vmem>>, vector<16x128xf32>
    %c18_67 = arith.constant 18 : index
    %c0_68 = arith.constant 0 : index
    %117 = vector.load %arg10[%c18_67, %c0_68] : memref<36x128xf32, #tpu.memory_space<vmem>>, vector<16x128xf32>
    %118 = tpu.concatenate %116, %117 in 0 : vector<16x128xf32>, vector<16x128xf32> -> vector<32x128xf32>
    %119 = arith.truncf %118 : vector<32x128xf32> to vector<32x128xbf16>
    %c0_69 = arith.constant 0 : index
    %c0_70 = arith.constant 0 : index
    %c0_71 = arith.constant 0 : index
    %120 = vector.load %arg2[%c0_69, %c0_70, %c0_71] : memref<3x128x128xbf16, #tpu.memory_space<vmem>>, vector<1x128x128xbf16>
    %121 = vector.shape_cast %120 : vector<1x128x128xbf16> to vector<128x128xbf16>
    %cst_72 = arith.constant dense<0.000000e+00> : vector<32x128xf32>
    %122 = tpu.matmul %119, %121, %cst_72 {dimension_numbers = #tpu.dot_dimension_numbers<[1], [0], [0], [1], [0, 0, 1, 1], [], []>} : vector<32x128xbf16>, vector<128x128xbf16>, vector<32x128xf32> -> vector<32x128xf32>
    %123 = arith.addf %115, %122 : vector<32x128xf32>
    %c1_73 = arith.constant 1 : index
    %c0_74 = arith.constant 0 : index
    %124 = vector.load %arg10[%c1_73, %c0_74] : memref<36x128xf32, #tpu.memory_space<vmem>>, vector<16x128xf32>
    %c19_75 = arith.constant 19 : index
    %c0_76 = arith.constant 0 : index
    %125 = vector.load %arg10[%c19_75, %c0_76] : memref<36x128xf32, #tpu.memory_space<vmem>>, vector<16x128xf32>
    %126 = tpu.concatenate %124, %125 in 0 : vector<16x128xf32>, vector<16x128xf32> -> vector<32x128xf32>
    %127 = arith.truncf %126 : vector<32x128xf32> to vector<32x128xbf16>
    %c1_77 = arith.constant 1 : index
    %c0_78 = arith.constant 0 : index
    %c0_79 = arith.constant 0 : index
    %128 = vector.load %arg2[%c1_77, %c0_78, %c0_79] : memref<3x128x128xbf16, #tpu.memory_space<vmem>>, vector<1x128x128xbf16>
    %129 = vector.shape_cast %128 : vector<1x128x128xbf16> to vector<128x128xbf16>
    %cst_80 = arith.constant dense<0.000000e+00> : vector<32x128xf32>
    %130 = tpu.matmul %127, %129, %cst_80 {dimension_numbers = #tpu.dot_dimension_numbers<[1], [0], [0], [1], [0, 0, 1, 1], [], []>} : vector<32x128xbf16>, vector<128x128xbf16>, vector<32x128xf32> -> vector<32x128xf32>
    %131 = arith.addf %123, %130 : vector<32x128xf32>
    %c2_81 = arith.constant 2 : index
    %c0_82 = arith.constant 0 : index
    %132 = vector.load %arg10[%c2_81, %c0_82] : memref<36x128xf32, #tpu.memory_space<vmem>>, vector<16x128xf32>
    %c20_83 = arith.constant 20 : index
    %c0_84 = arith.constant 0 : index
    %133 = vector.load %arg10[%c20_83, %c0_84] : memref<36x128xf32, #tpu.memory_space<vmem>>, vector<16x128xf32>
    %134 = tpu.concatenate %132, %133 in 0 : vector<16x128xf32>, vector<16x128xf32> -> vector<32x128xf32>
    %135 = arith.truncf %134 : vector<32x128xf32> to vector<32x128xbf16>
    %c2_85 = arith.constant 2 : index
    %c0_86 = arith.constant 0 : index
    %c0_87 = arith.constant 0 : index
    %136 = vector.load %arg2[%c2_85, %c0_86, %c0_87] : memref<3x128x128xbf16, #tpu.memory_space<vmem>>, vector<1x128x128xbf16>
    %137 = vector.shape_cast %136 : vector<1x128x128xbf16> to vector<128x128xbf16>
    %cst_88 = arith.constant dense<0.000000e+00> : vector<32x128xf32>
    %138 = tpu.matmul %135, %137, %cst_88 {dimension_numbers = #tpu.dot_dimension_numbers<[1], [0], [0], [1], [0, 0, 1, 1], [], []>} : vector<32x128xbf16>, vector<128x128xbf16>, vector<32x128xf32> -> vector<32x128xf32>
    %139 = arith.addf %131, %138 : vector<32x128xf32>
    %cst_89 = arith.constant dense<0.000000e+00> : vector<128xf32>
    %140 = vector.multi_reduction <add>, %139, %cst_89 [0] : vector<32x128xf32> to vector<128xf32>
    %141 = vector.shape_cast %140 : vector<128xf32> to vector<1x128xf32>
    %cst_90 = arith.constant dense<0.000000e+00> : vector<1x8xf32>
    %142 = tpu.matmul %141, %20, %cst_90 {dimension_numbers = #tpu.dot_dimension_numbers<[1], [0], [0], [1], [0, 0, 1, 1], [], []>} : vector<1x128xf32>, vector<128x8xf32>, vector<1x8xf32> -> vector<1x8xf32>
    %cst_91 = arith.constant 0.001953125 : f32
    %143 = vector.broadcast %cst_91 : f32 to vector<1x8xf32>
    %144 = arith.mulf %142, %143 : vector<1x8xf32>
    %cst_92 = arith.constant dense<0.000000e+00> : vector<1x128xf32>
    %145 = tpu.matmul %144, %41, %cst_92 {dimension_numbers = #tpu.dot_dimension_numbers<[1], [0], [0], [1], [0, 0, 1, 1], [], []>} : vector<1x8xf32>, vector<8x128xf32>, vector<1x128xf32> -> vector<1x128xf32>
    %146 = vector.broadcast %145 : vector<1x128xf32> to vector<32x128xf32>
    %147 = arith.subf %139, %146 : vector<32x128xf32>
    %148 = arith.mulf %147, %147 : vector<32x128xf32>
    %cst_93 = arith.constant dense<0.000000e+00> : vector<128xf32>
    %149 = vector.multi_reduction <add>, %148, %cst_93 [0] : vector<32x128xf32> to vector<128xf32>
    %150 = vector.shape_cast %149 : vector<128xf32> to vector<1x128xf32>
    %cst_94 = arith.constant dense<0.000000e+00> : vector<1x8xf32>
    %151 = tpu.matmul %150, %20, %cst_94 {dimension_numbers = #tpu.dot_dimension_numbers<[1], [0], [0], [1], [0, 0, 1, 1], [], []>} : vector<1x128xf32>, vector<128x8xf32>, vector<1x8xf32> -> vector<1x8xf32>
    %cst_95 = arith.constant 0.001953125 : f32
    %152 = vector.broadcast %cst_95 : f32 to vector<1x8xf32>
    %153 = arith.mulf %151, %152 : vector<1x8xf32>
    %c1_96 = arith.constant 1 : index
    %c0_97 = arith.constant 0 : index
    %c0_98 = arith.constant 0 : index
    %154 = vector.load %arg6[%c1_96, %c0_97, %c0_98] : memref<5x1x8xf32, #tpu.memory_space<vmem>>, vector<1x1x8xf32>
    %155 = vector.shape_cast %154 : vector<1x1x8xf32> to vector<1x8xf32>
    %cst_99 = arith.constant 9.99999974E-6 : f32
    %156 = vector.broadcast %cst_99 : f32 to vector<1x8xf32>
    %157 = arith.addf %153, %156 : vector<1x8xf32>
    %158 = math.rsqrt %157 : vector<1x8xf32>
    %159 = arith.mulf %155, %158 : vector<1x8xf32>
    %cst_100 = arith.constant dense<0.000000e+00> : vector<1x128xf32>
    %160 = tpu.matmul %159, %41, %cst_100 {dimension_numbers = #tpu.dot_dimension_numbers<[1], [0], [0], [1], [0, 0, 1, 1], [], []>} : vector<1x8xf32>, vector<8x128xf32>, vector<1x128xf32> -> vector<1x128xf32>
    %161 = vector.broadcast %160 : vector<1x128xf32> to vector<32x128xf32>
    %162 = arith.mulf %147, %161 : vector<32x128xf32>
    %c1_101 = arith.constant 1 : index
    %c0_102 = arith.constant 0 : index
    %c0_103 = arith.constant 0 : index
    %163 = vector.load %arg7[%c1_101, %c0_102, %c0_103] : memref<5x1x8xf32, #tpu.memory_space<vmem>>, vector<1x1x8xf32>
    %164 = vector.shape_cast %163 : vector<1x1x8xf32> to vector<1x8xf32>
    %cst_104 = arith.constant dense<0.000000e+00> : vector<1x128xf32>
    %165 = tpu.matmul %164, %41, %cst_104 {dimension_numbers = #tpu.dot_dimension_numbers<[1], [0], [0], [1], [0, 0, 1, 1], [], []>} : vector<1x8xf32>, vector<8x128xf32>, vector<1x128xf32> -> vector<1x128xf32>
    %166 = vector.broadcast %165 : vector<1x128xf32> to vector<32x128xf32>
    %167 = arith.addf %162, %166 : vector<32x128xf32>
    %cst_105 = arith.constant 0.000000e+00 : f32
    %168 = vector.broadcast %cst_105 : f32 to vector<32x128xf32>
    %169 = arith.cmpf ogt, %167, %168 : vector<32x128xf32>
    %cst_106 = arith.constant 2.000000e-01 : f32
    %170 = vector.broadcast %cst_106 : f32 to vector<32x128xf32>
    %171 = arith.mulf %170, %167 : vector<32x128xf32>
    %172 = arith.select %169, %167, %171 : vector<32x128xi1>, vector<32x128xf32>
    %173 = vector.extract_strided_slice %172 {offsets = [0, 0], sizes = [16, 128], strides = [1, 1]} : vector<32x128xf32> to vector<16x128xf32>
    %c1_107 = arith.constant 1 : index
    %c0_108 = arith.constant 0 : index
    %174 = vector.load %arg11[%c1_107, %c0_108] : memref<36x128xf32, #tpu.memory_space<vmem>>, vector<16x128xf32>
    tpu.vector_store %arg11[%c1_107, %c0_108], %173 {strides = array<i32>} : memref<36x128xf32, #tpu.memory_space<vmem>>, vector<16x128xf32>,
    %175 = vector.extract_strided_slice %172 {offsets = [16, 0], sizes = [16, 128], strides = [1, 1]} : vector<32x128xf32> to vector<16x128xf32>
    %c19_109 = arith.constant 19 : index
    %c0_110 = arith.constant 0 : index
    %176 = vector.load %arg11[%c19_109, %c0_110] : memref<36x128xf32, #tpu.memory_space<vmem>>, vector<16x128xf32>
    tpu.vector_store %arg11[%c19_109, %c0_110], %175 {strides = array<i32>} : memref<36x128xf32, #tpu.memory_space<vmem>>, vector<16x128xf32>,
    %cst_111 = arith.constant 0.000000e+00 : f32
    %177 = vector.broadcast %cst_111 : f32 to vector<32x128xf32>
    %c0_112 = arith.constant 0 : index
    %c0_113 = arith.constant 0 : index
    %178 = vector.load %arg11[%c0_112, %c0_113] : memref<36x128xf32, #tpu.memory_space<vmem>>, vector<16x128xf32>
    %c18_114 = arith.constant 18 : index
    %c0_115 = arith.constant 0 : index
    %179 = vector.load %arg11[%c18_114, %c0_115] : memref<36x128xf32, #tpu.memory_space<vmem>>, vector<16x128xf32>
    %180 = tpu.concatenate %178, %179 in 0 : vector<16x128xf32>, vector<16x128xf32> -> vector<32x128xf32>
    %181 = arith.truncf %180 : vector<32x128xf32> to vector<32x128xbf16>
    %c0_116 = arith.constant 0 : index
    %c0_117 = arith.constant 0 : index
    %c0_118 = arith.constant 0 : index
    %182 = vector.load %arg3[%c0_116, %c0_117, %c0_118] : memref<3x128x128xbf16, #tpu.memory_space<vmem>>, vector<1x128x128xbf16>
    %183 = vector.shape_cast %182 : vector<1x128x128xbf16> to vector<128x128xbf16>
    %cst_119 = arith.constant dense<0.000000e+00> : vector<32x128xf32>
    %184 = tpu.matmul %181, %183, %cst_119 {dimension_numbers = #tpu.dot_dimension_numbers<[1], [0], [0], [1], [0, 0, 1, 1], [], []>} : vector<32x128xbf16>, vector<128x128xbf16>, vector<32x128xf32> -> vector<32x128xf32>
    %185 = arith.addf %177, %184 : vector<32x128xf32>
    %c1_120 = arith.constant 1 : index
    %c0_121 = arith.constant 0 : index
    %186 = vector.load %arg11[%c1_120, %c0_121] : memref<36x128xf32, #tpu.memory_space<vmem>>, vector<16x128xf32>
    %c19_122 = arith.constant 19 : index
    %c0_123 = arith.constant 0 : index
    %187 = vector.load %arg11[%c19_122, %c0_123] : memref<36x128xf32, #tpu.memory_space<vmem>>, vector<16x128xf32>
    %188 = tpu.concatenate %186, %187 in 0 : vector<16x128xf32>, vector<16x128xf32> -> vector<32x128xf32>
    %189 = arith.truncf %188 : vector<32x128xf32> to vector<32x128xbf16>
    %c1_124 = arith.constant 1 : index
    %c0_125 = arith.constant 0 : index
    %c0_126 = arith.constant 0 : index
    %190 = vector.load %arg3[%c1_124, %c0_125, %c0_126] : memref<3x128x128xbf16, #tpu.memory_space<vmem>>, vector<1x128x128xbf16>
    %191 = vector.shape_cast %190 : vector<1x128x128xbf16> to vector<128x128xbf16>
    %cst_127 = arith.constant dense<0.000000e+00> : vector<32x128xf32>
    %192 = tpu.matmul %189, %191, %cst_127 {dimension_numbers = #tpu.dot_dimension_numbers<[1], [0], [0], [1], [0, 0, 1, 1], [], []>} : vector<32x128xbf16>, vector<128x128xbf16>, vector<32x128xf32> -> vector<32x128xf32>
    %193 = arith.addf %185, %192 : vector<32x128xf32>
    %c2_128 = arith.constant 2 : index
    %c0_129 = arith.constant 0 : index
    %194 = vector.load %arg11[%c2_128, %c0_129] : memref<36x128xf32, #tpu.memory_space<vmem>>, vector<16x128xf32>
    %c20_130 = arith.constant 20 : index
    %c0_131 = arith.constant 0 : index
    %195 = vector.load %arg11[%c20_130, %c0_131] : memref<36x128xf32, #tpu.memory_space<vmem>>, vector<16x128xf32>
    %196 = tpu.concatenate %194, %195 in 0 : vector<16x128xf32>, vector<16x128xf32> -> vector<32x128xf32>
    %197 = arith.truncf %196 : vector<32x128xf32> to vector<32x128xbf16>
    %c2_132 = arith.constant 2 : index
    %c0_133 = arith.constant 0 : index
    %c0_134 = arith.constant 0 : index
    %198 = vector.load %arg3[%c2_132, %c0_133, %c0_134] : memref<3x128x128xbf16, #tpu.memory_space<vmem>>, vector<1x128x128xbf16>
    %199 = vector.shape_cast %198 : vector<1x128x128xbf16> to vector<128x128xbf16>
    %cst_135 = arith.constant dense<0.000000e+00> : vector<32x128xf32>
    %200 = tpu.matmul %197, %199, %cst_135 {dimension_numbers = #tpu.dot_dimension_numbers<[1], [0], [0], [1], [0, 0, 1, 1], [], []>} : vector<32x128xbf16>, vector<128x128xbf16>, vector<32x128xf32> -> vector<32x128xf32>
    %201 = arith.addf %193, %200 : vector<32x128xf32>
    %cst_136 = arith.constant dense<0.000000e+00> : vector<128xf32>
    %202 = vector.multi_reduction <add>, %201, %cst_136 [0] : vector<32x128xf32> to vector<128xf32>
    %203 = vector.shape_cast %202 : vector<128xf32> to vector<1x128xf32>
    %cst_137 = arith.constant dense<0.000000e+00> : vector<1x8xf32>
    %204 = tpu.matmul %203, %20, %cst_137 {dimension_numbers = #tpu.dot_dimension_numbers<[1], [0], [0], [1], [0, 0, 1, 1], [], []>} : vector<1x128xf32>, vector<128x8xf32>, vector<1x8xf32> -> vector<1x8xf32>
    %cst_138 = arith.constant 0.001953125 : f32
    %205 = vector.broadcast %cst_138 : f32 to vector<1x8xf32>
    %206 = arith.mulf %204, %205 : vector<1x8xf32>
    %cst_139 = arith.constant dense<0.000000e+00> : vector<1x128xf32>
    %207 = tpu.matmul %206, %41, %cst_139 {dimension_numbers = #tpu.dot_dimension_numbers<[1], [0], [0], [1], [0, 0, 1, 1], [], []>} : vector<1x8xf32>, vector<8x128xf32>, vector<1x128xf32> -> vector<1x128xf32>
    %208 = vector.broadcast %207 : vector<1x128xf32> to vector<32x128xf32>
    %209 = arith.subf %201, %208 : vector<32x128xf32>
    %210 = arith.mulf %209, %209 : vector<32x128xf32>
    %cst_140 = arith.constant dense<0.000000e+00> : vector<128xf32>
    %211 = vector.multi_reduction <add>, %210, %cst_140 [0] : vector<32x128xf32> to vector<128xf32>
    %212 = vector.shape_cast %211 : vector<128xf32> to vector<1x128xf32>
    %cst_141 = arith.constant dense<0.000000e+00> : vector<1x8xf32>
    %213 = tpu.matmul %212, %20, %cst_141 {dimension_numbers = #tpu.dot_dimension_numbers<[1], [0], [0], [1], [0, 0, 1, 1], [], []>} : vector<1x128xf32>, vector<128x8xf32>, vector<1x8xf32> -> vector<1x8xf32>
    %cst_142 = arith.constant 0.001953125 : f32
    %214 = vector.broadcast %cst_142 : f32 to vector<1x8xf32>
    %215 = arith.mulf %213, %214 : vector<1x8xf32>
    %c2_143 = arith.constant 2 : index
    %c0_144 = arith.constant 0 : index
    %c0_145 = arith.constant 0 : index
    %216 = vector.load %arg6[%c2_143, %c0_144, %c0_145] : memref<5x1x8xf32, #tpu.memory_space<vmem>>, vector<1x1x8xf32>
    %217 = vector.shape_cast %216 : vector<1x1x8xf32> to vector<1x8xf32>
    %cst_146 = arith.constant 9.99999974E-6 : f32
    %218 = vector.broadcast %cst_146 : f32 to vector<1x8xf32>
    %219 = arith.addf %215, %218 : vector<1x8xf32>
    %220 = math.rsqrt %219 : vector<1x8xf32>
    %221 = arith.mulf %217, %220 : vector<1x8xf32>
    %cst_147 = arith.constant dense<0.000000e+00> : vector<1x128xf32>
    %222 = tpu.matmul %221, %41, %cst_147 {dimension_numbers = #tpu.dot_dimension_numbers<[1], [0], [0], [1], [0, 0, 1, 1], [], []>} : vector<1x8xf32>, vector<8x128xf32>, vector<1x128xf32> -> vector<1x128xf32>
    %223 = vector.broadcast %222 : vector<1x128xf32> to vector<32x128xf32>
    %224 = arith.mulf %209, %223 : vector<32x128xf32>
    %c2_148 = arith.constant 2 : index
    %c0_149 = arith.constant 0 : index
    %c0_150 = arith.constant 0 : index
    %225 = vector.load %arg7[%c2_148, %c0_149, %c0_150] : memref<5x1x8xf32, #tpu.memory_space<vmem>>, vector<1x1x8xf32>
    %226 = vector.shape_cast %225 : vector<1x1x8xf32> to vector<1x8xf32>
    %cst_151 = arith.constant dense<0.000000e+00> : vector<1x128xf32>
    %227 = tpu.matmul %226, %41, %cst_151 {dimension_numbers = #tpu.dot_dimension_numbers<[1], [0], [0], [1], [0, 0, 1, 1], [], []>} : vector<1x8xf32>, vector<8x128xf32>, vector<1x128xf32> -> vector<1x128xf32>
    %228 = vector.broadcast %227 : vector<1x128xf32> to vector<32x128xf32>
    %229 = arith.addf %224, %228 : vector<32x128xf32>
    %cst_152 = arith.constant 0.000000e+00 : f32
    %230 = vector.broadcast %cst_152 : f32 to vector<32x128xf32>
    %231 = arith.cmpf ogt, %229, %230 : vector<32x128xf32>
    %cst_153 = arith.constant 2.000000e-01 : f32
    %232 = vector.broadcast %cst_153 : f32 to vector<32x128xf32>
    %233 = arith.mulf %232, %229 : vector<32x128xf32>
    %234 = arith.select %231, %229, %233 : vector<32x128xi1>, vector<32x128xf32>
    %235 = vector.extract_strided_slice %234 {offsets = [0, 0], sizes = [16, 128], strides = [1, 1]} : vector<32x128xf32> to vector<16x128xf32>
    %c1_154 = arith.constant 1 : index
    %c0_155 = arith.constant 0 : index
    %236 = vector.load %arg10[%c1_154, %c0_155] : memref<36x128xf32, #tpu.memory_space<vmem>>, vector<16x128xf32>
    tpu.vector_store %arg10[%c1_154, %c0_155], %235 {strides = array<i32>} : memref<36x128xf32, #tpu.memory_space<vmem>>, vector<16x128xf32>,
    %237 = vector.extract_strided_slice %234 {offsets = [16, 0], sizes = [16, 128], strides = [1, 1]} : vector<32x128xf32> to vector<16x128xf32>
    %c19_156 = arith.constant 19 : index
    %c0_157 = arith.constant 0 : index
    %238 = vector.load %arg10[%c19_156, %c0_157] : memref<36x128xf32, #tpu.memory_space<vmem>>, vector<16x128xf32>
    tpu.vector_store %arg10[%c19_156, %c0_157], %237 {strides = array<i32>} : memref<36x128xf32, #tpu.memory_space<vmem>>, vector<16x128xf32>,
    %cst_158 = arith.constant 0.000000e+00 : f32
    %239 = vector.broadcast %cst_158 : f32 to vector<32x128xf32>
    %c0_159 = arith.constant 0 : index
    %c0_160 = arith.constant 0 : index
    %240 = vector.load %arg10[%c0_159, %c0_160] : memref<36x128xf32, #tpu.memory_space<vmem>>, vector<16x128xf32>
    %c18_161 = arith.constant 18 : index
    %c0_162 = arith.constant 0 : index
    %241 = vector.load %arg10[%c18_161, %c0_162] : memref<36x128xf32, #tpu.memory_space<vmem>>, vector<16x128xf32>
    %242 = tpu.concatenate %240, %241 in 0 : vector<16x128xf32>, vector<16x128xf32> -> vector<32x128xf32>
    %243 = arith.truncf %242 : vector<32x128xf32> to vector<32x128xbf16>
    %c0_163 = arith.constant 0 : index
    %c0_164 = arith.constant 0 : index
    %c0_165 = arith.constant 0 : index
    %244 = vector.load %arg4[%c0_163, %c0_164, %c0_165] : memref<3x128x128xbf16, #tpu.memory_space<vmem>>, vector<1x128x128xbf16>
    %245 = vector.shape_cast %244 : vector<1x128x128xbf16> to vector<128x128xbf16>
    %cst_166 = arith.constant dense<0.000000e+00> : vector<32x128xf32>
    %246 = tpu.matmul %243, %245, %cst_166 {dimension_numbers = #tpu.dot_dimension_numbers<[1], [0], [0], [1], [0, 0, 1, 1], [], []>} : vector<32x128xbf16>, vector<128x128xbf16>, vector<32x128xf32> -> vector<32x128xf32>
    %247 = arith.addf %239, %246 : vector<32x128xf32>
    %c1_167 = arith.constant 1 : index
    %c0_168 = arith.constant 0 : index
    %248 = vector.load %arg10[%c1_167, %c0_168] : memref<36x128xf32, #tpu.memory_space<vmem>>, vector<16x128xf32>
    %c19_169 = arith.constant 19 : index
    %c0_170 = arith.constant 0 : index
    %249 = vector.load %arg10[%c19_169, %c0_170] : memref<36x128xf32, #tpu.memory_space<vmem>>, vector<16x128xf32>
    %250 = tpu.concatenate %248, %249 in 0 : vector<16x128xf32>, vector<16x128xf32> -> vector<32x128xf32>
    %251 = arith.truncf %250 : vector<32x128xf32> to vector<32x128xbf16>
    %c1_171 = arith.constant 1 : index
    %c0_172 = arith.constant 0 : index
    %c0_173 = arith.constant 0 : index
    %252 = vector.load %arg4[%c1_171, %c0_172, %c0_173] : memref<3x128x128xbf16, #tpu.memory_space<vmem>>, vector<1x128x128xbf16>
    %253 = vector.shape_cast %252 : vector<1x128x128xbf16> to vector<128x128xbf16>
    %cst_174 = arith.constant dense<0.000000e+00> : vector<32x128xf32>
    %254 = tpu.matmul %251, %253, %cst_174 {dimension_numbers = #tpu.dot_dimension_numbers<[1], [0], [0], [1], [0, 0, 1, 1], [], []>} : vector<32x128xbf16>, vector<128x128xbf16>, vector<32x128xf32> -> vector<32x128xf32>
    %255 = arith.addf %247, %254 : vector<32x128xf32>
    %c2_175 = arith.constant 2 : index
    %c0_176 = arith.constant 0 : index
    %256 = vector.load %arg10[%c2_175, %c0_176] : memref<36x128xf32, #tpu.memory_space<vmem>>, vector<16x128xf32>
    %c20_177 = arith.constant 20 : index
    %c0_178 = arith.constant 0 : index
    %257 = vector.load %arg10[%c20_177, %c0_178] : memref<36x128xf32, #tpu.memory_space<vmem>>, vector<16x128xf32>
    %258 = tpu.concatenate %256, %257 in 0 : vector<16x128xf32>, vector<16x128xf32> -> vector<32x128xf32>
    %259 = arith.truncf %258 : vector<32x128xf32> to vector<32x128xbf16>
    %c2_179 = arith.constant 2 : index
    %c0_180 = arith.constant 0 : index
    %c0_181 = arith.constant 0 : index
    %260 = vector.load %arg4[%c2_179, %c0_180, %c0_181] : memref<3x128x128xbf16, #tpu.memory_space<vmem>>, vector<1x128x128xbf16>
    %261 = vector.shape_cast %260 : vector<1x128x128xbf16> to vector<128x128xbf16>
    %cst_182 = arith.constant dense<0.000000e+00> : vector<32x128xf32>
    %262 = tpu.matmul %259, %261, %cst_182 {dimension_numbers = #tpu.dot_dimension_numbers<[1], [0], [0], [1], [0, 0, 1, 1], [], []>} : vector<32x128xbf16>, vector<128x128xbf16>, vector<32x128xf32> -> vector<32x128xf32>
    %263 = arith.addf %255, %262 : vector<32x128xf32>
    %cst_183 = arith.constant dense<0.000000e+00> : vector<128xf32>
    %264 = vector.multi_reduction <add>, %263, %cst_183 [0] : vector<32x128xf32> to vector<128xf32>
    %265 = vector.shape_cast %264 : vector<128xf32> to vector<1x128xf32>
    %cst_184 = arith.constant dense<0.000000e+00> : vector<1x8xf32>
    %266 = tpu.matmul %265, %20, %cst_184 {dimension_numbers = #tpu.dot_dimension_numbers<[1], [0], [0], [1], [0, 0, 1, 1], [], []>} : vector<1x128xf32>, vector<128x8xf32>, vector<1x8xf32> -> vector<1x8xf32>
    %cst_185 = arith.constant 0.001953125 : f32
    %267 = vector.broadcast %cst_185 : f32 to vector<1x8xf32>
    %268 = arith.mulf %266, %267 : vector<1x8xf32>
    %cst_186 = arith.constant dense<0.000000e+00> : vector<1x128xf32>
    %269 = tpu.matmul %268, %41, %cst_186 {dimension_numbers = #tpu.dot_dimension_numbers<[1], [0], [0], [1], [0, 0, 1, 1], [], []>} : vector<1x8xf32>, vector<8x128xf32>, vector<1x128xf32> -> vector<1x128xf32>
    %270 = vector.broadcast %269 : vector<1x128xf32> to vector<32x128xf32>
    %271 = arith.subf %263, %270 : vector<32x128xf32>
    %272 = arith.mulf %271, %271 : vector<32x128xf32>
    %cst_187 = arith.constant dense<0.000000e+00> : vector<128xf32>
    %273 = vector.multi_reduction <add>, %272, %cst_187 [0] : vector<32x128xf32> to vector<128xf32>
    %274 = vector.shape_cast %273 : vector<128xf32> to vector<1x128xf32>
    %cst_188 = arith.constant dense<0.000000e+00> : vector<1x8xf32>
    %275 = tpu.matmul %274, %20, %cst_188 {dimension_numbers = #tpu.dot_dimension_numbers<[1], [0], [0], [1], [0, 0, 1, 1], [], []>} : vector<1x128xf32>, vector<128x8xf32>, vector<1x8xf32> -> vector<1x8xf32>
    %cst_189 = arith.constant 0.001953125 : f32
    %276 = vector.broadcast %cst_189 : f32 to vector<1x8xf32>
    %277 = arith.mulf %275, %276 : vector<1x8xf32>
    %c3 = arith.constant 3 : index
    %c0_190 = arith.constant 0 : index
    %c0_191 = arith.constant 0 : index
    %278 = vector.load %arg6[%c3, %c0_190, %c0_191] : memref<5x1x8xf32, #tpu.memory_space<vmem>>, vector<1x1x8xf32>
    %279 = vector.shape_cast %278 : vector<1x1x8xf32> to vector<1x8xf32>
    %cst_192 = arith.constant 9.99999974E-6 : f32
    %280 = vector.broadcast %cst_192 : f32 to vector<1x8xf32>
    %281 = arith.addf %277, %280 : vector<1x8xf32>
    %282 = math.rsqrt %281 : vector<1x8xf32>
    %283 = arith.mulf %279, %282 : vector<1x8xf32>
    %cst_193 = arith.constant dense<0.000000e+00> : vector<1x128xf32>
    %284 = tpu.matmul %283, %41, %cst_193 {dimension_numbers = #tpu.dot_dimension_numbers<[1], [0], [0], [1], [0, 0, 1, 1], [], []>} : vector<1x8xf32>, vector<8x128xf32>, vector<1x128xf32> -> vector<1x128xf32>
    %285 = vector.broadcast %284 : vector<1x128xf32> to vector<32x128xf32>
    %286 = arith.mulf %271, %285 : vector<32x128xf32>
    %c3_194 = arith.constant 3 : index
    %c0_195 = arith.constant 0 : index
    %c0_196 = arith.constant 0 : index
    %287 = vector.load %arg7[%c3_194, %c0_195, %c0_196] : memref<5x1x8xf32, #tpu.memory_space<vmem>>, vector<1x1x8xf32>
    %288 = vector.shape_cast %287 : vector<1x1x8xf32> to vector<1x8xf32>
    %cst_197 = arith.constant dense<0.000000e+00> : vector<1x128xf32>
    %289 = tpu.matmul %288, %41, %cst_197 {dimension_numbers = #tpu.dot_dimension_numbers<[1], [0], [0], [1], [0, 0, 1, 1], [], []>} : vector<1x8xf32>, vector<8x128xf32>, vector<1x128xf32> -> vector<1x128xf32>
    %290 = vector.broadcast %289 : vector<1x128xf32> to vector<32x128xf32>
    %291 = arith.addf %286, %290 : vector<32x128xf32>
    %292 = arith.addf %110, %291 : vector<32x128xf32>
    %293 = vector.extract_strided_slice %292 {offsets = [0, 0], sizes = [16, 128], strides = [1, 1]} : vector<32x128xf32> to vector<16x128xf32>
    %c1_198 = arith.constant 1 : index
    %c0_199 = arith.constant 0 : index
    %294 = vector.load %arg11[%c1_198, %c0_199] : memref<36x128xf32, #tpu.memory_space<vmem>>, vector<16x128xf32>
    tpu.vector_store %arg11[%c1_198, %c0_199], %293 {strides = array<i32>} : memref<36x128xf32, #tpu.memory_space<vmem>>, vector<16x128xf32>,
    %295 = vector.extract_strided_slice %292 {offsets = [16, 0], sizes = [16, 128], strides = [1, 1]} : vector<32x128xf32> to vector<16x128xf32>
    %c19_200 = arith.constant 19 : index
    %c0_201 = arith.constant 0 : index
    %296 = vector.load %arg11[%c19_200, %c0_201] : memref<36x128xf32, #tpu.memory_space<vmem>>, vector<16x128xf32>
    tpu.vector_store %arg11[%c19_200, %c0_201], %295 {strides = array<i32>} : memref<36x128xf32, #tpu.memory_space<vmem>>, vector<16x128xf32>,
    %cst_202 = arith.constant 0.000000e+00 : f32
    %297 = vector.broadcast %cst_202 : f32 to vector<32x128xf32>
    %c0_203 = arith.constant 0 : index
    %c0_204 = arith.constant 0 : index
    %298 = vector.load %arg11[%c0_203, %c0_204] : memref<36x128xf32, #tpu.memory_space<vmem>>, vector<16x128xf32>
    %c18_205 = arith.constant 18 : index
    %c0_206 = arith.constant 0 : index
    %299 = vector.load %arg11[%c18_205, %c0_206] : memref<36x128xf32, #tpu.memory_space<vmem>>, vector<16x128xf32>
    %300 = tpu.concatenate %298, %299 in 0 : vector<16x128xf32>, vector<16x128xf32> -> vector<32x128xf32>
    %301 = arith.truncf %300 : vector<32x128xf32> to vector<32x128xbf16>
    %c0_207 = arith.constant 0 : index
    %c0_208 = arith.constant 0 : index
    %c0_209 = arith.constant 0 : index
    %302 = vector.load %arg5[%c0_207, %c0_208, %c0_209] : memref<3x128x128xbf16, #tpu.memory_space<vmem>>, vector<1x128x128xbf16>
    %303 = vector.shape_cast %302 : vector<1x128x128xbf16> to vector<128x128xbf16>
    %cst_210 = arith.constant dense<0.000000e+00> : vector<32x128xf32>
    %304 = tpu.matmul %301, %303, %cst_210 {dimension_numbers = #tpu.dot_dimension_numbers<[1], [0], [0], [1], [0, 0, 1, 1], [], []>} : vector<32x128xbf16>, vector<128x128xbf16>, vector<32x128xf32> -> vector<32x128xf32>
    %305 = arith.addf %297, %304 : vector<32x128xf32>
    %c1_211 = arith.constant 1 : index
    %c0_212 = arith.constant 0 : index
    %306 = vector.load %arg11[%c1_211, %c0_212] : memref<36x128xf32, #tpu.memory_space<vmem>>, vector<16x128xf32>
    %c19_213 = arith.constant 19 : index
    %c0_214 = arith.constant 0 : index
    %307 = vector.load %arg11[%c19_213, %c0_214] : memref<36x128xf32, #tpu.memory_space<vmem>>, vector<16x128xf32>
    %308 = tpu.concatenate %306, %307 in 0 : vector<16x128xf32>, vector<16x128xf32> -> vector<32x128xf32>
    %309 = arith.truncf %308 : vector<32x128xf32> to vector<32x128xbf16>
    %c1_215 = arith.constant 1 : index
    %c0_216 = arith.constant 0 : index
    %c0_217 = arith.constant 0 : index
    %310 = vector.load %arg5[%c1_215, %c0_216, %c0_217] : memref<3x128x128xbf16, #tpu.memory_space<vmem>>, vector<1x128x128xbf16>
    %311 = vector.shape_cast %310 : vector<1x128x128xbf16> to vector<128x128xbf16>
    %cst_218 = arith.constant dense<0.000000e+00> : vector<32x128xf32>
    %312 = tpu.matmul %309, %311, %cst_218 {dimension_numbers = #tpu.dot_dimension_numbers<[1], [0], [0], [1], [0, 0, 1, 1], [], []>} : vector<32x128xbf16>, vector<128x128xbf16>, vector<32x128xf32> -> vector<32x128xf32>
    %313 = arith.addf %305, %312 : vector<32x128xf32>
    %c2_219 = arith.constant 2 : index
    %c0_220 = arith.constant 0 : index
    %314 = vector.load %arg11[%c2_219, %c0_220] : memref<36x128xf32, #tpu.memory_space<vmem>>, vector<16x128xf32>
    %c20_221 = arith.constant 20 : index
    %c0_222 = arith.constant 0 : index
    %315 = vector.load %arg11[%c20_221, %c0_222] : memref<36x128xf32, #tpu.memory_space<vmem>>, vector<16x128xf32>
    %316 = tpu.concatenate %314, %315 in 0 : vector<16x128xf32>, vector<16x128xf32> -> vector<32x128xf32>
    %317 = arith.truncf %316 : vector<32x128xf32> to vector<32x128xbf16>
    %c2_223 = arith.constant 2 : index
    %c0_224 = arith.constant 0 : index
    %c0_225 = arith.constant 0 : index
    %318 = vector.load %arg5[%c2_223, %c0_224, %c0_225] : memref<3x128x128xbf16, #tpu.memory_space<vmem>>, vector<1x128x128xbf16>
    %319 = vector.shape_cast %318 : vector<1x128x128xbf16> to vector<128x128xbf16>
    %cst_226 = arith.constant dense<0.000000e+00> : vector<32x128xf32>
    %320 = tpu.matmul %317, %319, %cst_226 {dimension_numbers = #tpu.dot_dimension_numbers<[1], [0], [0], [1], [0, 0, 1, 1], [], []>} : vector<32x128xbf16>, vector<128x128xbf16>, vector<32x128xf32> -> vector<32x128xf32>
    %321 = arith.addf %313, %320 : vector<32x128xf32>
    %cst_227 = arith.constant dense<0.000000e+00> : vector<128xf32>
    %322 = vector.multi_reduction <add>, %321, %cst_227 [0] : vector<32x128xf32> to vector<128xf32>
    %323 = vector.shape_cast %322 : vector<128xf32> to vector<1x128xf32>
    %cst_228 = arith.constant dense<0.000000e+00> : vector<1x8xf32>
    %324 = tpu.matmul %323, %20, %cst_228 {dimension_numbers = #tpu.dot_dimension_numbers<[1], [0], [0], [1], [0, 0, 1, 1], [], []>} : vector<1x128xf32>, vector<128x8xf32>, vector<1x8xf32> -> vector<1x8xf32>
    %cst_229 = arith.constant 0.001953125 : f32
    %325 = vector.broadcast %cst_229 : f32 to vector<1x8xf32>
    %326 = arith.mulf %324, %325 : vector<1x8xf32>
    %cst_230 = arith.constant dense<0.000000e+00> : vector<1x128xf32>
    %327 = tpu.matmul %326, %41, %cst_230 {dimension_numbers = #tpu.dot_dimension_numbers<[1], [0], [0], [1], [0, 0, 1, 1], [], []>} : vector<1x8xf32>, vector<8x128xf32>, vector<1x128xf32> -> vector<1x128xf32>
    %328 = vector.broadcast %327 : vector<1x128xf32> to vector<32x128xf32>
    %329 = arith.subf %321, %328 : vector<32x128xf32>
    %330 = arith.mulf %329, %329 : vector<32x128xf32>
    %cst_231 = arith.constant dense<0.000000e+00> : vector<128xf32>
    %331 = vector.multi_reduction <add>, %330, %cst_231 [0] : vector<32x128xf32> to vector<128xf32>
    %332 = vector.shape_cast %331 : vector<128xf32> to vector<1x128xf32>
    %cst_232 = arith.constant dense<0.000000e+00> : vector<1x8xf32>
    %333 = tpu.matmul %332, %20, %cst_232 {dimension_numbers = #tpu.dot_dimension_numbers<[1], [0], [0], [1], [0, 0, 1, 1], [], []>} : vector<1x128xf32>, vector<128x8xf32>, vector<1x8xf32> -> vector<1x8xf32>
    %cst_233 = arith.constant 0.001953125 : f32
    %334 = vector.broadcast %cst_233 : f32 to vector<1x8xf32>
    %335 = arith.mulf %333, %334 : vector<1x8xf32>
    %c4 = arith.constant 4 : index
    %c0_234 = arith.constant 0 : index
    %c0_235 = arith.constant 0 : index
    %336 = vector.load %arg6[%c4, %c0_234, %c0_235] : memref<5x1x8xf32, #tpu.memory_space<vmem>>, vector<1x1x8xf32>
    %337 = vector.shape_cast %336 : vector<1x1x8xf32> to vector<1x8xf32>
    %cst_236 = arith.constant 9.99999974E-6 : f32
    %338 = vector.broadcast %cst_236 : f32 to vector<1x8xf32>
    %339 = arith.addf %335, %338 : vector<1x8xf32>
    %340 = math.rsqrt %339 : vector<1x8xf32>
    %341 = arith.mulf %337, %340 : vector<1x8xf32>
    %cst_237 = arith.constant dense<0.000000e+00> : vector<1x128xf32>
    %342 = tpu.matmul %341, %41, %cst_237 {dimension_numbers = #tpu.dot_dimension_numbers<[1], [0], [0], [1], [0, 0, 1, 1], [], []>} : vector<1x8xf32>, vector<8x128xf32>, vector<1x128xf32> -> vector<1x128xf32>
    %343 = vector.broadcast %342 : vector<1x128xf32> to vector<32x128xf32>
    %344 = arith.mulf %329, %343 : vector<32x128xf32>
    %c4_238 = arith.constant 4 : index
    %c0_239 = arith.constant 0 : index
    %c0_240 = arith.constant 0 : index
    %345 = vector.load %arg7[%c4_238, %c0_239, %c0_240] : memref<5x1x8xf32, #tpu.memory_space<vmem>>, vector<1x1x8xf32>
    %346 = vector.shape_cast %345 : vector<1x1x8xf32> to vector<1x8xf32>
    %cst_241 = arith.constant dense<0.000000e+00> : vector<1x128xf32>
    %347 = tpu.matmul %346, %41, %cst_241 {dimension_numbers = #tpu.dot_dimension_numbers<[1], [0], [0], [1], [0, 0, 1, 1], [], []>} : vector<1x8xf32>, vector<8x128xf32>, vector<1x128xf32> -> vector<1x128xf32>
    %348 = vector.broadcast %347 : vector<1x128xf32> to vector<32x128xf32>
    %349 = arith.addf %344, %348 : vector<32x128xf32>
    %cst_242 = arith.constant 0.000000e+00 : f32
    %350 = vector.broadcast %cst_242 : f32 to vector<32x128xf32>
    %351 = arith.cmpf ogt, %349, %350 : vector<32x128xf32>
    %cst_243 = arith.constant 2.000000e-01 : f32
    %352 = vector.broadcast %cst_243 : f32 to vector<32x128xf32>
    %353 = arith.mulf %352, %349 : vector<32x128xf32>
    %354 = arith.select %351, %349, %353 : vector<32x128xi1>, vector<32x128xf32>
    %c0_244 = arith.constant 0 : index
    %c0_245 = arith.constant 0 : index
    %355 = vector.load %arg8[%c0_244, %c0_245] : memref<32x128xf32, #tpu.memory_space<vmem>>, vector<32x128xf32>
    tpu.vector_store %arg8[%c0_244, %c0_245], %354 {strides = array<i32>} : memref<32x128xf32, #tpu.memory_space<vmem>>, vector<32x128xf32>,
    return
  }
}

</mosaic_0001>

<llo_original>
// kernel: mul.0
$region0: #{mul.0}
  #allocation0 [shape = 's32[1]{0}', space=sflag, size = 0x4, scoped, tag = 'scoped memory for mul.0']
  %s0 = inlined_call_operand.vmem [shape: f32[4608], index: 0, kind: input, shape index: {}]
  %s1 = inlined_call_operand.vmem [shape: f32[4608], index: 1, kind: input, shape index: {}]
  %s2 = inlined_call_operand.vmem [shape: f32[4608], index: 2, kind: output, shape index: {}]
  %v3 = vld [vmem:[%s0] sm:$0xff]
  %v4 = vld [vmem:[%s1] sm:$0xff]
  %5 = xla_tuple %v3, %v4
  %6 = xla_tuple %5
  %v7 = vmul.f32 %v3, %v4
  %8 = xla_tuple %v7
  %9 = vst [vmem:[%s2] sm:$0xff] %v7
  %s10 = scalar_lea.vmem %s0, 8
  %v11 = vld [vmem:[%s10] sm:$0xff]
  %s12 = scalar_lea.vmem %s1, 8
  %v13 = vld [vmem:[%s12] sm:$0xff]
  %14 = xla_tuple %v11, %v13
  %15 = xla_tuple %14
  %v16 = vmul.f32 %v11, %v13
  %17 = xla_tuple %v16
  %s18 = scalar_lea.vmem %s2, 8
  %19 = vst [vmem:[%s18] sm:$0xff] %v16
  %s20 = scalar_lea.vmem %s0, 16
  %v21 = vld [vmem:[%s20] sm:$0xff]
  %s22 = scalar_lea.vmem %s1, 16
  %v23 = vld [vmem:[%s22] sm:$0xff]
  %24 = xla_tuple %v21, %v23
  %25 = xla_tuple %24
  %v26 = vmul.f32 %v21, %v23
  %27 = xla_tuple %v26
  %s28 = scalar_lea.vmem %s2, 16
  %29 = vst [vmem:[%s28] sm:$0xff] %v26
  %s30 = scalar_lea.vmem %s0, 24
  %v31 = vld [vmem:[%s30] sm:$0xff]
  %s32 = scalar_lea.vmem %s1, 24
  %v33 = vld [vmem:[%s32] sm:$0xff]
  %34 = xla_tuple %v31, %v33
  %35 = xla_tuple %34
  %v36 = vmul.f32 %v31, %v33
  %37 = xla_tuple %v36
  %s38 = scalar_lea.vmem %s2, 24
  %39 = vst [vmem:[%s38] sm:$0xff] %v36
  %s40 = scalar_lea.vmem %s0, 32
  %v41 = vld [vmem:[%s40] sm:$0xff]
  %s42 = scalar_lea.vmem %s1, 32
  %v43 = vld [vmem:[%s42] sm:$0xff]
  %44 = xla_tuple %v41, %v43
  %45 = xla_tuple %44
  %v46 = vmul.f32 %v41, %v43
  %47 = xla_tuple %v46
  %s48 = scalar_lea.vmem %s2, 32
  %49 = vst [vmem:[%s48] sm:$0xff] %v46

// kernel: conv_residual_conv.1
$region0: #{conv_residual_conv.1}
  #allocation0 [shape = 'u32[]', space=smem, size = 0x4, offset = 0x4, fixed_abs, tag = 'smem constant byte address 0x4 - core index']
  #allocation1 [shape = 'u32[144,128]{1,0:T(1,128)}', space=vmem, size = 0x12000, scoped, tag = 'internal scratch']
  #allocation2 [shape = 'f32[36,64]{1,0:T(8,128)}', space=vmem, size = 0x5000, scoped, tag = 'scratch operand']
  #allocation3 [shape = 'f32[36,128]{1,0:T(8,128)}', space=vmem, size = 0x5000, scoped, tag = 'scratch operand']
  #allocation4 [shape = 'f32[36,128]{1,0:T(8,128)}', space=vmem, size = 0x5000, scoped, tag = 'scratch operand']
  %s0 = inlined_call_operand.vmem [shape: f32[32,64], index: 0, kind: input, shape index: {}]
  %s1 = inlined_call_operand.vmem [shape: bf16[3,64,128], index: 1, kind: input, shape index: {}]
  %s2 = inlined_call_operand.vmem [shape: bf16[3,128,128], index: 2, kind: input, shape index: {}]
  %s3 = inlined_call_operand.vmem [shape: bf16[3,128,128], index: 3, kind: input, shape index: {}]
  %s4 = inlined_call_operand.vmem [shape: bf16[3,128,128], index: 4, kind: input, shape index: {}]
  %s5 = inlined_call_operand.vmem [shape: bf16[3,128,128], index: 5, kind: input, shape index: {}]
  %s6 = inlined_call_operand.vmem [shape: f32[5,1,8], index: 6, kind: input, shape index: {}]
  %s7 = inlined_call_operand.vmem [shape: f32[5,1,8], index: 7, kind: input, shape index: {}]
  %s8 = inlined_call_operand.vmem [shape: f32[32,128], index: 8, kind: output, shape index: {}]
  %s9 = sld [smem:[#allocation0]]
  $region42: #{conv_residual_conv.1} parent=0
    _
  %s11 = ssub.s32 1, %s9
  %s12 = scalar_select 0, %s11, %s9
  // Predicated region
  $region2: #{conv_residual_conv.1} parent=0 // pred_check
    _
  $region3: #{conv_residual_conv.1} parent=0 // pred_check_branch
    %14 = sbr.rel (0) target = $region5
  $region4: #{conv_residual_conv.1} parent=0 // pred_region
    _
  $region5: #{conv_residual_conv.1} parent=0 // pred_fallthru
    _
  // Predicated region
  $region6: #{conv_residual_conv.1} parent=0 // pred_check
    _
  $region7: #{conv_residual_conv.1} parent=0 // pred_check_branch
    %16 = sbr.rel (0) target = $region9
  $region8: #{conv_residual_conv.1} parent=0 // pred_region
    _
  $region9: #{conv_residual_conv.1} parent=0 // pred_fallthru
    _
  // Predicated region
  $region10: #{conv_residual_conv.1} parent=0 // pred_check
    _
  $region11: #{conv_residual_conv.1} parent=0 // pred_check_branch
    %18 = sbr.rel (0) target = $region13
  $region12: #{conv_residual_conv.1} parent=0 // pred_region
    _
  $region13: #{conv_residual_conv.1} parent=0 // pred_fallthru
    _
  // Predicated region
  $region14: #{conv_residual_conv.1} parent=0 // pred_check
    _
  $region15: #{conv_residual_conv.1} parent=0 // pred_check_branch
    %20 = sbr.rel (0) target = $region17
  $region16: #{conv_residual_conv.1} parent=0 // pred_region
    _
  $region17: #{conv_residual_conv.1} parent=0 // pred_fallthru
    _
  // Predicated region
  $region18: #{conv_residual_conv.1} parent=0 // pred_check
    _
  $region19: #{conv_residual_conv.1} parent=0 // pred_check_branch
    %22 = sbr.rel (0) target = $region21
  $region20: #{conv_residual_conv.1} parent=0 // pred_region
    _
  $region21: #{conv_residual_conv.1} parent=0 // pred_fallthru
    _
  // Predicated region
  $region22: #{conv_residual_conv.1} parent=0 // pred_check
    _
  $region23: #{conv_residual_conv.1} parent=0 // pred_check_branch
    %24 = sbr.rel (0) target = $region25
  $region24: #{conv_residual_conv.1} parent=0 // pred_region
    _
  $region25: #{conv_residual_conv.1} parent=0 // pred_fallthru
    _
  // Predicated region
  $region26: #{conv_residual_conv.1} parent=0 // pred_check
    _
  $region27: #{conv_residual_conv.1} parent=0 // pred_check_branch
    %26 = sbr.rel (0) target = $region29
  $region28: #{conv_residual_conv.1} parent=0 // pred_region
    _
  $region29: #{conv_residual_conv.1} parent=0 // pred_fallthru
    _
  // Predicated region
  $region30: #{conv_residual_conv.1} parent=0 // pred_check
    _
  $region31: #{conv_residual_conv.1} parent=0 // pred_check_branch
    %28 = sbr.rel (0) target = $region33
  $region32: #{conv_residual_conv.1} parent=0 // pred_region
    _
  $region33: #{conv_residual_conv.1} parent=0 // pred_fallthru
    _
  %v30 = vlaneseq
  %v31 = vshrl.u32 %v30, 7
  %v32 = vadd.s32 %v31, 8
  %v33 = vadd.s32 %v31, 16
  %v34 = vadd.s32 %v31, 24
  %v35 = vadd.s32 %v31, 32
  %v36 = vadd.s32 %v31, 40
  %v37 = vadd.s32 %v31, 48
  %v38 = vadd.s32 %v31, 56
  %v39 = vadd.s32 %v31, 64
  %v40 = vadd.s32 %v31, 72
  %v41 = vadd.s32 %v31, 80
  %v42 = vadd.s32 %v31, 88
  %v43 = vadd.s32 %v31, 96
  %v44 = vadd.s32 %v31, 104
  %v45 = vadd.s32 %v31, 112
  %v46 = vadd.s32 %v31, 120
  %vm47 = vcmp.lt.s32.totalorder %v31, 0
  %v48 = vsub.s32 0, %v31
  %v49 = vsel %vm47, %v48, %v31
  %v50 = vshrl.u32 %v49, 3
  %v51 = vand.u32 %v49, 7
  %v52 = vsub.s32 0, %v51
  %v53 = vsel %vm47, %v52, %v51
  %vm54 = vcmp.lt.s32.totalorder %v32, 0
  %v55 = vsub.s32 0, %v32
  %v56 = vsel %vm54, %v55, %v32
  %v57 = vshrl.u32 %v56, 3
  %v58 = vand.u32 %v56, 7
  %v59 = vsub.s32 0, %v58
  %v60 = vsel %vm54, %v59, %v58
  %vm61 = vcmp.lt.s32.totalorder %v33, 0
  %v62 = vsub.s32 0, %v33
  %v63 = vsel %vm61, %v62, %v33
  %v64 = vshrl.u32 %v63, 3
  %v65 = vand.u32 %v63, 7
  %v66 = vsub.s32 0, %v65
  %v67 = vsel %vm61, %v66, %v65
  %vm68 = vcmp.lt.s32.totalorder %v34, 0
  %v69 = vsub.s32 0, %v34
  %v70 = vsel %vm68, %v69, %v34
  %v71 = vshrl.u32 %v70, 3
  %v72 = vand.u32 %v70, 7
  %v73 = vsub.s32 0, %v72
  %v74 = vsel %vm68, %v73, %v72
  %vm75 = vcmp.lt.s32.totalorder %v35, 0
  %v76 = vsub.s32 0, %v35
  %v77 = vsel %vm75, %v76, %v35
  %v78 = vshrl.u32 %v77, 3
  %v79 = vand.u32 %v77, 7
  %v80 = vsub.s32 0, %v79
  %v81 = vsel %vm75, %v80, %v79
  %vm82 = vcmp.lt.s32.totalorder %v36, 0
  %v83 = vsub.s32 0, %v36
  %v84 = vsel %vm82, %v83, %v36
  %v85 = vshrl.u32 %v84, 3
  %v86 = vand.u32 %v84, 7
  %v87 = vsub.s32 0, %v86
  %v88 = vsel %vm82, %v87, %v86
  %vm89 = vcmp.lt.s32.totalorder %v37, 0
  %v90 = vsub.s32 0, %v37
  %v91 = vsel %vm89, %v90, %v37
  %v92 = vshrl.u32 %v91, 3
  %v93 = vand.u32 %v91, 7
  %v94 = vsub.s32 0, %v93
  %v95 = vsel %vm89, %v94, %v93
  %vm96 = vcmp.lt.s32.totalorder %v38, 0
  %v97 = vsub.s32 0, %v38
  %v98 = vsel %vm96, %v97, %v38
  %v99 = vshrl.u32 %v98, 3
  %v100 = vand.u32 %v98, 7
  %v101 = vsub.s32 0, %v100
  %v102 = vsel %vm96, %v101, %v100
  %vm103 = vcmp.lt.s32.totalorder %v39, 0
  %v104 = vsub.s32 0, %v39
  %v105 = vsel %vm103, %v104, %v39
  %v106 = vshrl.u32 %v105, 3
  %v107 = vand.u32 %v105, 7
  %v108 = vsub.s32 0, %v107
  %v109 = vsel %vm103, %v108, %v107
  %vm110 = vcmp.lt.s32.totalorder %v40, 0
  %v111 = vsub.s32 0, %v40
  %v112 = vsel %vm110, %v111, %v40
  %v113 = vshrl.u32 %v112, 3
  %v114 = vand.u32 %v112, 7
  %v115 = vsub.s32 0, %v114
  %v116 = vsel %vm110, %v115, %v114
  %vm117 = vcmp.lt.s32.totalorder %v41, 0
  %v118 = vsub.s32 0, %v41
  %v119 = vsel %vm117, %v118, %v41
  %v120 = vshrl.u32 %v119, 3
  %v121 = vand.u32 %v119, 7
  %v122 = vsub.s32 0, %v121
  %v123 = vsel %vm117, %v122, %v121
  %vm124 = vcmp.lt.s32.totalorder %v42, 0
  %v125 = vsub.s32 0, %v42
  %v126 = vsel %vm124, %v125, %v42
  %v127 = vshrl.u32 %v126, 3
  %v128 = vand.u32 %v126, 7
  %v129 = vsub.s32 0, %v128
  %v130 = vsel %vm124, %v129, %v128
  %vm131 = vcmp.lt.s32.totalorder %v43, 0
  %v132 = vsub.s32 0, %v43
  %v133 = vsel %vm131, %v132, %v43
  %v134 = vshrl.u32 %v133, 3
  %v135 = vand.u32 %v133, 7
  %v136 = vsub.s32 0, %v135
  %v137 = vsel %vm131, %v136, %v135
  %vm138 = vcmp.lt.s32.totalorder %v44, 0
  %v139 = vsub.s32 0, %v44
  %v140 = vsel %vm138, %v139, %v44
  %v141 = vshrl.u32 %v140, 3
  %v142 = vand.u32 %v140, 7
  %v143 = vsub.s32 0, %v142
  %v144 = vsel %vm138, %v143, %v142
  %vm145 = vcmp.lt.s32.totalorder %v45, 0
  %v146 = vsub.s32 0, %v45
  %v147 = vsel %vm145, %v146, %v45
  %v148 = vshrl.u32 %v147, 3
  %v149 = vand.u32 %v147, 7
  %v150 = vsub.s32 0, %v149
  %v151 = vsel %vm145, %v150, %v149
  %vm152 = vcmp.lt.s32.totalorder %v46, 0
  %v153 = vsub.s32 0, %v46
  %v154 = vsel %vm152, %v153, %v46
  %v155 = vshrl.u32 %v154, 3
  %v156 = vand.u32 %v154, 7
  %v157 = vsub.s32 0, %v156
  %v158 = vsel %vm152, %v157, %v156
  %vm159 = vcmp.ne.s32.totalorder %v53, 0
  %vm160 = vcmp.ne.s32.totalorder %v60, 0
  %vm161 = vcmp.ne.s32.totalorder %v67, 0
  %vm162 = vcmp.ne.s32.totalorder %v74, 0
  %vm163 = vcmp.ne.s32.totalorder %v81, 0
  %vm164 = vcmp.ne.s32.totalorder %v88, 0
  %vm165 = vcmp.ne.s32.totalorder %v95, 0
  %vm166 = vcmp.ne.s32.totalorder %v102, 0
  %vm167 = vcmp.ne.s32.totalorder %v109, 0
  %vm168 = vcmp.ne.s32.totalorder %v116, 0
  %vm169 = vcmp.ne.s32.totalorder %v123, 0
  %vm170 = vcmp.ne.s32.totalorder %v130, 0
  %vm171 = vcmp.ne.s32.totalorder %v137, 0
  %vm172 = vcmp.ne.s32.totalorder %v144, 0
  %vm173 = vcmp.ne.s32.totalorder %v151, 0
  %vm174 = vcmp.ne.s32.totalorder %v158, 0
  %vm175 = vcmp.lt.s32.totalorder %v53, 0
  %vm176 = vcmp.lt.s32.totalorder %v60, 0
  %vm177 = vcmp.lt.s32.totalorder %v67, 0
  %vm178 = vcmp.lt.s32.totalorder %v74, 0
  %vm179 = vcmp.lt.s32.totalorder %v81, 0
  %vm180 = vcmp.lt.s32.totalorder %v88, 0
  %vm181 = vcmp.lt.s32.totalorder %v95, 0
  %vm182 = vcmp.lt.s32.totalorder %v102, 0
  %vm183 = vcmp.lt.s32.totalorder %v109, 0
  %vm184 = vcmp.lt.s32.totalorder %v116, 0
  %vm185 = vcmp.lt.s32.totalorder %v123, 0
  %vm186 = vcmp.lt.s32.totalorder %v130, 0
  %vm187 = vcmp.lt.s32.totalorder %v137, 0
  %vm188 = vcmp.lt.s32.totalorder %v144, 0
  %vm189 = vcmp.lt.s32.totalorder %v151, 0
  %vm190 = vcmp.lt.s32.totalorder %v158, 0
  %vm191 = vmand %vm175, %vm159
  %vm192 = vmand %vm176, %vm160
  %vm193 = vmand %vm177, %vm161
  %vm194 = vmand %vm178, %vm162
  %vm195 = vmand %vm179, %vm163
  %vm196 = vmand %vm180, %vm164
  %vm197 = vmand %vm181, %vm165
  %vm198 = vmand %vm182, %vm166
  %vm199 = vmand %vm183, %vm167
  %vm200 = vmand %vm184, %vm168
  %vm201 = vmand %vm185, %vm169
  %vm202 = vmand %vm186, %vm170
  %vm203 = vmand %vm187, %vm171
  %vm204 = vmand %vm188, %vm172
  %vm205 = vmand %vm189, %vm173
  %vm206 = vmand %vm190, %vm174
  %v207 = vadd.s32 %v53, 8
  %v208 = vadd.s32 %v60, 8
  %v209 = vadd.s32 %v67, 8
  %v210 = vadd.s32 %v74, 8
  %v211 = vadd.s32 %v81, 8
  %v212 = vadd.s32 %v88, 8
  %v213 = vadd.s32 %v95, 8
  %v214 = vadd.s32 %v102, 8
  %v215 = vadd.s32 %v109, 8
  %v216 = vadd.s32 %v116, 8
  %v217 = vadd.s32 %v123, 8
  %v218 = vadd.s32 %v130, 8
  %v219 = vadd.s32 %v137, 8
  %v220 = vadd.s32 %v144, 8
  %v221 = vadd.s32 %v151, 8
  %v222 = vadd.s32 %v158, 8
  %v223 = vsel %vm191, %v207, %v53
  %v224 = vsel %vm192, %v208, %v60
  %v225 = vsel %vm193, %v209, %v67
  %v226 = vsel %vm194, %v210, %v74
  %v227 = vsel %vm195, %v211, %v81
  %v228 = vsel %vm196, %v212, %v88
  %v229 = vsel %vm197, %v213, %v95
  %v230 = vsel %vm198, %v214, %v102
  %v231 = vsel %vm199, %v215, %v109
  %v232 = vsel %vm200, %v216, %v116
  %v233 = vsel %vm201, %v217, %v123
  %v234 = vsel %vm202, %v218, %v130
  %v235 = vsel %vm203, %v219, %v137
  %v236 = vsel %vm204, %v220, %v144
  %v237 = vsel %vm205, %v221, %v151
  %v238 = vsel %vm206, %v222, %v158
  %v239 = vlaneseq
  %v240 = vand.u32 %v239, 127
  %vm241 = vcmp.eq.s32.totalorder %v223, %v240
  %vm242 = vcmp.eq.s32.totalorder %v224, %v240
  %vm243 = vcmp.eq.s32.totalorder %v225, %v240
  %vm244 = vcmp.eq.s32.totalorder %v226, %v240
  %vm245 = vcmp.eq.s32.totalorder %v227, %v240
  %vm246 = vcmp.eq.s32.totalorder %v228, %v240
  %vm247 = vcmp.eq.s32.totalorder %v229, %v240
  %vm248 = vcmp.eq.s32.totalorder %v230, %v240
  %vm249 = vcmp.eq.s32.totalorder %v231, %v240
  %vm250 = vcmp.eq.s32.totalorder %v232, %v240
  %vm251 = vcmp.eq.s32.totalorder %v233, %v240
  %vm252 = vcmp.eq.s32.totalorder %v234, %v240
  %vm253 = vcmp.eq.s32.totalorder %v235, %v240
  %vm254 = vcmp.eq.s32.totalorder %v236, %v240
  %vm255 = vcmp.eq.s32.totalorder %v237, %v240
  %vm256 = vcmp.eq.s32.totalorder %v238, %v240
  %v257 = vsel %vm241, 1, 0
  %v258 = vsel %vm242, 1, 0
  %v259 = vsel %vm243, 1, 0
  %v260 = vsel %vm244, 1, 0
  %v261 = vsel %vm245, 1, 0
  %v262 = vsel %vm246, 1, 0
  %v263 = vsel %vm247, 1, 0
  %v264 = vsel %vm248, 1, 0
  %v265 = vsel %vm249, 1, 0
  %v266 = vsel %vm250, 1, 0
  %v267 = vsel %vm251, 1, 0
  %v268 = vsel %vm252, 1, 0
  %v269 = vsel %vm253, 1, 0
  %v270 = vsel %vm254, 1, 0
  %v271 = vsel %vm255, 1, 0
  %v272 = vsel %vm256, 1, 0
  %v273 = vcvt.s32.f32 %v257
  %v274 = vcvt.s32.f32 %v258
  %v275 = vcvt.s32.f32 %v259
  %v276 = vcvt.s32.f32 %v260
  %v277 = vcvt.s32.f32 %v261
  %v278 = vcvt.s32.f32 %v262
  %v279 = vcvt.s32.f32 %v263
  %v280 = vcvt.s32.f32 %v264
  %v281 = vcvt.s32.f32 %v265
  %v282 = vcvt.s32.f32 %v266
  %v283 = vcvt.s32.f32 %v267
  %v284 = vcvt.s32.f32 %v268
  %v285 = vcvt.s32.f32 %v269
  %v286 = vcvt.s32.f32 %v270
  %v287 = vcvt.s32.f32 %v271
  %v288 = vcvt.s32.f32 %v272
  %vm289 = vcmp.lt.s32.totalorder %v240, 0
  %v290 = vsub.s32 0, %v240
  %v291 = vsel %vm289, %v290, %v240
  %v292 = vshrl.u32 %v291, 3
  %v293 = vand.u32 %v291, 7
  %v294 = vsub.s32 0, %v293
  %v295 = vsel %vm289, %v294, %v293
  %vm296 = vcmp.ne.s32.totalorder %v295, 0
  %vm297 = vcmp.lt.s32.totalorder %v295, 0
  %vm298 = vmand %vm297, %vm296
  %v299 = vadd.s32 %v295, 8
  %v300 = vsel %vm298, %v299, %v295
  %vm301 = vcmp.eq.s32.totalorder %v300, %v31
  %v302 = vsel %vm301, 1, 0
  %v303 = vcvt.s32.f32 %v302
  %vm304 = vcmask 523264
  %305 = vst.msk [vmem:[#allocation2] sm:$0xff] %vm304, 0.0
  %306 = vst.msk [vmem:[#allocation2 + $0x8] sm:$0xff] %vm304, 0.0
  %307 = vst.msk [vmem:[#allocation2 + $0x10] sm:$0xff] %vm304, 0.0
  %308 = vst.msk [vmem:[#allocation2 + $0x18] sm:$0xff] %vm304, 0.0
  %vm309 = vcmask 519168
  %310 = vst.msk [vmem:[#allocation2 + $0x20] sm:$0xf] %vm309, 0.0
  %311 = vst [vmem:[#allocation3] sm:$0xff] 0.0
  %312 = vst [vmem:[#allocation3 + $0x8] sm:$0xff] 0.0
  %313 = vst [vmem:[#allocation3 + $0x10] sm:$0xff] 0.0
  %314 = vst [vmem:[#allocation3 + $0x18] sm:$0xff] 0.0
  %315 = vst [vmem:[#allocation3 + $0x20] sm:$0xf] 0.0
  %316 = vst [vmem:[#allocation4] sm:$0xff] 0.0
  %317 = vst [vmem:[#allocation4 + $0x8] sm:$0xff] 0.0
  %318 = vst [vmem:[#allocation4 + $0x10] sm:$0xff] 0.0
  %319 = vst [vmem:[#allocation4 + $0x18] sm:$0xff] 0.0
  %320 = vst [vmem:[#allocation4 + $0x20] sm:$0xf] 0.0
  %v321 = vld [vmem:[%s0] sm:$0xff]
  %v322 = vld [vmem:[%s0 + $0x8] sm:$0xff]
  %v323 = vld [vmem:[%s0 + $0x10] sm:$0xff]
  %v324 = vld [vmem:[%s0 + $0x18] sm:$0xff]
  %325 = vst.msk [vmem:[#allocation2 + $0x1] sm:$0xff] %vm304, %v321
  %326 = vst.msk [vmem:[#allocation2 + $0x9] sm:$0xff] %vm304, %v322
  %327 = vst.msk [vmem:[#allocation2 + $0x13] sm:$0xff] %vm304, %v323
  %328 = vst.msk [vmem:[#allocation2 + $0x1b] sm:$0xff] %vm304, %v324
  %v329 = vld [vmem:[#allocation2] sm:$0xff]
  %v330 = vld [vmem:[#allocation2 + $0x8] sm:$0xff]
  %v331 = vld [vmem:[#allocation2 + $0x12] sm:$0xff]
  %v332 = vld [vmem:[#allocation2 + $0x1a] sm:$0xff]
  %v333 = vpack.c.bf16 %v330, %v329
  %v334 = vpack.c.bf16 %v332, %v331
  %v335 = vld [vmem:[%s1] sm:$0xf]
  %v336 = vld [vmem:[%s1 + $0x4] sm:$0xf]
  %v337 = vld [vmem:[%s1 + $0x8] sm:$0xf]
  %v338 = vld [vmem:[%s1 + $0xc] sm:$0xf]
  %v339 = vld [vmem:[%s1 + $0x10] sm:$0xf]
  %v340 = vld [vmem:[%s1 + $0x14] sm:$0xf]
  %v341 = vld [vmem:[%s1 + $0x18] sm:$0xf]
  %v342 = vld [vmem:[%s1 + $0x1c] sm:$0xf]
  %v343 = vld [vmem:[#allocation2 + $0x1] sm:$0xff]
  %v344 = vld [vmem:[#allocation2 + $0x9] sm:$0xff]
  %v345 = vld [vmem:[#allocation2 + $0x13] sm:$0xff]
  %v346 = vld [vmem:[#allocation2 + $0x1b] sm:$0xff]
  %v347 = vpack.c.bf16 %v344, %v343
  %v348 = vpack.c.bf16 %v346, %v345
  %s349 = scalar_lea.vmem %s1, 32
  %v350 = vld [vmem:[%s349] sm:$0xf]
  %v351 = vld [vmem:[%s349 + $0x4] sm:$0xf]
  %v352 = vld [vmem:[%s349 + $0x8] sm:$0xf]
  %v353 = vld [vmem:[%s349 + $0xc] sm:$0xf]
  %v354 = vld [vmem:[%s349 + $0x10] sm:$0xf]
  %v355 = vld [vmem:[%s349 + $0x14] sm:$0xf]
  %v356 = vld [vmem:[%s349 + $0x18] sm:$0xf]
  %v357 = vld [vmem:[%s349 + $0x1c] sm:$0xf]
  %v366 = vunpack.c.l.b16 %v350
  %v367 = vunpack.c.l.b16 %v351
  %v368 = vunpack.c.l.b16 %v352
  %v369 = vunpack.c.l.b16 %v353
  %v370 = vunpack.c.l.b16 %v354
  %v371 = vunpack.c.l.b16 %v355
  %v372 = vunpack.c.l.b16 %v356
  %v373 = vunpack.c.l.b16 %v357
  %v374 = vpack.c.b16 %v367, %v366
  %v375 = vpack.c.b16 %v369, %v368
  %v376 = vpack.c.b16 %v371, %v370
  %v377 = vpack.c.b16 %v373, %v372
  %v383 = vsel %vm304, %v347, 0
  %v386 = vsel %vm304, %v348, 0
  %388 = vmatprep.subr.bf16.mxu0 0
  %389 = vmatpush1.bf16.msra.mxu0 %v374
  %390 = vmatprep.subr.bf16.mxu0 0
  %391 = vmatpush1.bf16.msra.mxu0 %v375
  %392 = vmatprep.subr.bf16.mxu0 0
  %393 = vmatpush1.bf16.msra.mxu0 %v376
  %394 = vmatprep.subr.bf16.mxu0 0
  %395 = vmatpush1.bf16.msra.mxu0 %v377
  %396 = vmatprep.subr.bf16.mxu0 0
  %397 = vmatpush1.bf16.msra.mxu0 0
  %398 = vmatprep.subr.bf16.mxu0 0
  %399 = vmatpush1.bf16.msra.mxu0 0
  %400 = vmatprep.subr.bf16.mxu0 0
  %401 = vmatpush1.bf16.msra.mxu0 0
  %402 = vmatprep.subr.bf16.mxu0 0
  %403 = vmatpush1.bf16.msra.mxu0 0
  %404 = vmatprep.subr.bf16.mxu0 0
  %405 = vmatpush1.bf16.msra.mxu0 0
  %406 = vmatprep.subr.bf16.mxu0 0
  %407 = vmatpush1.bf16.msra.mxu0 0
  %408 = vmatprep.subr.bf16.mxu0 0
  %409 = vmatpush1.bf16.msra.mxu0 0
  %410 = vmatprep.subr.bf16.mxu0 0
  %411 = vmatpush1.bf16.msra.mxu0 0
  %412 = vmatprep.subr.bf16.mxu0 0
  %413 = vmatpush1.bf16.msra.mxu0 0
  %414 = vmatprep.subr.bf16.mxu0 0
  %415 = vmatpush1.bf16.msra.mxu0 0
  %416 = vmatprep.subr.bf16.mxu0 0
  %417 = vmatpush1.bf16.msra.mxu0 0
  %418 = vmatprep.subr.bf16.mxu0 0
  %419 = vmatpush1.bf16.msra.mxu0 0
  %420 = vmatprep.mubr.bf16.mxu0 0
  %421 = vmatmul.mubr.bf16.gmra.mrb[0].mxu0 %v383
  %v422 = vpop.f32.mrb[0].mxu0
  %v423 = vadd.f32 0.0, %v422
  %v424 = vpop.f32.mrb[0].mxu0
  %v425 = vpop.f32.mrb[0].mxu0
  %v426 = vadd.f32 0.0, %v425
  %v427 = vpop.f32.mrb[0].mxu0
  %428 = vmatprep.mubr.bf16.mxu0 0
  %429 = vmatmul.mubr.bf16.gmra.mrb[0].mxu0 %v386
  %v430 = vpop.f32.mrb[0].mxu0
  %v431 = vadd.f32 0.0, %v430
  %v432 = vpop.f32.mrb[0].mxu0
  %v433 = vpop.f32.mrb[0].mxu0
  %v434 = vadd.f32 0.0, %v433
  %v435 = vpop.f32.mrb[0].mxu0
  %436 = vdwg.mxu0
  %v445 = vunpack.c.l.b16 %v335
  %v446 = vunpack.c.l.b16 %v336
  %v447 = vunpack.c.l.b16 %v337
  %v448 = vunpack.c.l.b16 %v338
  %v449 = vunpack.c.l.b16 %v339
  %v450 = vunpack.c.l.b16 %v340
  %v451 = vunpack.c.l.b16 %v341
  %v452 = vunpack.c.l.b16 %v342
  %v453 = vpack.c.b16 %v446, %v445
  %v454 = vpack.c.b16 %v448, %v447
  %v455 = vpack.c.b16 %v450, %v449
  %v456 = vpack.c.b16 %v452, %v451
  %v462 = vsel %vm304, %v333, 0
  %v465 = vsel %vm304, %v334, 0
  %467 = vmatprep.subr.bf16.mxu0 0
  %468 = vmatpush1.bf16.msra.mxu0 %v453
  %469 = vmatprep.subr.bf16.mxu0 0
  %470 = vmatpush1.bf16.msra.mxu0 %v454
  %471 = vmatprep.subr.bf16.mxu0 0
  %472 = vmatpush1.bf16.msra.mxu0 %v455
  %473 = vmatprep.subr.bf16.mxu0 0
  %474 = vmatpush1.bf16.msra.mxu0 %v456
  %475 = vmatprep.subr.bf16.mxu0 0
  %476 = vmatpush1.bf16.msra.mxu0 0
  %477 = vmatprep.subr.bf16.mxu0 0
  %478 = vmatpush1.bf16.msra.mxu0 0
  %479 = vmatprep.subr.bf16.mxu0 0
  %480 = vmatpush1.bf16.msra.mxu0 0
  %481 = vmatprep.subr.bf16.mxu0 0
  %482 = vmatpush1.bf16.msra.mxu0 0
  %483 = vmatprep.subr.bf16.mxu0 0
  %484 = vmatpush1.bf16.msra.mxu0 0
  %485 = vmatprep.subr.bf16.mxu0 0
  %486 = vmatpush1.bf16.msra.mxu0 0
  %487 = vmatprep.subr.bf16.mxu0 0
  %488 = vmatpush1.bf16.msra.mxu0 0
  %489 = vmatprep.subr.bf16.mxu0 0
  %490 = vmatpush1.bf16.msra.mxu0 0
  %491 = vmatprep.subr.bf16.mxu0 0
  %492 = vmatpush1.bf16.msra.mxu0 0
  %493 = vmatprep.subr.bf16.mxu0 0
  %494 = vmatpush1.bf16.msra.mxu0 0
  %495 = vmatprep.subr.bf16.mxu0 0
  %496 = vmatpush1.bf16.msra.mxu0 0
  %497 = vmatprep.subr.bf16.mxu0 0
  %498 = vmatpush1.bf16.msra.mxu0 0
  %499 = vmatprep.mubr.bf16.mxu0 0
  %500 = vmatmul.mubr.bf16.gmra.mrb[0].mxu0 %v462
  %v501 = vpop.f32.mrb[0].mxu0
  %v502 = vadd.f32 %v423, %v501
  %v503 = vpop.f32.mrb[0].mxu0
  %v504 = vpop.f32.mrb[0].mxu0
  %v505 = vadd.f32 %v426, %v504
  %v506 = vpop.f32.mrb[0].mxu0
  %507 = vmatprep.mubr.bf16.mxu0 0
  %508 = vmatmul.mubr.bf16.gmra.mrb[0].mxu0 %v465
  %v509 = vpop.f32.mrb[0].mxu0
  %v510 = vadd.f32 %v431, %v509
  %v511 = vpop.f32.mrb[0].mxu0
  %v512 = vpop.f32.mrb[0].mxu0
  %v513 = vadd.f32 %v434, %v512
  %v514 = vpop.f32.mrb[0].mxu0
  %515 = vdwg.mxu0
  %v516 = vld [vmem:[#allocation2 + $0x2] sm:$0xff]
  %v517 = vld [vmem:[#allocation2 + $0xa] sm:$0xff]
  %v518 = vld [vmem:[#allocation2 + $0x14] sm:$0xff]
  %v519 = vld [vmem:[#allocation2 + $0x1c] sm:$0xff]
  %v520 = vpack.c.bf16 %v517, %v516
  %v521 = vpack.c.bf16 %v519, %v518
  %s522 = scalar_lea.vmem %s1, 64
  %v523 = vld [vmem:[%s522] sm:$0xf]
  %v524 = vld [vmem:[%s522 + $0x4] sm:$0xf]
  %v525 = vld [vmem:[%s522 + $0x8] sm:$0xf]
  %v526 = vld [vmem:[%s522 + $0xc] sm:$0xf]
  %v527 = vld [vmem:[%s522 + $0x10] sm:$0xf]
  %v528 = vld [vmem:[%s522 + $0x14] sm:$0xf]
  %v529 = vld [vmem:[%s522 + $0x18] sm:$0xf]
  %v530 = vld [vmem:[%s522 + $0x1c] sm:$0xf]
  %v539 = vunpack.c.l.b16 %v523
  %v540 = vunpack.c.l.b16 %v524
  %v541 = vunpack.c.l.b16 %v525
  %v542 = vunpack.c.l.b16 %v526
  %v543 = vunpack.c.l.b16 %v527
  %v544 = vunpack.c.l.b16 %v528
  %v545 = vunpack.c.l.b16 %v529
  %v546 = vunpack.c.l.b16 %v530
  %v547 = vpack.c.b16 %v540, %v539
  %v548 = vpack.c.b16 %v542, %v541
  %v549 = vpack.c.b16 %v544, %v543
  %v550 = vpack.c.b16 %v546, %v545
  %v556 = vsel %vm304, %v520, 0
  %v559 = vsel %vm304, %v521, 0
  %561 = vmatprep.subr.bf16.mxu0 0
  %562 = vmatpush1.bf16.msra.mxu0 %v547
  %563 = vmatprep.subr.bf16.mxu0 0
  %564 = vmatpush1.bf16.msra.mxu0 %v548
  %565 = vmatprep.subr.bf16.mxu0 0
  %566 = vmatpush1.bf16.msra.mxu0 %v549
  %567 = vmatprep.subr.bf16.mxu0 0
  %568 = vmatpush1.bf16.msra.mxu0 %v550
  %569 = vmatprep.subr.bf16.mxu0 0
  %570 = vmatpush1.bf16.msra.mxu0 0
  %571 = vmatprep.subr.bf16.mxu0 0
  %572 = vmatpush1.bf16.msra.mxu0 0
  %573 = vmatprep.subr.bf16.mxu0 0
  %574 = vmatpush1.bf16.msra.mxu0 0
  %575 = vmatprep.subr.bf16.mxu0 0
  %576 = vmatpush1.bf16.msra.mxu0 0
  %577 = vmatprep.subr.bf16.mxu0 0
  %578 = vmatpush1.bf16.msra.mxu0 0
  %579 = vmatprep.subr.bf16.mxu0 0
  %580 = vmatpush1.bf16.msra.mxu0 0
  %581 = vmatprep.subr.bf16.mxu0 0
  %582 = vmatpush1.bf16.msra.mxu0 0
  %583 = vmatprep.subr.bf16.mxu0 0
  %584 = vmatpush1.bf16.msra.mxu0 0
  %585 = vmatprep.subr.bf16.mxu0 0
  %586 = vmatpush1.bf16.msra.mxu0 0
  %587 = vmatprep.subr.bf16.mxu0 0
  %588 = vmatpush1.bf16.msra.mxu0 0
  %589 = vmatprep.subr.bf16.mxu0 0
  %590 = vmatpush1.bf16.msra.mxu0 0
  %591 = vmatprep.subr.bf16.mxu0 0
  %592 = vmatpush1.bf16.msra.mxu0 0
  %593 = vmatprep.mubr.bf16.mxu0 0
  %594 = vmatmul.mubr.bf16.gmra.mrb[0].mxu0 %v556
  %v595 = vpop.f32.mrb[0].mxu0
  %v596 = vadd.f32 0.0, %v595
  %v597 = vpop.f32.mrb[0].mxu0
  %v598 = vpop.f32.mrb[0].mxu0
  %v599 = vadd.f32 0.0, %v598
  %v600 = vpop.f32.mrb[0].mxu0
  %601 = vmatprep.mubr.bf16.mxu0 0
  %602 = vmatmul.mubr.bf16.gmra.mrb[0].mxu0 %v559
  %v603 = vpop.f32.mrb[0].mxu0
  %v604 = vadd.f32 0.0, %v603
  %v605 = vpop.f32.mrb[0].mxu0
  %v606 = vpop.f32.mrb[0].mxu0
  %v607 = vadd.f32 0.0, %v606
  %v608 = vpop.f32.mrb[0].mxu0
  %609 = vdwg.mxu0
  %v610 = vadd.f32 %v502, %v596
  %v611 = vadd.f32 %v505, %v599
  %v612 = vadd.f32 %v510, %v604
  %v613 = vadd.f32 %v513, %v607
  %v614 = vadd.f32 %v610, %v611
  %v615 = vadd.f32 %v614, %v612
  %v616 = vadd.f32 %v615, %v613
  %v617 = vrot.slane %v616, 4
  %v618 = vadd.f32 %v616, %v617
  %v619 = vrot.slane %v618, 2
  %v620 = vadd.f32 %v618, %v619
  %v621 = vrot.slane %v620, 1
  %v622 = vadd.f32 %v620, %v621
  %623 = vmatprep.subr.mxu0 0.0
  %624 = vmatpush1.msra.mxu0 %v273
  %625 = vmatprep.subr.mxu0 0.0
  %626 = vmatpush1.msra.mxu0 %v274
  %627 = vmatprep.subr.mxu0 0.0
  %628 = vmatpush1.msra.mxu0 %v275
  %629 = vmatprep.subr.mxu0 0.0
  %630 = vmatpush1.msra.mxu0 %v276
  %631 = vmatprep.subr.mxu0 0.0
  %632 = vmatpush1.msra.mxu0 %v277
  %633 = vmatprep.subr.mxu0 0.0
  %634 = vmatpush1.msra.mxu0 %v278
  %635 = vmatprep.subr.mxu0 0.0
  %636 = vmatpush1.msra.mxu0 %v279
  %637 = vmatprep.subr.mxu0 0.0
  %638 = vmatpush1.msra.mxu0 %v280
  %639 = vmatprep.subr.mxu0 0.0
  %640 = vmatpush1.msra.mxu0 %v281
  %641 = vmatprep.subr.mxu0 0.0
  %642 = vmatpush1.msra.mxu0 %v282
  %643 = vmatprep.subr.mxu0 0.0
  %644 = vmatpush1.msra.mxu0 %v283
  %645 = vmatprep.subr.mxu0 0.0
  %646 = vmatpush1.msra.mxu0 %v284
  %647 = vmatprep.subr.mxu0 0.0
  %648 = vmatpush1.msra.mxu0 %v285
  %649 = vmatprep.subr.mxu0 0.0
  %650 = vmatpush1.msra.mxu0 %v286
  %651 = vmatprep.subr.mxu0 0.0
  %652 = vmatpush1.msra.mxu0 %v287
  %653 = vmatprep.subr.mxu0 0.0
  %654 = vmatpush1.msra.mxu0 %v288
  %655 = vmatprep.subr.mxu0 0.0
  %656 = vmatpush1.msra.mxu0 0.0
  %657 = vmatprep.subr.mxu0 0.0
  %658 = vmatpush1.msra.mxu0 0.0
  %659 = vmatprep.subr.mxu0 0.0
  %660 = vmatpush1.msra.mxu0 0.0
  %661 = vmatprep.subr.mxu0 0.0
  %662 = vmatpush1.msra.mxu0 0.0
  %663 = vmatprep.subr.mxu0 0.0
  %664 = vmatpush1.msra.mxu0 0.0
  %665 = vmatprep.subr.mxu0 0.0
  %666 = vmatpush1.msra.mxu0 0.0
  %667 = vmatprep.subr.mxu0 0.0
  %668 = vmatpush1.msra.mxu0 0.0
  %669 = vmatprep.subr.mxu0 0.0
  %670 = vmatpush1.msra.mxu0 0.0
  %671 = vmatprep.subr.mxu0 0.0
  %672 = vmatpush1.msra.mxu0 0.0
  %673 = vmatprep.subr.mxu0 0.0
  %674 = vmatpush1.msra.mxu0 0.0
  %675 = vmatprep.subr.mxu0 0.0
  %676 = vmatpush1.msra.mxu0 0.0
  %677 = vmatprep.subr.mxu0 0.0
  %678 = vmatpush1.msra.mxu0 0.0
  %679 = vmatprep.subr.mxu0 0.0
  %680 = vmatpush1.msra.mxu0 0.0
  %681 = vmatprep.subr.mxu0 0.0
  %682 = vmatpush1.msra.mxu0 0.0
  %683 = vmatprep.subr.mxu0 0.0
  %684 = vmatpush1.msra.mxu0 0.0
  %685 = vmatprep.subr.mxu0 0.0
  %686 = vmatpush1.msra.mxu0 0.0
  %687 = vmatprep.mubr.f32.mxu0 0.0
  %688 = vmatmul.mubr.f32.gmra.mrb[0].mxu0 %v622
  %v689 = vpop.f32.mrb[0].mxu0
  %v690 = vadd.f32 0.0, %v689
  %v691 = vpop.f32.mrb[0].mxu0
  %692 = vdwg.mxu0
  %v693 = vmul.f32 %v690, 0.001953125
  %vm694 = vcmask 64512
  %v696 = vsel %vm694, %v693, 0
  %698 = vmatprep.subr.mxu0 0.0
  %699 = vmatpush1.msra.mxu0 %v303
  %700 = vmatprep.subr.mxu0 0.0
  %701 = vmatpush1.msra.mxu0 0.0
  %702 = vmatprep.subr.mxu0 0.0
  %703 = vmatpush1.msra.mxu0 0.0
  %704 = vmatprep.subr.mxu0 0.0
  %705 = vmatpush1.msra.mxu0 0.0
  %706 = vmatprep.subr.mxu0 0.0
  %707 = vmatpush1.msra.mxu0 0.0
  %708 = vmatprep.subr.mxu0 0.0
  %709 = vmatpush1.msra.mxu0 0.0
  %710 = vmatprep.subr.mxu0 0.0
  %711 = vmatpush1.msra.mxu0 0.0
  %712 = vmatprep.subr.mxu0 0.0
  %713 = vmatpush1.msra.mxu0 0.0
  %714 = vmatprep.subr.mxu0 0.0
  %715 = vmatpush1.msra.mxu0 0.0
  %716 = vmatprep.subr.mxu0 0.0
  %717 = vmatpush1.msra.mxu0 0.0
  %718 = vmatprep.subr.mxu0 0.0
  %719 = vmatpush1.msra.mxu0 0.0
  %720 = vmatprep.subr.mxu0 0.0
  %721 = vmatpush1.msra.mxu0 0.0
  %722 = vmatprep.subr.mxu0 0.0
  %723 = vmatpush1.msra.mxu0 0.0
  %724 = vmatprep.subr.mxu0 0.0
  %725 = vmatpush1.msra.mxu0 0.0
  %726 = vmatprep.subr.mxu0 0.0
  %727 = vmatpush1.msra.mxu0 0.0
  %728 = vmatprep.subr.mxu0 0.0
  %729 = vmatpush1.msra.mxu0 0.0
  %730 = vmatprep.subr.mxu0 0.0
  %731 = vmatpush1.msra.mxu0 0.0
  %732 = vmatprep.subr.mxu0 0.0
  %733 = vmatpush1.msra.mxu0 0.0
  %734 = vmatprep.subr.mxu0 0.0
  %735 = vmatpush1.msra.mxu0 0.0
  %736 = vmatprep.subr.mxu0 0.0
  %737 = vmatpush1.msra.mxu0 0.0
  %738 = vmatprep.subr.mxu0 0.0
  %739 = vmatpush1.msra.mxu0 0.0
  %740 = vmatprep.subr.mxu0 0.0
  %741 = vmatpush1.msra.mxu0 0.0
  %742 = vmatprep.subr.mxu0 0.0
  %743 = vmatpush1.msra.mxu0 0.0
  %744 = vmatprep.subr.mxu0 0.0
  %745 = vmatpush1.msra.mxu0 0.0
  %746 = vmatprep.subr.mxu0 0.0
  %747 = vmatpush1.msra.mxu0 0.0
  %748 = vmatprep.subr.mxu0 0.0
  %749 = vmatpush1.msra.mxu0 0.0
  %750 = vmatprep.subr.mxu0 0.0
  %751 = vmatpush1.msra.mxu0 0.0
  %752 = vmatprep.subr.mxu0 0.0
  %753 = vmatpush1.msra.mxu0 0.0
  %754 = vmatprep.subr.mxu0 0.0
  %755 = vmatpush1.msra.mxu0 0.0
  %756 = vmatprep.subr.mxu0 0.0
  %757 = vmatpush1.msra.mxu0 0.0
  %758 = vmatprep.subr.mxu0 0.0
  %759 = vmatpush1.msra.mxu0 0.0
  %760 = vmatprep.subr.mxu0 0.0
  %761 = vmatpush1.msra.mxu0 0.0
  %762 = vmatprep.mubr.f32.mxu0 0.0
  %763 = vmatmul.mubr.f32.gmra.mrb[0].mxu0 %v696
  %v764 = vpop.f32.mrb[0].mxu0
  %v765 = vadd.f32 0.0, %v764
  %v766 = vpop.f32.mrb[0].mxu0
  %767 = vdwg.mxu0
  %v768 = vlaneseq
  %v769 = vshrl.u32 %v768, 7
  %v770 = vsub.s32 0, %v769
  %v771 = vrot.slane %v765, %v770
  %v772 = vsub.f32 %v610, %v771
  %v773 = vsub.f32 %v611, %v771
  %v774 = vsub.f32 %v612, %v771
  %v775 = vsub.f32 %v613, %v771
  %v776 = vmul.f32 %v772, %v772
  %v777 = vmul.f32 %v773, %v773
  %v778 = vmul.f32 %v774, %v774
  %v779 = vmul.f32 %v775, %v775
  %v780 = vadd.f32 %v776, %v777
  %v781 = vadd.f32 %v780, %v778
  %v782 = vadd.f32 %v781, %v779
  %v783 = vrot.slane %v782, 4
  %v784 = vadd.f32 %v782, %v783
  %v785 = vrot.slane %v784, 2
  %v786 = vadd.f32 %v784, %v785
  %v787 = vrot.slane %v786, 1
  %v788 = vadd.f32 %v786, %v787
  %789 = vmatprep.subr.mxu0 0.0
  %790 = vmatpush1.msra.mxu0 %v273
  %791 = vmatprep.subr.mxu0 0.0
  %792 = vmatpush1.msra.mxu0 %v274
  %793 = vmatprep.subr.mxu0 0.0
  %794 = vmatpush1.msra.mxu0 %v275
  %795 = vmatprep.subr.mxu0 0.0
  %796 = vmatpush1.msra.mxu0 %v276
  %797 = vmatprep.subr.mxu0 0.0
  %798 = vmatpush1.msra.mxu0 %v277
  %799 = vmatprep.subr.mxu0 0.0
  %800 = vmatpush1.msra.mxu0 %v278
  %801 = vmatprep.subr.mxu0 0.0
  %802 = vmatpush1.msra.mxu0 %v279
  %803 = vmatprep.subr.mxu0 0.0
  %804 = vmatpush1.msra.mxu0 %v280
  %805 = vmatprep.subr.mxu0 0.0
  %806 = vmatpush1.msra.mxu0 %v281
  %807 = vmatprep.subr.mxu0 0.0
  %808 = vmatpush1.msra.mxu0 %v282
  %809 = vmatprep.subr.mxu0 0.0
  %810 = vmatpush1.msra.mxu0 %v283
  %811 = vmatprep.subr.mxu0 0.0
  %812 = vmatpush1.msra.mxu0 %v284
  %813 = vmatprep.subr.mxu0 0.0
  %814 = vmatpush1.msra.mxu0 %v285
  %815 = vmatprep.subr.mxu0 0.0
  %816 = vmatpush1.msra.mxu0 %v286
  %817 = vmatprep.subr.mxu0 0.0
  %818 = vmatpush1.msra.mxu0 %v287
  %819 = vmatprep.subr.mxu0 0.0
  %820 = vmatpush1.msra.mxu0 %v288
  %821 = vmatprep.subr.mxu0 0.0
  %822 = vmatpush1.msra.mxu0 0.0
  %823 = vmatprep.subr.mxu0 0.0
  %824 = vmatpush1.msra.mxu0 0.0
  %825 = vmatprep.subr.mxu0 0.0
  %826 = vmatpush1.msra.mxu0 0.0
  %827 = vmatprep.subr.mxu0 0.0
  %828 = vmatpush1.msra.mxu0 0.0
  %829 = vmatprep.subr.mxu0 0.0
  %830 = vmatpush1.msra.mxu0 0.0
  %831 = vmatprep.subr.mxu0 0.0
  %832 = vmatpush1.msra.mxu0 0.0
  %833 = vmatprep.subr.mxu0 0.0
  %834 = vmatpush1.msra.mxu0 0.0
  %835 = vmatprep.subr.mxu0 0.0
  %836 = vmatpush1.msra.mxu0 0.0
  %837 = vmatprep.subr.mxu0 0.0
  %838 = vmatpush1.msra.mxu0 0.0
  %839 = vmatprep.subr.mxu0 0.0
  %840 = vmatpush1.msra.mxu0 0.0
  %841 = vmatprep.subr.mxu0 0.0
  %842 = vmatpush1.msra.mxu0 0.0
  %843 = vmatprep.subr.mxu0 0.0
  %844 = vmatpush1.msra.mxu0 0.0
  %845 = vmatprep.subr.mxu0 0.0
  %846 = vmatpush1.msra.mxu0 0.0
  %847 = vmatprep.subr.mxu0 0.0
  %848 = vmatpush1.msra.mxu0 0.0
  %849 = vmatprep.subr.mxu0 0.0
  %850 = vmatpush1.msra.mxu0 0.0
  %851 = vmatprep.subr.mxu0 0.0
  %852 = vmatpush1.msra.mxu0 0.0
  %853 = vmatprep.mubr.f32.mxu0 0.0
  %854 = vmatmul.mubr.f32.gmra.mrb[0].mxu0 %v788
  %v855 = vpop.f32.mrb[0].mxu0
  %v856 = vadd.f32 0.0, %v855
  %v857 = vpop.f32.mrb[0].mxu0
  %858 = vdwg.mxu0
  %v859 = vmul.f32 %v856, 0.001953125
  %v860 = vld [vmem:[%s6] sm:$0x1]
  %v861 = vadd.f32 %v859, 1e-05
  %v862 = vrsqrt.pop %v861
  %v863 = vmul.f32 %v860, %v862
  %v865 = vsel %vm694, %v863, 0
  %867 = vmatprep.subr.mxu0 0.0
  %868 = vmatpush1.msra.mxu0 %v303
  %869 = vmatprep.subr.mxu0 0.0
  %870 = vmatpush1.msra.mxu0 0.0
  %871 = vmatprep.subr.mxu0 0.0
  %872 = vmatpush1.msra.mxu0 0.0
  %873 = vmatprep.subr.mxu0 0.0
  %874 = vmatpush1.msra.mxu0 0.0
  %875 = vmatprep.subr.mxu0 0.0
  %876 = vmatpush1.msra.mxu0 0.0
  %877 = vmatprep.subr.mxu0 0.0
  %878 = vmatpush1.msra.mxu0 0.0
  %879 = vmatprep.subr.mxu0 0.0
  %880 = vmatpush1.msra.mxu0 0.0
  %881 = vmatprep.subr.mxu0 0.0
  %882 = vmatpush1.msra.mxu0 0.0
  %883 = vmatprep.subr.mxu0 0.0
  %884 = vmatpush1.msra.mxu0 0.0
  %885 = vmatprep.subr.mxu0 0.0
  %886 = vmatpush1.msra.mxu0 0.0
  %887 = vmatprep.subr.mxu0 0.0
  %888 = vmatpush1.msra.mxu0 0.0
  %889 = vmatprep.subr.mxu0 0.0
  %890 = vmatpush1.msra.mxu0 0.0
  %891 = vmatprep.subr.mxu0 0.0
  %892 = vmatpush1.msra.mxu0 0.0
  %893 = vmatprep.subr.mxu0 0.0
  %894 = vmatpush1.msra.mxu0 0.0
  %895 = vmatprep.subr.mxu0 0.0
  %896 = vmatpush1.msra.mxu0 0.0
  %897 = vmatprep.subr.mxu0 0.0
  %898 = vmatpush1.msra.mxu0 0.0
  %899 = vmatprep.subr.mxu0 0.0
  %900 = vmatpush1.msra.mxu0 0.0
  %901 = vmatprep.subr.mxu0 0.0
  %902 = vmatpush1.msra.mxu0 0.0
  %903 = vmatprep.subr.mxu0 0.0
  %904 = vmatpush1.msra.mxu0 0.0
  %905 = vmatprep.subr.mxu0 0.0
  %906 = vmatpush1.msra.mxu0 0.0
  %907 = vmatprep.subr.mxu0 0.0
  %908 = vmatpush1.msra.mxu0 0.0
  %909 = vmatprep.subr.mxu0 0.0
  %910 = vmatpush1.msra.mxu0 0.0
  %911 = vmatprep.subr.mxu0 0.0
  %912 = vmatpush1.msra.mxu0 0.0
  %913 = vmatprep.subr.mxu0 0.0
  %914 = vmatpush1.msra.mxu0 0.0
  %915 = vmatprep.subr.mxu0 0.0
  %916 = vmatpush1.msra.mxu0 0.0
  %917 = vmatprep.subr.mxu0 0.0
  %918 = vmatpush1.msra.mxu0 0.0
  %919 = vmatprep.subr.mxu0 0.0
  %920 = vmatpush1.msra.mxu0 0.0
  %921 = vmatprep.subr.mxu0 0.0
  %922 = vmatpush1.msra.mxu0 0.0
  %923 = vmatprep.subr.mxu0 0.0
  %924 = vmatpush1.msra.mxu0 0.0
  %925 = vmatprep.subr.mxu0 0.0
  %926 = vmatpush1.msra.mxu0 0.0
  %927 = vmatprep.subr.mxu0 0.0
  %928 = vmatpush1.msra.mxu0 0.0
  %929 = vmatprep.subr.mxu0 0.0
  %930 = vmatpush1.msra.mxu0 0.0
  %931 = vmatprep.mubr.f32.mxu0 0.0
  %932 = vmatmul.mubr.f32.gmra.mrb[0].mxu0 %v865
  %v933 = vpop.f32.mrb[0].mxu0
  %v934 = vadd.f32 0.0, %v933
  %v935 = vpop.f32.mrb[0].mxu0
  %936 = vdwg.mxu0
  %v937 = vlaneseq
  %v938 = vshrl.u32 %v937, 7
  %v939 = vsub.s32 0, %v938
  %v940 = vrot.slane %v934, %v939
  %v941 = vmul.f32 %v772, %v940
  %v942 = vmul.f32 %v773, %v940
  %v943 = vmul.f32 %v774, %v940
  %v944 = vmul.f32 %v775, %v940
  %v945 = vld [vmem:[%s7] sm:$0x1]
  %v947 = vsel %vm694, %v945, 0
  %949 = vmatprep.subr.mxu0 0.0
  %950 = vmatpush1.msra.mxu0 %v303
  %951 = vmatprep.subr.mxu0 0.0
  %952 = vmatpush1.msra.mxu0 0.0
  %953 = vmatprep.subr.mxu0 0.0
  %954 = vmatpush1.msra.mxu0 0.0
  %955 = vmatprep.subr.mxu0 0.0
  %956 = vmatpush1.msra.mxu0 0.0
  %957 = vmatprep.subr.mxu0 0.0
  %958 = vmatpush1.msra.mxu0 0.0
  %959 = vmatprep.subr.mxu0 0.0
  %960 = vmatpush1.msra.mxu0 0.0
  %961 = vmatprep.subr.mxu0 0.0
  %962 = vmatpush1.msra.mxu0 0.0
  %963 = vmatprep.subr.mxu0 0.0
  %964 = vmatpush1.msra.mxu0 0.0
  %965 = vmatprep.subr.mxu0 0.0
  %966 = vmatpush1.msra.mxu0 0.0
  %967 = vmatprep.subr.mxu0 0.0
  %968 = vmatpush1.msra.mxu0 0.0
  %969 = vmatprep.subr.mxu0 0.0
  %970 = vmatpush1.msra.mxu0 0.0
  %971 = vmatprep.subr.mxu0 0.0
  %972 = vmatpush1.msra.mxu0 0.0
  %973 = vmatprep.subr.mxu0 0.0
  %974 = vmatpush1.msra.mxu0 0.0
  %975 = vmatprep.subr.mxu0 0.0
  %976 = vmatpush1.msra.mxu0 0.0
  %977 = vmatprep.subr.mxu0 0.0
  %978 = vmatpush1.msra.mxu0 0.0
  %979 = vmatprep.subr.mxu0 0.0
  %980 = vmatpush1.msra.mxu0 0.0
  %981 = vmatprep.subr.mxu0 0.0
  %982 = vmatpush1.msra.mxu0 0.0
  %983 = vmatprep.subr.mxu0 0.0
  %984 = vmatpush1.msra.mxu0 0.0
  %985 = vmatprep.subr.mxu0 0.0
  %986 = vmatpush1.msra.mxu0 0.0
  %987 = vmatprep.subr.mxu0 0.0
  %988 = vmatpush1.msra.mxu0 0.0
  %989 = vmatprep.subr.mxu0 0.0
  %990 = vmatpush1.msra.mxu0 0.0
  %991 = vmatprep.subr.mxu0 0.0
  %992 = vmatpush1.msra.mxu0 0.0
  %993 = vmatprep.subr.mxu0 0.0
  %994 = vmatpush1.msra.mxu0 0.0
  %995 = vmatprep.subr.mxu0 0.0
  %996 = vmatpush1.msra.mxu0 0.0
  %997 = vmatprep.subr.mxu0 0.0
  %998 = vmatpush1.msra.mxu0 0.0
  %999 = vmatprep.subr.mxu0 0.0
  %1000 = vmatpush1.msra.mxu0 0.0
  %1001 = vmatprep.subr.mxu0 0.0
  %1002 = vmatpush1.msra.mxu0 0.0
  %1003 = vmatprep.subr.mxu0 0.0
  %1004 = vmatpush1.msra.mxu0 0.0
  %1005 = vmatprep.subr.mxu0 0.0
  %1006 = vmatpush1.msra.mxu0 0.0
  %1007 = vmatprep.subr.mxu0 0.0
  %1008 = vmatpush1.msra.mxu0 0.0
  %1009 = vmatprep.subr.mxu0 0.0
  %1010 = vmatpush1.msra.mxu0 0.0
  %1011 = vmatprep.subr.mxu0 0.0
  %1012 = vmatpush1.msra.mxu0 0.0
  %1013 = vmatprep.mubr.f32.mxu0 0.0
  %1014 = vmatmul.mubr.f32.gmra.mrb[0].mxu0 %v947
  %v1015 = vpop.f32.mrb[0].mxu0
  %v1016 = vadd.f32 0.0, %v1015
  %v1017 = vpop.f32.mrb[0].mxu0
  %1018 = vdwg.mxu0
  %v1019 = vlaneseq
  %v1020 = vshrl.u32 %v1019, 7
  %v1021 = vsub.s32 0, %v1020
  %v1022 = vrot.slane %v1016, %v1021
  %v1023 = vadd.f32 %v941, %v1022
  %v1024 = vadd.f32 %v942, %v1022
  %v1025 = vadd.f32 %v943, %v1022
  %v1026 = vadd.f32 %v944, %v1022
  %vm1027 = vcmp.gt.f32.partialorder %v1023, 0.0
  %vm1028 = vcmp.gt.f32.partialorder %v1024, 0.0
  %vm1029 = vcmp.gt.f32.partialorder %v1025, 0.0
  %vm1030 = vcmp.gt.f32.partialorder %v1026, 0.0
  %v1031 = vmul.f32 %v1023, 0.2
  %v1032 = vmul.f32 %v1024, 0.2
  %v1033 = vmul.f32 %v1025, 0.2
  %v1034 = vmul.f32 %v1026, 0.2
  %v1035 = vsel %vm1027, %v1023, %v1031
  %v1036 = vsel %vm1028, %v1024, %v1032
  %v1037 = vsel %vm1029, %v1025, %v1033
  %v1038 = vsel %vm1030, %v1026, %v1034
  %1039 = vst [vmem:[#allocation3 + $0x1] sm:$0xff] %v1035
  %1040 = vst [vmem:[#allocation3 + $0x9] sm:$0xff] %v1036
  %1041 = vst [vmem:[#allocation3 + $0x13] sm:$0xff] %v1037
  %1042 = vst [vmem:[#allocation3 + $0x1b] sm:$0xff] %v1038
  %v1043 = vld [vmem:[#allocation3] sm:$0xff]
  %v1044 = vld [vmem:[#allocation3 + $0x8] sm:$0xff]
  %v1045 = vld [vmem:[#allocation3 + $0x12] sm:$0xff]
  %v1046 = vld [vmem:[#allocation3 + $0x1a] sm:$0xff]
  %v1047 = vpack.c.bf16 %v1044, %v1043
  %v1048 = vpack.c.bf16 %v1046, %v1045
  %v1049 = vld [vmem:[%s2] sm:$0xf]
  %v1050 = vld [vmem:[%s2 + $0x4] sm:$0xf]
  %v1051 = vld [vmem:[%s2 + $0x8] sm:$0xf]
  %v1052 = vld [vmem:[%s2 + $0xc] sm:$0xf]
  %v1053 = vld [vmem:[%s2 + $0x10] sm:$0xf]
  %v1054 = vld [vmem:[%s2 + $0x14] sm:$0xf]
  %v1055 = vld [vmem:[%s2 + $0x18] sm:$0xf]
  %v1056 = vld [vmem:[%s2 + $0x1c] sm:$0xf]
  %v1057 = vld [vmem:[%s2 + $0x20] sm:$0xf]
  %v1058 = vld [vmem:[%s2 + $0x24] sm:$0xf]
  %v1059 = vld [vmem:[%s2 + $0x28] sm:$0xf]
  %v1060 = vld [vmem:[%s2 + $0x2c] sm:$0xf]
  %v1061 = vld [vmem:[%s2 + $0x30] sm:$0xf]
  %v1062 = vld [vmem:[%s2 + $0x34] sm:$0xf]
  %v1063 = vld [vmem:[%s2 + $0x38] sm:$0xf]
  %v1064 = vld [vmem:[%s2 + $0x3c] sm:$0xf]
  %v1065 = vld [vmem:[#allocation3 + $0x1] sm:$0xff]
  %v1066 = vld [vmem:[#allocation3 + $0x9] sm:$0xff]
  %v1067 = vld [vmem:[#allocation3 + $0x13] sm:$0xff]
  %v1068 = vld [vmem:[#allocation3 + $0x1b] sm:$0xff]
  %v1069 = vpack.c.bf16 %v1066, %v1065
  %v1070 = vpack.c.bf16 %v1068, %v1067
  %s1071 = scalar_lea.vmem %s2, 64
  %v1072 = vld [vmem:[%s1071] sm:$0xf]
  %v1073 = vld [vmem:[%s1071 + $0x4] sm:$0xf]
  %v1074 = vld [vmem:[%s1071 + $0x8] sm:$0xf]
  %v1075 = vld [vmem:[%s1071 + $0xc] sm:$0xf]
  %v1076 = vld [vmem:[%s1071 + $0x10] sm:$0xf]
  %v1077 = vld [vmem:[%s1071 + $0x14] sm:$0xf]
  %v1078 = vld [vmem:[%s1071 + $0x18] sm:$0xf]
  %v1079 = vld [vmem:[%s1071 + $0x1c] sm:$0xf]
  %v1080 = vld [vmem:[%s1071 + $0x20] sm:$0xf]
  %v1081 = vld [vmem:[%s1071 + $0x24] sm:$0xf]
  %v1082 = vld [vmem:[%s1071 + $0x28] sm:$0xf]
  %v1083 = vld [vmem:[%s1071 + $0x2c] sm:$0xf]
  %v1084 = vld [vmem:[%s1071 + $0x30] sm:$0xf]
  %v1085 = vld [vmem:[%s1071 + $0x34] sm:$0xf]
  %v1086 = vld [vmem:[%s1071 + $0x38] sm:$0xf]
  %v1087 = vld [vmem:[%s1071 + $0x3c] sm:$0xf]
  %v1104 = vunpack.c.l.b16 %v1072
  %v1105 = vunpack.c.l.b16 %v1073
  %v1106 = vunpack.c.l.b16 %v1074
  %v1107 = vunpack.c.l.b16 %v1075
  %v1108 = vunpack.c.l.b16 %v1076
  %v1109 = vunpack.c.l.b16 %v1077
  %v1110 = vunpack.c.l.b16 %v1078
  %v1111 = vunpack.c.l.b16 %v1079
  %v1112 = vunpack.c.l.b16 %v1080
  %v1113 = vunpack.c.l.b16 %v1081
  %v1114 = vunpack.c.l.b16 %v1082
  %v1115 = vunpack.c.l.b16 %v1083
  %v1116 = vunpack.c.l.b16 %v1084
  %v1117 = vunpack.c.l.b16 %v1085
  %v1118 = vunpack.c.l.b16 %v1086
  %v1119 = vunpack.c.l.b16 %v1087
  %v1120 = vpack.c.b16 %v1105, %v1104
  %v1121 = vpack.c.b16 %v1107, %v1106
  %v1122 = vpack.c.b16 %v1109, %v1108
  %v1123 = vpack.c.b16 %v1111, %v1110
  %v1124 = vpack.c.b16 %v1113, %v1112
  %v1125 = vpack.c.b16 %v1115, %v1114
  %v1126 = vpack.c.b16 %v1117, %v1116
  %v1127 = vpack.c.b16 %v1119, %v1118
  %1136 = vmatprep.subr.bf16.mxu0 0
  %1137 = vmatpush1.bf16.msra.mxu0 %v1120
  %1138 = vmatprep.subr.bf16.mxu0 0
  %1139 = vmatpush1.bf16.msra.mxu0 %v1121
  %1140 = vmatprep.subr.bf16.mxu0 0
  %1141 = vmatpush1.bf16.msra.mxu0 %v1122
  %1142 = vmatprep.subr.bf16.mxu0 0
  %1143 = vmatpush1.bf16.msra.mxu0 %v1123
  %1144 = vmatprep.subr.bf16.mxu0 0
  %1145 = vmatpush1.bf16.msra.mxu0 %v1124
  %1146 = vmatprep.subr.bf16.mxu0 0
  %1147 = vmatpush1.bf16.msra.mxu0 %v1125
  %1148 = vmatprep.subr.bf16.mxu0 0
  %1149 = vmatpush1.bf16.msra.mxu0 %v1126
  %1150 = vmatprep.subr.bf16.mxu0 0
  %1151 = vmatpush1.bf16.msra.mxu0 %v1127
  %1152 = vmatprep.subr.bf16.mxu0 0
  %1153 = vmatpush1.bf16.msra.mxu0 0
  %1154 = vmatprep.subr.bf16.mxu0 0
  %1155 = vmatpush1.bf16.msra.mxu0 0
  %1156 = vmatprep.subr.bf16.mxu0 0
  %1157 = vmatpush1.bf16.msra.mxu0 0
  %1158 = vmatprep.subr.bf16.mxu0 0
  %1159 = vmatpush1.bf16.msra.mxu0 0
  %1160 = vmatprep.subr.bf16.mxu0 0
  %1161 = vmatpush1.bf16.msra.mxu0 0
  %1162 = vmatprep.subr.bf16.mxu0 0
  %1163 = vmatpush1.bf16.msra.mxu0 0
  %1164 = vmatprep.subr.bf16.mxu0 0
  %1165 = vmatpush1.bf16.msra.mxu0 0
  %1166 = vmatprep.subr.bf16.mxu0 0
  %1167 = vmatpush1.bf16.msra.mxu0 0
  %1168 = vmatprep.mubr.bf16.mxu0 0
  %1169 = vmatmul.mubr.bf16.gmra.mrb[0].mxu0 %v1069
  %v1170 = vpop.f32.mrb[0].mxu0
  %v1171 = vadd.f32 0.0, %v1170
  %v1172 = vpop.f32.mrb[0].mxu0
  %v1173 = vpop.f32.mrb[0].mxu0
  %v1174 = vadd.f32 0.0, %v1173
  %v1175 = vpop.f32.mrb[0].mxu0
  %1176 = vmatprep.mubr.bf16.mxu0 0
  %1177 = vmatmul.mubr.bf16.gmra.mrb[0].mxu0 %v1070
  %v1178 = vpop.f32.mrb[0].mxu0
  %v1179 = vadd.f32 0.0, %v1178
  %v1180 = vpop.f32.mrb[0].mxu0
  %v1181 = vpop.f32.mrb[0].mxu0
  %v1182 = vadd.f32 0.0, %v1181
  %v1183 = vpop.f32.mrb[0].mxu0
  %1184 = vdwg.mxu0
  %v1201 = vunpack.c.l.b16 %v1049
  %v1202 = vunpack.c.l.b16 %v1050
  %v1203 = vunpack.c.l.b16 %v1051
  %v1204 = vunpack.c.l.b16 %v1052
  %v1205 = vunpack.c.l.b16 %v1053
  %v1206 = vunpack.c.l.b16 %v1054
  %v1207 = vunpack.c.l.b16 %v1055
  %v1208 = vunpack.c.l.b16 %v1056
  %v1209 = vunpack.c.l.b16 %v1057
  %v1210 = vunpack.c.l.b16 %v1058
  %v1211 = vunpack.c.l.b16 %v1059
  %v1212 = vunpack.c.l.b16 %v1060
  %v1213 = vunpack.c.l.b16 %v1061
  %v1214 = vunpack.c.l.b16 %v1062
  %v1215 = vunpack.c.l.b16 %v1063
  %v1216 = vunpack.c.l.b16 %v1064
  %v1217 = vpack.c.b16 %v1202, %v1201
  %v1218 = vpack.c.b16 %v1204, %v1203
  %v1219 = vpack.c.b16 %v1206, %v1205
  %v1220 = vpack.c.b16 %v1208, %v1207
  %v1221 = vpack.c.b16 %v1210, %v1209
  %v1222 = vpack.c.b16 %v1212, %v1211
  %v1223 = vpack.c.b16 %v1214, %v1213
  %v1224 = vpack.c.b16 %v1216, %v1215
  %1233 = vmatprep.subr.bf16.mxu0 0
  %1234 = vmatpush1.bf16.msra.mxu0 %v1217
  %1235 = vmatprep.subr.bf16.mxu0 0
  %1236 = vmatpush1.bf16.msra.mxu0 %v1218
  %1237 = vmatprep.subr.bf16.mxu0 0
  %1238 = vmatpush1.bf16.msra.mxu0 %v1219
  %1239 = vmatprep.subr.bf16.mxu0 0
  %1240 = vmatpush1.bf16.msra.mxu0 %v1220
  %1241 = vmatprep.subr.bf16.mxu0 0
  %1242 = vmatpush1.bf16.msra.mxu0 %v1221
  %1243 = vmatprep.subr.bf16.mxu0 0
  %1244 = vmatpush1.bf16.msra.mxu0 %v1222
  %1245 = vmatprep.subr.bf16.mxu0 0
  %1246 = vmatpush1.bf16.msra.mxu0 %v1223
  %1247 = vmatprep.subr.bf16.mxu0 0
  %1248 = vmatpush1.bf16.msra.mxu0 %v1224
  %1249 = vmatprep.subr.bf16.mxu0 0
  %1250 = vmatpush1.bf16.msra.mxu0 0
  %1251 = vmatprep.subr.bf16.mxu0 0
  %1252 = vmatpush1.bf16.msra.mxu0 0
  %1253 = vmatprep.subr.bf16.mxu0 0
  %1254 = vmatpush1.bf16.msra.mxu0 0
  %1255 = vmatprep.subr.bf16.mxu0 0
  %1256 = vmatpush1.bf16.msra.mxu0 0
  %1257 = vmatprep.subr.bf16.mxu0 0
  %1258 = vmatpush1.bf16.msra.mxu0 0
  %1259 = vmatprep.subr.bf16.mxu0 0
  %1260 = vmatpush1.bf16.msra.mxu0 0
  %1261 = vmatprep.subr.bf16.mxu0 0
  %1262 = vmatpush1.bf16.msra.mxu0 0
  %1263 = vmatprep.subr.bf16.mxu0 0
  %1264 = vmatpush1.bf16.msra.mxu0 0
  %1265 = vmatprep.mubr.bf16.mxu0 0
  %1266 = vmatmul.mubr.bf16.gmra.mrb[0].mxu0 %v1047
  %v1267 = vpop.f32.mrb[0].mxu0
  %v1268 = vadd.f32 %v1171, %v1267
  %v1269 = vpop.f32.mrb[0].mxu0
  %v1270 = vpop.f32.mrb[0].mxu0
  %v1271 = vadd.f32 %v1174, %v1270
  %v1272 = vpop.f32.mrb[0].mxu0
  %1273 = vmatprep.mubr.bf16.mxu0 0
  %1274 = vmatmul.mubr.bf16.gmra.mrb[0].mxu0 %v1048
  %v1275 = vpop.f32.mrb[0].mxu0
  %v1276 = vadd.f32 %v1179, %v1275
  %v1277 = vpop.f32.mrb[0].mxu0
  %v1278 = vpop.f32.mrb[0].mxu0
  %v1279 = vadd.f32 %v1182, %v1278
  %v1280 = vpop.f32.mrb[0].mxu0
  %1281 = vdwg.mxu0
  %v1282 = vld [vmem:[#allocation3 + $0x2] sm:$0xff]
  %v1283 = vld [vmem:[#allocation3 + $0xa] sm:$0xff]
  %v1284 = vld [vmem:[#allocation3 + $0x14] sm:$0xff]
  %v1285 = vld [vmem:[#allocation3 + $0x1c] sm:$0xff]
  %v1286 = vpack.c.bf16 %v1283, %v1282
  %v1287 = vpack.c.bf16 %v1285, %v1284
  %s1288 = scalar_lea.vmem %s2, 128
  %v1289 = vld [vmem:[%s1288] sm:$0xf]
  %v1290 = vld [vmem:[%s1288 + $0x4] sm:$0xf]
  %v1291 = vld [vmem:[%s1288 + $0x8] sm:$0xf]
  %v1292 = vld [vmem:[%s1288 + $0xc] sm:$0xf]
  %v1293 = vld [vmem:[%s1288 + $0x10] sm:$0xf]
  %v1294 = vld [vmem:[%s1288 + $0x14] sm:$0xf]
  %v1295 = vld [vmem:[%s1288 + $0x18] sm:$0xf]
  %v1296 = vld [vmem:[%s1288 + $0x1c] sm:$0xf]
  %v1297 = vld [vmem:[%s1288 + $0x20] sm:$0xf]
  %v1298 = vld [vmem:[%s1288 + $0x24] sm:$0xf]
  %v1299 = vld [vmem:[%s1288 + $0x28] sm:$0xf]
  %v1300 = vld [vmem:[%s1288 + $0x2c] sm:$0xf]
  %v1301 = vld [vmem:[%s1288 + $0x30] sm:$0xf]
  %v1302 = vld [vmem:[%s1288 + $0x34] sm:$0xf]
  %v1303 = vld [vmem:[%s1288 + $0x38] sm:$0xf]
  %v1304 = vld [vmem:[%s1288 + $0x3c] sm:$0xf]
  %v1321 = vunpack.c.l.b16 %v1289
  %v1322 = vunpack.c.l.b16 %v1290
  %v1323 = vunpack.c.l.b16 %v1291
  %v1324 = vunpack.c.l.b16 %v1292
  %v1325 = vunpack.c.l.b16 %v1293
  %v1326 = vunpack.c.l.b16 %v1294
  %v1327 = vunpack.c.l.b16 %v1295
  %v1328 = vunpack.c.l.b16 %v1296
  %v1329 = vunpack.c.l.b16 %v1297
  %v1330 = vunpack.c.l.b16 %v1298
  %v1331 = vunpack.c.l.b16 %v1299
  %v1332 = vunpack.c.l.b16 %v1300
  %v1333 = vunpack.c.l.b16 %v1301
  %v1334 = vunpack.c.l.b16 %v1302
  %v1335 = vunpack.c.l.b16 %v1303
  %v1336 = vunpack.c.l.b16 %v1304
  %v1337 = vpack.c.b16 %v1322, %v1321
  %v1338 = vpack.c.b16 %v1324, %v1323
  %v1339 = vpack.c.b16 %v1326, %v1325
  %v1340 = vpack.c.b16 %v1328, %v1327
  %v1341 = vpack.c.b16 %v1330, %v1329
  %v1342 = vpack.c.b16 %v1332, %v1331
  %v1343 = vpack.c.b16 %v1334, %v1333
  %v1344 = vpack.c.b16 %v1336, %v1335
  %1353 = vmatprep.subr.bf16.mxu0 0
  %1354 = vmatpush1.bf16.msra.mxu0 %v1337
  %1355 = vmatprep.subr.bf16.mxu0 0
  %1356 = vmatpush1.bf16.msra.mxu0 %v1338
  %1357 = vmatprep.subr.bf16.mxu0 0
  %1358 = vmatpush1.bf16.msra.mxu0 %v1339
  %1359 = vmatprep.subr.bf16.mxu0 0
  %1360 = vmatpush1.bf16.msra.mxu0 %v1340
  %1361 = vmatprep.subr.bf16.mxu0 0
  %1362 = vmatpush1.bf16.msra.mxu0 %v1341
  %1363 = vmatprep.subr.bf16.mxu0 0
  %1364 = vmatpush1.bf16.msra.mxu0 %v1342
  %1365 = vmatprep.subr.bf16.mxu0 0
  %1366 = vmatpush1.bf16.msra.mxu0 %v1343
  %1367 = vmatprep.subr.bf16.mxu0 0
  %1368 = vmatpush1.bf16.msra.mxu0 %v1344
  %1369 = vmatprep.subr.bf16.mxu0 0
  %1370 = vmatpush1.bf16.msra.mxu0 0
  %1371 = vmatprep.subr.bf16.mxu0 0
  %1372 = vmatpush1.bf16.msra.mxu0 0
  %1373 = vmatprep.subr.bf16.mxu0 0
  %1374 = vmatpush1.bf16.msra.mxu0 0
  %1375 = vmatprep.subr.bf16.mxu0 0
  %1376 = vmatpush1.bf16.msra.mxu0 0
  %1377 = vmatprep.subr.bf16.mxu0 0
  %1378 = vmatpush1.bf16.msra.mxu0 0
  %1379 = vmatprep.subr.bf16.mxu0 0
  %1380 = vmatpush1.bf16.msra.mxu0 0
  %1381 = vmatprep.subr.bf16.mxu0 0
  %1382 = vmatpush1.bf16.msra.mxu0 0
  %1383 = vmatprep.subr.bf16.mxu0 0
  %1384 = vmatpush1.bf16.msra.mxu0 0
  %1385 = vmatprep.mubr.bf16.mxu0 0
  %1386 = vmatmul.mubr.bf16.gmra.mrb[0].mxu0 %v1286
  %v1387 = vpop.f32.mrb[0].mxu0
  %v1388 = vadd.f32 0.0, %v1387
  %v1389 = vpop.f32.mrb[0].mxu0
  %v1390 = vpop.f32.mrb[0].mxu0
  %v1391 = vadd.f32 0.0, %v1390
  %v1392 = vpop.f32.mrb[0].mxu0
  %1393 = vmatprep.mubr.bf16.mxu0 0
  %1394 = vmatmul.mubr.bf16.gmra.mrb[0].mxu0 %v1287
  %v1395 = vpop.f32.mrb[0].mxu0
  %v1396 = vadd.f32 0.0, %v1395
  %v1397 = vpop.f32.mrb[0].mxu0
  %v1398 = vpop.f32.mrb[0].mxu0
  %v1399 = vadd.f32 0.0, %v1398
  %v1400 = vpop.f32.mrb[0].mxu0
  %1401 = vdwg.mxu0
  %v1402 = vadd.f32 %v1268, %v1388
  %v1403 = vadd.f32 %v1271, %v1391
  %v1404 = vadd.f32 %v1276, %v1396
  %v1405 = vadd.f32 %v1279, %v1399
  %v1406 = vadd.f32 %v1402, %v1403
  %v1407 = vadd.f32 %v1406, %v1404
  %v1408 = vadd.f32 %v1407, %v1405
  %v1409 = vrot.slane %v1408, 4
  %v1410 = vadd.f32 %v1408, %v1409
  %v1411 = vrot.slane %v1410, 2
  %v1412 = vadd.f32 %v1410, %v1411
  %v1413 = vrot.slane %v1412, 1
  %v1414 = vadd.f32 %v1412, %v1413
  %1415 = vmatprep.subr.mxu0 0.0
  %1416 = vmatpush1.msra.mxu0 %v273
  %1417 = vmatprep.subr.mxu0 0.0
  %1418 = vmatpush1.msra.mxu0 %v274
  %1419 = vmatprep.subr.mxu0 0.0
  %1420 = vmatpush1.msra.mxu0 %v275
  %1421 = vmatprep.subr.mxu0 0.0
  %1422 = vmatpush1.msra.mxu0 %v276
  %1423 = vmatprep.subr.mxu0 0.0
  %1424 = vmatpush1.msra.mxu0 %v277
  %1425 = vmatprep.subr.mxu0 0.0
  %1426 = vmatpush1.msra.mxu0 %v278
  %1427 = vmatprep.subr.mxu0 0.0
  %1428 = vmatpush1.msra.mxu0 %v279
  %1429 = vmatprep.subr.mxu0 0.0
  %1430 = vmatpush1.msra.mxu0 %v280
  %1431 = vmatprep.subr.mxu0 0.0
  %1432 = vmatpush1.msra.mxu0 %v281
  %1433 = vmatprep.subr.mxu0 0.0
  %1434 = vmatpush1.msra.mxu0 %v282
  %1435 = vmatprep.subr.mxu0 0.0
  %1436 = vmatpush1.msra.mxu0 %v283
  %1437 = vmatprep.subr.mxu0 0.0
  %1438 = vmatpush1.msra.mxu0 %v284
  %1439 = vmatprep.subr.mxu0 0.0
  %1440 = vmatpush1.msra.mxu0 %v285
  %1441 = vmatprep.subr.mxu0 0.0
  %1442 = vmatpush1.msra.mxu0 %v286
  %1443 = vmatprep.subr.mxu0 0.0
  %1444 = vmatpush1.msra.mxu0 %v287
  %1445 = vmatprep.subr.mxu0 0.0
  %1446 = vmatpush1.msra.mxu0 %v288
  %1447 = vmatprep.subr.mxu0 0.0
  %1448 = vmatpush1.msra.mxu0 0.0
  %1449 = vmatprep.subr.mxu0 0.0
  %1450 = vmatpush1.msra.mxu0 0.0
  %1451 = vmatprep.subr.mxu0 0.0
  %1452 = vmatpush1.msra.mxu0 0.0
  %1453 = vmatprep.subr.mxu0 0.0
  %1454 = vmatpush1.msra.mxu0 0.0
  %1455 = vmatprep.subr.mxu0 0.0
  %1456 = vmatpush1.msra.mxu0 0.0
  %1457 = vmatprep.subr.mxu0 0.0
  %1458 = vmatpush1.msra.mxu0 0.0
  %1459 = vmatprep.subr.mxu0 0.0
  %1460 = vmatpush1.msra.mxu0 0.0
  %1461 = vmatprep.subr.mxu0 0.0
  %1462 = vmatpush1.msra.mxu0 0.0
  %1463 = vmatprep.subr.mxu0 0.0
  %1464 = vmatpush1.msra.mxu0 0.0
  %1465 = vmatprep.subr.mxu0 0.0
  %1466 = vmatpush1.msra.mxu0 0.0
  %1467 = vmatprep.subr.mxu0 0.0
  %1468 = vmatpush1.msra.mxu0 0.0
  %1469 = vmatprep.subr.mxu0 0.0
  %1470 = vmatpush1.msra.mxu0 0.0
  %1471 = vmatprep.subr.mxu0 0.0
  %1472 = vmatpush1.msra.mxu0 0.0
  %1473 = vmatprep.subr.mxu0 0.0
  %1474 = vmatpush1.msra.mxu0 0.0
  %1475 = vmatprep.subr.mxu0 0.0
  %1476 = vmatpush1.msra.mxu0 0.0
  %1477 = vmatprep.subr.mxu0 0.0
  %1478 = vmatpush1.msra.mxu0 0.0
  %1479 = vmatprep.mubr.f32.mxu0 0.0
  %1480 = vmatmul.mubr.f32.gmra.mrb[0].mxu0 %v1414
  %v1481 = vpop.f32.mrb[0].mxu0
  %v1482 = vadd.f32 0.0, %v1481
  %v1483 = vpop.f32.mrb[0].mxu0
  %1484 = vdwg.mxu0
  %v1485 = vmul.f32 %v1482, 0.001953125
  %v1487 = vsel %vm694, %v1485, 0
  %1489 = vmatprep.subr.mxu0 0.0
  %1490 = vmatpush1.msra.mxu0 %v303
  %1491 = vmatprep.subr.mxu0 0.0
  %1492 = vmatpush1.msra.mxu0 0.0
  %1493 = vmatprep.subr.mxu0 0.0
  %1494 = vmatpush1.msra.mxu0 0.0
  %1495 = vmatprep.subr.mxu0 0.0
  %1496 = vmatpush1.msra.mxu0 0.0
  %1497 = vmatprep.subr.mxu0 0.0
  %1498 = vmatpush1.msra.mxu0 0.0
  %1499 = vmatprep.subr.mxu0 0.0
  %1500 = vmatpush1.msra.mxu0 0.0
  %1501 = vmatprep.subr.mxu0 0.0
  %1502 = vmatpush1.msra.mxu0 0.0
  %1503 = vmatprep.subr.mxu0 0.0
  %1504 = vmatpush1.msra.mxu0 0.0
  %1505 = vmatprep.subr.mxu0 0.0
  %1506 = vmatpush1.msra.mxu0 0.0
  %1507 = vmatprep.subr.mxu0 0.0
  %1508 = vmatpush1.msra.mxu0 0.0
  %1509 = vmatprep.subr.mxu0 0.0
  %1510 = vmatpush1.msra.mxu0 0.0
  %1511 = vmatprep.subr.mxu0 0.0
  %1512 = vmatpush1.msra.mxu0 0.0
  %1513 = vmatprep.subr.mxu0 0.0
  %1514 = vmatpush1.msra.mxu0 0.0
  %1515 = vmatprep.subr.mxu0 0.0
  %1516 = vmatpush1.msra.mxu0 0.0
  %1517 = vmatprep.subr.mxu0 0.0
  %1518 = vmatpush1.msra.mxu0 0.0
  %1519 = vmatprep.subr.mxu0 0.0
  %1520 = vmatpush1.msra.mxu0 0.0
  %1521 = vmatprep.subr.mxu0 0.0
  %1522 = vmatpush1.msra.mxu0 0.0
  %1523 = vmatprep.subr.mxu0 0.0
  %1524 = vmatpush1.msra.mxu0 0.0
  %1525 = vmatprep.subr.mxu0 0.0
  %1526 = vmatpush1.msra.mxu0 0.0
  %1527 = vmatprep.subr.mxu0 0.0
  %1528 = vmatpush1.msra.mxu0 0.0
  %1529 = vmatprep.subr.mxu0 0.0
  %1530 = vmatpush1.msra.mxu0 0.0
  %1531 = vmatprep.subr.mxu0 0.0
  %1532 = vmatpush1.msra.mxu0 0.0
  %1533 = vmatprep.subr.mxu0 0.0
  %1534 = vmatpush1.msra.mxu0 0.0
  %1535 = vmatprep.subr.mxu0 0.0
  %1536 = vmatpush1.msra.mxu0 0.0
  %1537 = vmatprep.subr.mxu0 0.0
  %1538 = vmatpush1.msra.mxu0 0.0
  %1539 = vmatprep.subr.mxu0 0.0
  %1540 = vmatpush1.msra.mxu0 0.0
  %1541 = vmatprep.subr.mxu0 0.0
  %1542 = vmatpush1.msra.mxu0 0.0
  %1543 = vmatprep.subr.mxu0 0.0
  %1544 = vmatpush1.msra.mxu0 0.0
  %1545 = vmatprep.subr.mxu0 0.0
  %1546 = vmatpush1.msra.mxu0 0.0
  %1547 = vmatprep.subr.mxu0 0.0
  %1548 = vmatpush1.msra.mxu0 0.0
  %1549 = vmatprep.subr.mxu0 0.0
  %1550 = vmatpush1.msra.mxu0 0.0
  %1551 = vmatprep.subr.mxu0 0.0
  %1552 = vmatpush1.msra.mxu0 0.0
  %1553 = vmatprep.mubr.f32.mxu0 0.0
  %1554 = vmatmul.mubr.f32.gmra.mrb[0].mxu0 %v1487
  %v1555 = vpop.f32.mrb[0].mxu0
  %v1556 = vadd.f32 0.0, %v1555
  %v1557 = vpop.f32.mrb[0].mxu0
  %1558 = vdwg.mxu0
  %v1559 = vlaneseq
  %v1560 = vshrl.u32 %v1559, 7
  %v1561 = vsub.s32 0, %v1560
  %v1562 = vrot.slane %v1556, %v1561
  %v1563 = vsub.f32 %v1402, %v1562
  %v1564 = vsub.f32 %v1403, %v1562
  %v1565 = vsub.f32 %v1404, %v1562
  %v1566 = vsub.f32 %v1405, %v1562
  %v1567 = vmul.f32 %v1563, %v1563
  %v1568 = vmul.f32 %v1564, %v1564
  %v1569 = vmul.f32 %v1565, %v1565
  %v1570 = vmul.f32 %v1566, %v1566
  %v1571 = vadd.f32 %v1567, %v1568
  %v1572 = vadd.f32 %v1571, %v1569
  %v1573 = vadd.f32 %v1572, %v1570
  %v1574 = vrot.slane %v1573, 4
  %v1575 = vadd.f32 %v1573, %v1574
  %v1576 = vrot.slane %v1575, 2
  %v1577 = vadd.f32 %v1575, %v1576
  %v1578 = vrot.slane %v1577, 1
  %v1579 = vadd.f32 %v1577, %v1578
  %1580 = vmatprep.subr.mxu0 0.0
  %1581 = vmatpush1.msra.mxu0 %v273
  %1582 = vmatprep.subr.mxu0 0.0
  %1583 = vmatpush1.msra.mxu0 %v274
  %1584 = vmatprep.subr.mxu0 0.0
  %1585 = vmatpush1.msra.mxu0 %v275
  %1586 = vmatprep.subr.mxu0 0.0
  %1587 = vmatpush1.msra.mxu0 %v276
  %1588 = vmatprep.subr.mxu0 0.0
  %1589 = vmatpush1.msra.mxu0 %v277
  %1590 = vmatprep.subr.mxu0 0.0
  %1591 = vmatpush1.msra.mxu0 %v278
  %1592 = vmatprep.subr.mxu0 0.0
  %1593 = vmatpush1.msra.mxu0 %v279
  %1594 = vmatprep.subr.mxu0 0.0
  %1595 = vmatpush1.msra.mxu0 %v280
  %1596 = vmatprep.subr.mxu0 0.0
  %1597 = vmatpush1.msra.mxu0 %v281
  %1598 = vmatprep.subr.mxu0 0.0
  %1599 = vmatpush1.msra.mxu0 %v282
  %1600 = vmatprep.subr.mxu0 0.0
  %1601 = vmatpush1.msra.mxu0 %v283
  %1602 = vmatprep.subr.mxu0 0.0
  %1603 = vmatpush1.msra.mxu0 %v284
  %1604 = vmatprep.subr.mxu0 0.0
  %1605 = vmatpush1.msra.mxu0 %v285
  %1606 = vmatprep.subr.mxu0 0.0
  %1607 = vmatpush1.msra.mxu0 %v286
  %1608 = vmatprep.subr.mxu0 0.0
  %1609 = vmatpush1.msra.mxu0 %v287
  %1610 = vmatprep.subr.mxu0 0.0
  %1611 = vmatpush1.msra.mxu0 %v288
  %1612 = vmatprep.subr.mxu0 0.0
  %1613 = vmatpush1.msra.mxu0 0.0
  %1614 = vmatprep.subr.mxu0 0.0
  %1615 = vmatpush1.msra.mxu0 0.0
  %1616 = vmatprep.subr.mxu0 0.0
  %1617 = vmatpush1.msra.mxu0 0.0
  %1618 = vmatprep.subr.mxu0 0.0
  %1619 = vmatpush1.msra.mxu0 0.0
  %1620 = vmatprep.subr.mxu0 0.0
  %1621 = vmatpush1.msra.mxu0 0.0
  %1622 = vmatprep.subr.mxu0 0.0
  %1623 = vmatpush1.msra.mxu0 0.0
  %1624 = vmatprep.subr.mxu0 0.0
  %1625 = vmatpush1.msra.mxu0 0.0
  %1626 = vmatprep.subr.mxu0 0.0
  %1627 = vmatpush1.msra.mxu0 0.0
  %1628 = vmatprep.subr.mxu0 0.0
  %1629 = vmatpush1.msra.mxu0 0.0
  %1630 = vmatprep.subr.mxu0 0.0
  %1631 = vmatpush1.msra.mxu0 0.0
  %1632 = vmatprep.subr.mxu0 0.0
  %1633 = vmatpush1.msra.mxu0 0.0
  %1634 = vmatprep.subr.mxu0 0.0
  %1635 = vmatpush1.msra.mxu0 0.0
  %1636 = vmatprep.subr.mxu0 0.0
  %1637 = vmatpush1.msra.mxu0 0.0
  %1638 = vmatprep.subr.mxu0 0.0
  %1639 = vmatpush1.msra.mxu0 0.0
  %1640 = vmatprep.subr.mxu0 0.0
  %1641 = vmatpush1.msra.mxu0 0.0
  %1642 = vmatprep.subr.mxu0 0.0
  %1643 = vmatpush1.msra.mxu0 0.0
  %1644 = vmatprep.mubr.f32.mxu0 0.0
  %1645 = vmatmul.mubr.f32.gmra.mrb[0].mxu0 %v1579
  %v1646 = vpop.f32.mrb[0].mxu0
  %v1647 = vadd.f32 0.0, %v1646
  %v1648 = vpop.f32.mrb[0].mxu0
  %1649 = vdwg.mxu0
  %v1650 = vmul.f32 %v1647, 0.001953125
  %s1651 = scalar_lea.vmem %s6, 1
  %v1652 = vld [vmem:[%s1651] sm:$0x1]
  %v1653 = vadd.f32 %v1650, 1e-05
  %v1654 = vrsqrt.pop %v1653
  %v1655 = vmul.f32 %v1652, %v1654
  %v1657 = vsel %vm694, %v1655, 0
  %1659 = vmatprep.subr.mxu0 0.0
  %1660 = vmatpush1.msra.mxu0 %v303
  %1661 = vmatprep.subr.mxu0 0.0
  %1662 = vmatpush1.msra.mxu0 0.0
  %1663 = vmatprep.subr.mxu0 0.0
  %1664 = vmatpush1.msra.mxu0 0.0
  %1665 = vmatprep.subr.mxu0 0.0
  %1666 = vmatpush1.msra.mxu0 0.0
  %1667 = vmatprep.subr.mxu0 0.0
  %1668 = vmatpush1.msra.mxu0 0.0
  %1669 = vmatprep.subr.mxu0 0.0
  %1670 = vmatpush1.msra.mxu0 0.0
  %1671 = vmatprep.subr.mxu0 0.0
  %1672 = vmatpush1.msra.mxu0 0.0
  %1673 = vmatprep.subr.mxu0 0.0
  %1674 = vmatpush1.msra.mxu0 0.0
  %1675 = vmatprep.subr.mxu0 0.0
  %1676 = vmatpush1.msra.mxu0 0.0
  %1677 = vmatprep.subr.mxu0 0.0
  %1678 = vmatpush1.msra.mxu0 0.0
  %1679 = vmatprep.subr.mxu0 0.0
  %1680 = vmatpush1.msra.mxu0 0.0
  %1681 = vmatprep.subr.mxu0 0.0
  %1682 = vmatpush1.msra.mxu0 0.0
  %1683 = vmatprep.subr.mxu0 0.0
  %1684 = vmatpush1.msra.mxu0 0.0
  %1685 = vmatprep.subr.mxu0 0.0
  %1686 = vmatpush1.msra.mxu0 0.0
  %1687 = vmatprep.subr.mxu0 0.0
  %1688 = vmatpush1.msra.mxu0 0.0
  %1689 = vmatprep.subr.mxu0 0.0
  %1690 = vmatpush1.msra.mxu0 0.0
  %1691 = vmatprep.subr.mxu0 0.0
  %1692 = vmatpush1.msra.mxu0 0.0
  %1693 = vmatprep.subr.mxu0 0.0
  %1694 = vmatpush1.msra.mxu0 0.0
  %1695 = vmatprep.subr.mxu0 0.0
  %1696 = vmatpush1.msra.mxu0 0.0
  %1697 = vmatprep.subr.mxu0 0.0
  %1698 = vmatpush1.msra.mxu0 0.0
  %1699 = vmatprep.subr.mxu0 0.0
  %1700 = vmatpush1.msra.mxu0 0.0
  %1701 = vmatprep.subr.mxu0 0.0
  %1702 = vmatpush1.msra.mxu0 0.0
  %1703 = vmatprep.subr.mxu0 0.0
  %1704 = vmatpush1.msra.mxu0 0.0
  %1705 = vmatprep.subr.mxu0 0.0
  %1706 = vmatpush1.msra.mxu0 0.0
  %1707 = vmatprep.subr.mxu0 0.0
  %1708 = vmatpush1.msra.mxu0 0.0
  %1709 = vmatprep.subr.mxu0 0.0
  %1710 = vmatpush1.msra.mxu0 0.0
  %1711 = vmatprep.subr.mxu0 0.0
  %1712 = vmatpush1.msra.mxu0 0.0
  %1713 = vmatprep.subr.mxu0 0.0
  %1714 = vmatpush1.msra.mxu0 0.0
  %1715 = vmatprep.subr.mxu0 0.0
  %1716 = vmatpush1.msra.mxu0 0.0
  %1717 = vmatprep.subr.mxu0 0.0
  %1718 = vmatpush1.msra.mxu0 0.0
  %1719 = vmatprep.subr.mxu0 0.0
  %1720 = vmatpush1.msra.mxu0 0.0
  %1721 = vmatprep.subr.mxu0 0.0
  %1722 = vmatpush1.msra.mxu0 0.0
  %1723 = vmatprep.mubr.f32.mxu0 0.0
  %1724 = vmatmul.mubr.f32.gmra.mrb[0].mxu0 %v1657
  %v1725 = vpop.f32.mrb[0].mxu0
  %v1726 = vadd.f32 0.0, %v1725
  %v1727 = vpop.f32.mrb[0].mxu0
  %1728 = vdwg.mxu0
  %v1729 = vlaneseq
  %v1730 = vshrl.u32 %v1729, 7
  %v1731 = vsub.s32 0, %v1730
  %v1732 = vrot.slane %v1726, %v1731
  %v1733 = vmul.f32 %v1563, %v1732
  %v1734 = vmul.f32 %v1564, %v1732
  %v1735 = vmul.f32 %v1565, %v1732
  %v1736 = vmul.f32 %v1566, %v1732
  %s1737 = scalar_lea.vmem %s7, 1
  %v1738 = vld [vmem:[%s1737] sm:$0x1]
  %v1740 = vsel %vm694, %v1738, 0
  %1742 = vmatprep.subr.mxu0 0.0
  %1743 = vmatpush1.msra.mxu0 %v303
  %1744 = vmatprep.subr.mxu0 0.0
  %1745 = vmatpush1.msra.mxu0 0.0
  %1746 = vmatprep.subr.mxu0 0.0
  %1747 = vmatpush1.msra.mxu0 0.0
  %1748 = vmatprep.subr.mxu0 0.0
  %1749 = vmatpush1.msra.mxu0 0.0
  %1750 = vmatprep.subr.mxu0 0.0
  %1751 = vmatpush1.msra.mxu0 0.0
  %1752 = vmatprep.subr.mxu0 0.0
  %1753 = vmatpush1.msra.mxu0 0.0
  %1754 = vmatprep.subr.mxu0 0.0
  %1755 = vmatpush1.msra.mxu0 0.0
  %1756 = vmatprep.subr.mxu0 0.0
  %1757 = vmatpush1.msra.mxu0 0.0
  %1758 = vmatprep.subr.mxu0 0.0
  %1759 = vmatpush1.msra.mxu0 0.0
  %1760 = vmatprep.subr.mxu0 0.0
  %1761 = vmatpush1.msra.mxu0 0.0
  %1762 = vmatprep.subr.mxu0 0.0
  %1763 = vmatpush1.msra.mxu0 0.0
  %1764 = vmatprep.subr.mxu0 0.0
  %1765 = vmatpush1.msra.mxu0 0.0
  %1766 = vmatprep.subr.mxu0 0.0
  %1767 = vmatpush1.msra.mxu0 0.0
  %1768 = vmatprep.subr.mxu0 0.0
  %1769 = vmatpush1.msra.mxu0 0.0
  %1770 = vmatprep.subr.mxu0 0.0
  %1771 = vmatpush1.msra.mxu0 0.0
  %1772 = vmatprep.subr.mxu0 0.0
  %1773 = vmatpush1.msra.mxu0 0.0
  %1774 = vmatprep.subr.mxu0 0.0
  %1775 = vmatpush1.msra.mxu0 0.0
  %1776 = vmatprep.subr.mxu0 0.0
  %1777 = vmatpush1.msra.mxu0 0.0
  %1778 = vmatprep.subr.mxu0 0.0
  %1779 = vmatpush1.msra.mxu0 0.0
  %1780 = vmatprep.subr.mxu0 0.0
  %1781 = vmatpush1.msra.mxu0 0.0
  %1782 = vmatprep.subr.mxu0 0.0
  %1783 = vmatpush1.msra.mxu0 0.0
  %1784 = vmatprep.subr.mxu0 0.0
  %1785 = vmatpush1.msra.mxu0 0.0
  %1786 = vmatprep.subr.mxu0 0.0
  %1787 = vmatpush1.msra.mxu0 0.0
  %1788 = vmatprep.subr.mxu0 0.0
  %1789 = vmatpush1.msra.mxu0 0.0
  %1790 = vmatprep.subr.mxu0 0.0
  %1791 = vmatpush1.msra.mxu0 0.0
  %1792 = vmatprep.subr.mxu0 0.0
  %1793 = vmatpush1.msra.mxu0 0.0
  %1794 = vmatprep.subr.mxu0 0.0
  %1795 = vmatpush1.msra.mxu0 0.0
  %1796 = vmatprep.subr.mxu0 0.0
  %1797 = vmatpush1.msra.mxu0 0.0
  %1798 = vmatprep.subr.mxu0 0.0
  %1799 = vmatpush1.msra.mxu0 0.0
  %1800 = vmatprep.subr.mxu0 0.0
  %1801 = vmatpush1.msra.mxu0 0.0
  %1802 = vmatprep.subr.mxu0 0.0
  %1803 = vmatpush1.msra.mxu0 0.0
  %1804 = vmatprep.subr.mxu0 0.0
  %1805 = vmatpush1.msra.mxu0 0.0
  %1806 = vmatprep.mubr.f32.mxu0 0.0
  %1807 = vmatmul.mubr.f32.gmra.mrb[0].mxu0 %v1740
  %v1808 = vpop.f32.mrb[0].mxu0
  %v1809 = vadd.f32 0.0, %v1808
  %v1810 = vpop.f32.mrb[0].mxu0
  %1811 = vdwg.mxu0
  %v1812 = vlaneseq
  %v1813 = vshrl.u32 %v1812, 7
  %v1814 = vsub.s32 0, %v1813
  %v1815 = vrot.slane %v1809, %v1814
  %v1816 = vadd.f32 %v1733, %v1815
  %v1817 = vadd.f32 %v1734, %v1815
  %v1818 = vadd.f32 %v1735, %v1815
  %v1819 = vadd.f32 %v1736, %v1815
  %vm1820 = vcmp.gt.f32.partialorder %v1816, 0.0
  %vm1821 = vcmp.gt.f32.partialorder %v1817, 0.0
  %vm1822 = vcmp.gt.f32.partialorder %v1818, 0.0
  %vm1823 = vcmp.gt.f32.partialorder %v1819, 0.0
  %v1824 = vmul.f32 %v1816, 0.2
  %v1825 = vmul.f32 %v1817, 0.2
  %v1826 = vmul.f32 %v1818, 0.2
  %v1827 = vmul.f32 %v1819, 0.2
  %v1828 = vsel %vm1820, %v1816, %v1824
  %v1829 = vsel %vm1821, %v1817, %v1825
  %v1830 = vsel %vm1822, %v1818, %v1826
  %v1831 = vsel %vm1823, %v1819, %v1827
  %1832 = vst [vmem:[#allocation4 + $0x1] sm:$0xff] %v1828
  %1833 = vst [vmem:[#allocation4 + $0x9] sm:$0xff] %v1829
  %1834 = vst [vmem:[#allocation4 + $0x13] sm:$0xff] %v1830
  %1835 = vst [vmem:[#allocation4 + $0x1b] sm:$0xff] %v1831
  %v1836 = vld [vmem:[#allocation4] sm:$0xff]
  %v1837 = vld [vmem:[#allocation4 + $0x8] sm:$0xff]
  %v1838 = vld [vmem:[#allocation4 + $0x12] sm:$0xff]
  %v1839 = vld [vmem:[#allocation4 + $0x1a] sm:$0xff]
  %v1840 = vpack.c.bf16 %v1837, %v1836
  %v1841 = vpack.c.bf16 %v1839, %v1838
  %v1842 = vld [vmem:[%s3] sm:$0xf]
  %v1843 = vld [vmem:[%s3 + $0x4] sm:$0xf]
  %v1844 = vld [vmem:[%s3 + $0x8] sm:$0xf]
  %v1845 = vld [vmem:[%s3 + $0xc] sm:$0xf]
  %v1846 = vld [vmem:[%s3 + $0x10] sm:$0xf]
  %v1847 = vld [vmem:[%s3 + $0x14] sm:$0xf]
  %v1848 = vld [vmem:[%s3 + $0x18] sm:$0xf]
  %v1849 = vld [vmem:[%s3 + $0x1c] sm:$0xf]
  %v1850 = vld [vmem:[%s3 + $0x20] sm:$0xf]
  %v1851 = vld [vmem:[%s3 + $0x24] sm:$0xf]
  %v1852 = vld [vmem:[%s3 + $0x28] sm:$0xf]
  %v1853 = vld [vmem:[%s3 + $0x2c] sm:$0xf]
  %v1854 = vld [vmem:[%s3 + $0x30] sm:$0xf]
  %v1855 = vld [vmem:[%s3 + $0x34] sm:$0xf]
  %v1856 = vld [vmem:[%s3 + $0x38] sm:$0xf]
  %v1857 = vld [vmem:[%s3 + $0x3c] sm:$0xf]
  %v1858 = vld [vmem:[#allocation4 + $0x1] sm:$0xff]
  %v1859 = vld [vmem:[#allocation4 + $0x9] sm:$0xff]
  %v1860 = vld [vmem:[#allocation4 + $0x13] sm:$0xff]
  %v1861 = vld [vmem:[#allocation4 + $0x1b] sm:$0xff]
  %v1862 = vpack.c.bf16 %v1859, %v1858
  %v1863 = vpack.c.bf16 %v1861, %v1860
  %s1864 = scalar_lea.vmem %s3, 64
  %v1865 = vld [vmem:[%s1864] sm:$0xf]
  %v1866 = vld [vmem:[%s1864 + $0x4] sm:$0xf]
  %v1867 = vld [vmem:[%s1864 + $0x8] sm:$0xf]
  %v1868 = vld [vmem:[%s1864 + $0xc] sm:$0xf]
  %v1869 = vld [vmem:[%s1864 + $0x10] sm:$0xf]
  %v1870 = vld [vmem:[%s1864 + $0x14] sm:$0xf]
  %v1871 = vld [vmem:[%s1864 + $0x18] sm:$0xf]
  %v1872 = vld [vmem:[%s1864 + $0x1c] sm:$0xf]
  %v1873 = vld [vmem:[%s1864 + $0x20] sm:$0xf]
  %v1874 = vld [vmem:[%s1864 + $0x24] sm:$0xf]
  %v1875 = vld [vmem:[%s1864 + $0x28] sm:$0xf]
  %v1876 = vld [vmem:[%s1864 + $0x2c] sm:$0xf]
  %v1877 = vld [vmem:[%s1864 + $0x30] sm:$0xf]
  %v1878 = vld [vmem:[%s1864 + $0x34] sm:$0xf]
  %v1879 = vld [vmem:[%s1864 + $0x38] sm:$0xf]
  %v1880 = vld [vmem:[%s1864 + $0x3c] sm:$0xf]
  %v1897 = vunpack.c.l.b16 %v1865
  %v1898 = vunpack.c.l.b16 %v1866
  %v1899 = vunpack.c.l.b16 %v1867
  %v1900 = vunpack.c.l.b16 %v1868
  %v1901 = vunpack.c.l.b16 %v1869
  %v1902 = vunpack.c.l.b16 %v1870
  %v1903 = vunpack.c.l.b16 %v1871
  %v1904 = vunpack.c.l.b16 %v1872
  %v1905 = vunpack.c.l.b16 %v1873
  %v1906 = vunpack.c.l.b16 %v1874
  %v1907 = vunpack.c.l.b16 %v1875
  %v1908 = vunpack.c.l.b16 %v1876
  %v1909 = vunpack.c.l.b16 %v1877
  %v1910 = vunpack.c.l.b16 %v1878
  %v1911 = vunpack.c.l.b16 %v1879
  %v1912 = vunpack.c.l.b16 %v1880
  %v1913 = vpack.c.b16 %v1898, %v1897
  %v1914 = vpack.c.b16 %v1900, %v1899
  %v1915 = vpack.c.b16 %v1902, %v1901
  %v1916 = vpack.c.b16 %v1904, %v1903
  %v1917 = vpack.c.b16 %v1906, %v1905
  %v1918 = vpack.c.b16 %v1908, %v1907
  %v1919 = vpack.c.b16 %v1910, %v1909
  %v1920 = vpack.c.b16 %v1912, %v1911
  %1929 = vmatprep.subr.bf16.mxu0 0
  %1930 = vmatpush1.bf16.msra.mxu0 %v1913
  %1931 = vmatprep.subr.bf16.mxu0 0
  %1932 = vmatpush1.bf16.msra.mxu0 %v1914
  %1933 = vmatprep.subr.bf16.mxu0 0
  %1934 = vmatpush1.bf16.msra.mxu0 %v1915
  %1935 = vmatprep.subr.bf16.mxu0 0
  %1936 = vmatpush1.bf16.msra.mxu0 %v1916
  %1937 = vmatprep.subr.bf16.mxu0 0
  %1938 = vmatpush1.bf16.msra.mxu0 %v1917
  %1939 = vmatprep.subr.bf16.mxu0 0
  %1940 = vmatpush1.bf16.msra.mxu0 %v1918
  %1941 = vmatprep.subr.bf16.mxu0 0
  %1942 = vmatpush1.bf16.msra.mxu0 %v1919
  %1943 = vmatprep.subr.bf16.mxu0 0
  %1944 = vmatpush1.bf16.msra.mxu0 %v1920
  %1945 = vmatprep.subr.bf16.mxu0 0
  %1946 = vmatpush1.bf16.msra.mxu0 0
  %1947 = vmatprep.subr.bf16.mxu0 0
  %1948 = vmatpush1.bf16.msra.mxu0 0
  %1949 = vmatprep.subr.bf16.mxu0 0
  %1950 = vmatpush1.bf16.msra.mxu0 0
  %1951 = vmatprep.subr.bf16.mxu0 0
  %1952 = vmatpush1.bf16.msra.mxu0 0
  %1953 = vmatprep.subr.bf16.mxu0 0
  %1954 = vmatpush1.bf16.msra.mxu0 0
  %1955 = vmatprep.subr.bf16.mxu0 0
  %1956 = vmatpush1.bf16.msra.mxu0 0
  %1957 = vmatprep.subr.bf16.mxu0 0
  %1958 = vmatpush1.bf16.msra.mxu0 0
  %1959 = vmatprep.subr.bf16.mxu0 0
  %1960 = vmatpush1.bf16.msra.mxu0 0
  %1961 = vmatprep.mubr.bf16.mxu0 0
  %1962 = vmatmul.mubr.bf16.gmra.mrb[0].mxu0 %v1862
  %v1963 = vpop.f32.mrb[0].mxu0
  %v1964 = vadd.f32 0.0, %v1963
  %v1965 = vpop.f32.mrb[0].mxu0
  %v1966 = vpop.f32.mrb[0].mxu0
  %v1967 = vadd.f32 0.0, %v1966
  %v1968 = vpop.f32.mrb[0].mxu0
  %1969 = vmatprep.mubr.bf16.mxu0 0
  %1970 = vmatmul.mubr.bf16.gmra.mrb[0].mxu0 %v1863
  %v1971 = vpop.f32.mrb[0].mxu0
  %v1972 = vadd.f32 0.0, %v1971
  %v1973 = vpop.f32.mrb[0].mxu0
  %v1974 = vpop.f32.mrb[0].mxu0
  %v1975 = vadd.f32 0.0, %v1974
  %v1976 = vpop.f32.mrb[0].mxu0
  %1977 = vdwg.mxu0
  %v1994 = vunpack.c.l.b16 %v1842
  %v1995 = vunpack.c.l.b16 %v1843
  %v1996 = vunpack.c.l.b16 %v1844
  %v1997 = vunpack.c.l.b16 %v1845
  %v1998 = vunpack.c.l.b16 %v1846
  %v1999 = vunpack.c.l.b16 %v1847
  %v2000 = vunpack.c.l.b16 %v1848
  %v2001 = vunpack.c.l.b16 %v1849
  %v2002 = vunpack.c.l.b16 %v1850
  %v2003 = vunpack.c.l.b16 %v1851
  %v2004 = vunpack.c.l.b16 %v1852
  %v2005 = vunpack.c.l.b16 %v1853
  %v2006 = vunpack.c.l.b16 %v1854
  %v2007 = vunpack.c.l.b16 %v1855
  %v2008 = vunpack.c.l.b16 %v1856
  %v2009 = vunpack.c.l.b16 %v1857
  %v2010 = vpack.c.b16 %v1995, %v1994
  %v2011 = vpack.c.b16 %v1997, %v1996
  %v2012 = vpack.c.b16 %v1999, %v1998
  %v2013 = vpack.c.b16 %v2001, %v2000
  %v2014 = vpack.c.b16 %v2003, %v2002
  %v2015 = vpack.c.b16 %v2005, %v2004
  %v2016 = vpack.c.b16 %v2007, %v2006
  %v2017 = vpack.c.b16 %v2009, %v2008
  %2026 = vmatprep.subr.bf16.mxu0 0
  %2027 = vmatpush1.bf16.msra.mxu0 %v2010
  %2028 = vmatprep.subr.bf16.mxu0 0
  %2029 = vmatpush1.bf16.msra.mxu0 %v2011
  %2030 = vmatprep.subr.bf16.mxu0 0
  %2031 = vmatpush1.bf16.msra.mxu0 %v2012
  %2032 = vmatprep.subr.bf16.mxu0 0
  %2033 = vmatpush1.bf16.msra.mxu0 %v2013
  %2034 = vmatprep.subr.bf16.mxu0 0
  %2035 = vmatpush1.bf16.msra.mxu0 %v2014
  %2036 = vmatprep.subr.bf16.mxu0 0
  %2037 = vmatpush1.bf16.msra.mxu0 %v2015
  %2038 = vmatprep.subr.bf16.mxu0 0
  %2039 = vmatpush1.bf16.msra.mxu0 %v2016
  %2040 = vmatprep.subr.bf16.mxu0 0
  %2041 = vmatpush1.bf16.msra.mxu0 %v2017
  %2042 = vmatprep.subr.bf16.mxu0 0
  %2043 = vmatpush1.bf16.msra.mxu0 0
  %2044 = vmatprep.subr.bf16.mxu0 0
  %2045 = vmatpush1.bf16.msra.mxu0 0
  %2046 = vmatprep.subr.bf16.mxu0 0
  %2047 = vmatpush1.bf16.msra.mxu0 0
  %2048 = vmatprep.subr.bf16.mxu0 0
  %2049 = vmatpush1.bf16.msra.mxu0 0
  %2050 = vmatprep.subr.bf16.mxu0 0
  %2051 = vmatpush1.bf16.msra.mxu0 0
  %2052 = vmatprep.subr.bf16.mxu0 0
  %2053 = vmatpush1.bf16.msra.mxu0 0
  %2054 = vmatprep.subr.bf16.mxu0 0
  %2055 = vmatpush1.bf16.msra.mxu0 0
  %2056 = vmatprep.subr.bf16.mxu0 0
  %2057 = vmatpush1.bf16.msra.mxu0 0
  %2058 = vmatprep.mubr.bf16.mxu0 0
  %2059 = vmatmul.mubr.bf16.gmra.mrb[0].mxu0 %v1840
  %v2060 = vpop.f32.mrb[0].mxu0
  %v2061 = vadd.f32 %v1964, %v2060
  %v2062 = vpop.f32.mrb[0].mxu0
  %v2063 = vpop.f32.mrb[0].mxu0
  %v2064 = vadd.f32 %v1967, %v2063
  %v2065 = vpop.f32.mrb[0].mxu0
  %2066 = vmatprep.mubr.bf16.mxu0 0
  %2067 = vmatmul.mubr.bf16.gmra.mrb[0].mxu0 %v1841
  %v2068 = vpop.f32.mrb[0].mxu0
  %v2069 = vadd.f32 %v1972, %v2068
  %v2070 = vpop.f32.mrb[0].mxu0
  %v2071 = vpop.f32.mrb[0].mxu0
  %v2072 = vadd.f32 %v1975, %v2071
  %v2073 = vpop.f32.mrb[0].mxu0
  %2074 = vdwg.mxu0
  %v2075 = vld [vmem:[#allocation4 + $0x2] sm:$0xff]
  %v2076 = vld [vmem:[#allocation4 + $0xa] sm:$0xff]
  %v2077 = vld [vmem:[#allocation4 + $0x14] sm:$0xff]
  %v2078 = vld [vmem:[#allocation4 + $0x1c] sm:$0xff]
  %v2079 = vpack.c.bf16 %v2076, %v2075
  %v2080 = vpack.c.bf16 %v2078, %v2077
  %s2081 = scalar_lea.vmem %s3, 128
  %v2082 = vld [vmem:[%s2081] sm:$0xf]
  %v2083 = vld [vmem:[%s2081 + $0x4] sm:$0xf]
  %v2084 = vld [vmem:[%s2081 + $0x8] sm:$0xf]
  %v2085 = vld [vmem:[%s2081 + $0xc] sm:$0xf]
  %v2086 = vld [vmem:[%s2081 + $0x10] sm:$0xf]
  %v2087 = vld [vmem:[%s2081 + $0x14] sm:$0xf]
  %v2088 = vld [vmem:[%s2081 + $0x18] sm:$0xf]
  %v2089 = vld [vmem:[%s2081 + $0x1c] sm:$0xf]
  %v2090 = vld [vmem:[%s2081 + $0x20] sm:$0xf]
  %v2091 = vld [vmem:[%s2081 + $0x24] sm:$0xf]
  %v2092 = vld [vmem:[%s2081 + $0x28] sm:$0xf]
  %v2093 = vld [vmem:[%s2081 + $0x2c] sm:$0xf]
  %v2094 = vld [vmem:[%s2081 + $0x30] sm:$0xf]
  %v2095 = vld [vmem:[%s2081 + $0x34] sm:$0xf]
  %v2096 = vld [vmem:[%s2081 + $0x38] sm:$0xf]
  %v2097 = vld [vmem:[%s2081 + $0x3c] sm:$0xf]
  %v2114 = vunpack.c.l.b16 %v2082
  %v2115 = vunpack.c.l.b16 %v2083
  %v2116 = vunpack.c.l.b16 %v2084
  %v2117 = vunpack.c.l.b16 %v2085
  %v2118 = vunpack.c.l.b16 %v2086
  %v2119 = vunpack.c.l.b16 %v2087
  %v2120 = vunpack.c.l.b16 %v2088
  %v2121 = vunpack.c.l.b16 %v2089
  %v2122 = vunpack.c.l.b16 %v2090
  %v2123 = vunpack.c.l.b16 %v2091
  %v2124 = vunpack.c.l.b16 %v2092
  %v2125 = vunpack.c.l.b16 %v2093
  %v2126 = vunpack.c.l.b16 %v2094
  %v2127 = vunpack.c.l.b16 %v2095
  %v2128 = vunpack.c.l.b16 %v2096
  %v2129 = vunpack.c.l.b16 %v2097
  %v2130 = vpack.c.b16 %v2115, %v2114
  %v2131 = vpack.c.b16 %v2117, %v2116
  %v2132 = vpack.c.b16 %v2119, %v2118
  %v2133 = vpack.c.b16 %v2121, %v2120
  %v2134 = vpack.c.b16 %v2123, %v2122
  %v2135 = vpack.c.b16 %v2125, %v2124
  %v2136 = vpack.c.b16 %v2127, %v2126
  %v2137 = vpack.c.b16 %v2129, %v2128
  %2146 = vmatprep.subr.bf16.mxu0 0
  %2147 = vmatpush1.bf16.msra.mxu0 %v2130
  %2148 = vmatprep.subr.bf16.mxu0 0
  %2149 = vmatpush1.bf16.msra.mxu0 %v2131
  %2150 = vmatprep.subr.bf16.mxu0 0
  %2151 = vmatpush1.bf16.msra.mxu0 %v2132
  %2152 = vmatprep.subr.bf16.mxu0 0
  %2153 = vmatpush1.bf16.msra.mxu0 %v2133
  %2154 = vmatprep.subr.bf16.mxu0 0
  %2155 = vmatpush1.bf16.msra.mxu0 %v2134
  %2156 = vmatprep.subr.bf16.mxu0 0
  %2157 = vmatpush1.bf16.msra.mxu0 %v2135
  %2158 = vmatprep.subr.bf16.mxu0 0
  %2159 = vmatpush1.bf16.msra.mxu0 %v2136
  %2160 = vmatprep.subr.bf16.mxu0 0
  %2161 = vmatpush1.bf16.msra.mxu0 %v2137
  %2162 = vmatprep.subr.bf16.mxu0 0
  %2163 = vmatpush1.bf16.msra.mxu0 0
  %2164 = vmatprep.subr.bf16.mxu0 0
  %2165 = vmatpush1.bf16.msra.mxu0 0
  %2166 = vmatprep.subr.bf16.mxu0 0
  %2167 = vmatpush1.bf16.msra.mxu0 0
  %2168 = vmatprep.subr.bf16.mxu0 0
  %2169 = vmatpush1.bf16.msra.mxu0 0
  %2170 = vmatprep.subr.bf16.mxu0 0
  %2171 = vmatpush1.bf16.msra.mxu0 0
  %2172 = vmatprep.subr.bf16.mxu0 0
  %2173 = vmatpush1.bf16.msra.mxu0 0
  %2174 = vmatprep.subr.bf16.mxu0 0
  %2175 = vmatpush1.bf16.msra.mxu0 0
  %2176 = vmatprep.subr.bf16.mxu0 0
  %2177 = vmatpush1.bf16.msra.mxu0 0
  %2178 = vmatprep.mubr.bf16.mxu0 0
  %2179 = vmatmul.mubr.bf16.gmra.mrb[0].mxu0 %v2079
  %v2180 = vpop.f32.mrb[0].mxu0
  %v2181 = vadd.f32 0.0, %v2180
  %v2182 = vpop.f32.mrb[0].mxu0
  %v2183 = vpop.f32.mrb[0].mxu0
  %v2184 = vadd.f32 0.0, %v2183
  %v2185 = vpop.f32.mrb[0].mxu0
  %2186 = vmatprep.mubr.bf16.mxu0 0
  %2187 = vmatmul.mubr.bf16.gmra.mrb[0].mxu0 %v2080
  %v2188 = vpop.f32.mrb[0].mxu0
  %v2189 = vadd.f32 0.0, %v2188
  %v2190 = vpop.f32.mrb[0].mxu0
  %v2191 = vpop.f32.mrb[0].mxu0
  %v2192 = vadd.f32 0.0, %v2191
  %v2193 = vpop.f32.mrb[0].mxu0
  %2194 = vdwg.mxu0
  %v2195 = vadd.f32 %v2061, %v2181
  %v2196 = vadd.f32 %v2064, %v2184
  %v2197 = vadd.f32 %v2069, %v2189
  %v2198 = vadd.f32 %v2072, %v2192
  %v2199 = vadd.f32 %v2195, %v2196
  %v2200 = vadd.f32 %v2199, %v2197
  %v2201 = vadd.f32 %v2200, %v2198
  %v2202 = vrot.slane %v2201, 4
  %v2203 = vadd.f32 %v2201, %v2202
  %v2204 = vrot.slane %v2203, 2
  %v2205 = vadd.f32 %v2203, %v2204
  %v2206 = vrot.slane %v2205, 1
  %v2207 = vadd.f32 %v2205, %v2206
  %2208 = vmatprep.subr.mxu0 0.0
  %2209 = vmatpush1.msra.mxu0 %v273
  %2210 = vmatprep.subr.mxu0 0.0
  %2211 = vmatpush1.msra.mxu0 %v274
  %2212 = vmatprep.subr.mxu0 0.0
  %2213 = vmatpush1.msra.mxu0 %v275
  %2214 = vmatprep.subr.mxu0 0.0
  %2215 = vmatpush1.msra.mxu0 %v276
  %2216 = vmatprep.subr.mxu0 0.0
  %2217 = vmatpush1.msra.mxu0 %v277
  %2218 = vmatprep.subr.mxu0 0.0
  %2219 = vmatpush1.msra.mxu0 %v278
  %2220 = vmatprep.subr.mxu0 0.0
  %2221 = vmatpush1.msra.mxu0 %v279
  %2222 = vmatprep.subr.mxu0 0.0
  %2223 = vmatpush1.msra.mxu0 %v280
  %2224 = vmatprep.subr.mxu0 0.0
  %2225 = vmatpush1.msra.mxu0 %v281
  %2226 = vmatprep.subr.mxu0 0.0
  %2227 = vmatpush1.msra.mxu0 %v282
  %2228 = vmatprep.subr.mxu0 0.0
  %2229 = vmatpush1.msra.mxu0 %v283
  %2230 = vmatprep.subr.mxu0 0.0
  %2231 = vmatpush1.msra.mxu0 %v284
  %2232 = vmatprep.subr.mxu0 0.0
  %2233 = vmatpush1.msra.mxu0 %v285
  %2234 = vmatprep.subr.mxu0 0.0
  %2235 = vmatpush1.msra.mxu0 %v286
  %2236 = vmatprep.subr.mxu0 0.0
  %2237 = vmatpush1.msra.mxu0 %v287
  %2238 = vmatprep.subr.mxu0 0.0
  %2239 = vmatpush1.msra.mxu0 %v288
  %2240 = vmatprep.subr.mxu0 0.0
  %2241 = vmatpush1.msra.mxu0 0.0
  %2242 = vmatprep.subr.mxu0 0.0
  %2243 = vmatpush1.msra.mxu0 0.0
  %2244 = vmatprep.subr.mxu0 0.0
  %2245 = vmatpush1.msra.mxu0 0.0
  %2246 = vmatprep.subr.mxu0 0.0
  %2247 = vmatpush1.msra.mxu0 0.0
  %2248 = vmatprep.subr.mxu0 0.0
  %2249 = vmatpush1.msra.mxu0 0.0
  %2250 = vmatprep.subr.mxu0 0.0
  %2251 = vmatpush1.msra.mxu0 0.0
  %2252 = vmatprep.subr.mxu0 0.0
  %2253 = vmatpush1.msra.mxu0 0.0
  %2254 = vmatprep.subr.mxu0 0.0
  %2255 = vmatpush1.msra.mxu0 0.0
  %2256 = vmatprep.subr.mxu0 0.0
  %2257 = vmatpush1.msra.mxu0 0.0
  %2258 = vmatprep.subr.mxu0 0.0
  %2259 = vmatpush1.msra.mxu0 0.0
  %2260 = vmatprep.subr.mxu0 0.0
  %2261 = vmatpush1.msra.mxu0 0.0
  %2262 = vmatprep.subr.mxu0 0.0
  %2263 = vmatpush1.msra.mxu0 0.0
  %2264 = vmatprep.subr.mxu0 0.0
  %2265 = vmatpush1.msra.mxu0 0.0
  %2266 = vmatprep.subr.mxu0 0.0
  %2267 = vmatpush1.msra.mxu0 0.0
  %2268 = vmatprep.subr.mxu0 0.0
  %2269 = vmatpush1.msra.mxu0 0.0
  %2270 = vmatprep.subr.mxu0 0.0
  %2271 = vmatpush1.msra.mxu0 0.0
  %2272 = vmatprep.mubr.f32.mxu0 0.0
  %2273 = vmatmul.mubr.f32.gmra.mrb[0].mxu0 %v2207
  %v2274 = vpop.f32.mrb[0].mxu0
  %v2275 = vadd.f32 0.0, %v2274
  %v2276 = vpop.f32.mrb[0].mxu0
  %2277 = vdwg.mxu0
  %v2278 = vmul.f32 %v2275, 0.001953125
  %v2280 = vsel %vm694, %v2278, 0
  %2282 = vmatprep.subr.mxu0 0.0
  %2283 = vmatpush1.msra.mxu0 %v303
  %2284 = vmatprep.subr.mxu0 0.0
  %2285 = vmatpush1.msra.mxu0 0.0
  %2286 = vmatprep.subr.mxu0 0.0
  %2287 = vmatpush1.msra.mxu0 0.0
  %2288 = vmatprep.subr.mxu0 0.0
  %2289 = vmatpush1.msra.mxu0 0.0
  %2290 = vmatprep.subr.mxu0 0.0
  %2291 = vmatpush1.msra.mxu0 0.0
  %2292 = vmatprep.subr.mxu0 0.0
  %2293 = vmatpush1.msra.mxu0 0.0
  %2294 = vmatprep.subr.mxu0 0.0
  %2295 = vmatpush1.msra.mxu0 0.0
  %2296 = vmatprep.subr.mxu0 0.0
  %2297 = vmatpush1.msra.mxu0 0.0
  %2298 = vmatprep.subr.mxu0 0.0
  %2299 = vmatpush1.msra.mxu0 0.0
  %2300 = vmatprep.subr.mxu0 0.0
  %2301 = vmatpush1.msra.mxu0 0.0
  %2302 = vmatprep.subr.mxu0 0.0
  %2303 = vmatpush1.msra.mxu0 0.0
  %2304 = vmatprep.subr.mxu0 0.0
  %2305 = vmatpush1.msra.mxu0 0.0
  %2306 = vmatprep.subr.mxu0 0.0
  %2307 = vmatpush1.msra.mxu0 0.0
  %2308 = vmatprep.subr.mxu0 0.0
  %2309 = vmatpush1.msra.mxu0 0.0
  %2310 = vmatprep.subr.mxu0 0.0
  %2311 = vmatpush1.msra.mxu0 0.0
  %2312 = vmatprep.subr.mxu0 0.0
  %2313 = vmatpush1.msra.mxu0 0.0
  %2314 = vmatprep.subr.mxu0 0.0
  %2315 = vmatpush1.msra.mxu0 0.0
  %2316 = vmatprep.subr.mxu0 0.0
  %2317 = vmatpush1.msra.mxu0 0.0
  %2318 = vmatprep.subr.mxu0 0.0
  %2319 = vmatpush1.msra.mxu0 0.0
  %2320 = vmatprep.subr.mxu0 0.0
  %2321 = vmatpush1.msra.mxu0 0.0
  %2322 = vmatprep.subr.mxu0 0.0
  %2323 = vmatpush1.msra.mxu0 0.0
  %2324 = vmatprep.subr.mxu0 0.0
  %2325 = vmatpush1.msra.mxu0 0.0
  %2326 = vmatprep.subr.mxu0 0.0
  %2327 = vmatpush1.msra.mxu0 0.0
  %2328 = vmatprep.subr.mxu0 0.0
  %2329 = vmatpush1.msra.mxu0 0.0
  %2330 = vmatprep.subr.mxu0 0.0
  %2331 = vmatpush1.msra.mxu0 0.0
  %2332 = vmatprep.subr.mxu0 0.0
  %2333 = vmatpush1.msra.mxu0 0.0
  %2334 = vmatprep.subr.mxu0 0.0
  %2335 = vmatpush1.msra.mxu0 0.0
  %2336 = vmatprep.subr.mxu0 0.0
  %2337 = vmatpush1.msra.mxu0 0.0
  %2338 = vmatprep.subr.mxu0 0.0
  %2339 = vmatpush1.msra.mxu0 0.0
  %2340 = vmatprep.subr.mxu0 0.0
  %2341 = vmatpush1.msra.mxu0 0.0
  %2342 = vmatprep.subr.mxu0 0.0
  %2343 = vmatpush1.msra.mxu0 0.0
  %2344 = vmatprep.subr.mxu0 0.0
  %2345 = vmatpush1.msra.mxu0 0.0
  %2346 = vmatprep.mubr.f32.mxu0 0.0
  %2347 = vmatmul.mubr.f32.gmra.mrb[0].mxu0 %v2280
  %v2348 = vpop.f32.mrb[0].mxu0
  %v2349 = vadd.f32 0.0, %v2348
  %v2350 = vpop.f32.mrb[0].mxu0
  %2351 = vdwg.mxu0
  %v2352 = vlaneseq
  %v2353 = vshrl.u32 %v2352, 7
  %v2354 = vsub.s32 0, %v2353
  %v2355 = vrot.slane %v2349, %v2354
  %v2356 = vsub.f32 %v2195, %v2355
  %v2357 = vsub.f32 %v2196, %v2355
  %v2358 = vsub.f32 %v2197, %v2355
  %v2359 = vsub.f32 %v2198, %v2355
  %v2360 = vmul.f32 %v2356, %v2356
  %v2361 = vmul.f32 %v2357, %v2357
  %v2362 = vmul.f32 %v2358, %v2358
  %v2363 = vmul.f32 %v2359, %v2359
  %v2364 = vadd.f32 %v2360, %v2361
  %v2365 = vadd.f32 %v2364, %v2362
  %v2366 = vadd.f32 %v2365, %v2363
  %v2367 = vrot.slane %v2366, 4
  %v2368 = vadd.f32 %v2366, %v2367
  %v2369 = vrot.slane %v2368, 2
  %v2370 = vadd.f32 %v2368, %v2369
  %v2371 = vrot.slane %v2370, 1
  %v2372 = vadd.f32 %v2370, %v2371
  %2373 = vmatprep.subr.mxu0 0.0
  %2374 = vmatpush1.msra.mxu0 %v273
  %2375 = vmatprep.subr.mxu0 0.0
  %2376 = vmatpush1.msra.mxu0 %v274
  %2377 = vmatprep.subr.mxu0 0.0
  %2378 = vmatpush1.msra.mxu0 %v275
  %2379 = vmatprep.subr.mxu0 0.0
  %2380 = vmatpush1.msra.mxu0 %v276
  %2381 = vmatprep.subr.mxu0 0.0
  %2382 = vmatpush1.msra.mxu0 %v277
  %2383 = vmatprep.subr.mxu0 0.0
  %2384 = vmatpush1.msra.mxu0 %v278
  %2385 = vmatprep.subr.mxu0 0.0
  %2386 = vmatpush1.msra.mxu0 %v279
  %2387 = vmatprep.subr.mxu0 0.0
  %2388 = vmatpush1.msra.mxu0 %v280
  %2389 = vmatprep.subr.mxu0 0.0
  %2390 = vmatpush1.msra.mxu0 %v281
  %2391 = vmatprep.subr.mxu0 0.0
  %2392 = vmatpush1.msra.mxu0 %v282
  %2393 = vmatprep.subr.mxu0 0.0
  %2394 = vmatpush1.msra.mxu0 %v283
  %2395 = vmatprep.subr.mxu0 0.0
  %2396 = vmatpush1.msra.mxu0 %v284
  %2397 = vmatprep.subr.mxu0 0.0
  %2398 = vmatpush1.msra.mxu0 %v285
  %2399 = vmatprep.subr.mxu0 0.0
  %2400 = vmatpush1.msra.mxu0 %v286
  %2401 = vmatprep.subr.mxu0 0.0
  %2402 = vmatpush1.msra.mxu0 %v287
  %2403 = vmatprep.subr.mxu0 0.0
  %2404 = vmatpush1.msra.mxu0 %v288
  %2405 = vmatprep.subr.mxu0 0.0
  %2406 = vmatpush1.msra.mxu0 0.0
  %2407 = vmatprep.subr.mxu0 0.0
  %2408 = vmatpush1.msra.mxu0 0.0
  %2409 = vmatprep.subr.mxu0 0.0
  %2410 = vmatpush1.msra.mxu0 0.0
  %2411 = vmatprep.subr.mxu0 0.0
  %2412 = vmatpush1.msra.mxu0 0.0
  %2413 = vmatprep.subr.mxu0 0.0
  %2414 = vmatpush1.msra.mxu0 0.0
  %2415 = vmatprep.subr.mxu0 0.0
  %2416 = vmatpush1.msra.mxu0 0.0
  %2417 = vmatprep.subr.mxu0 0.0
  %2418 = vmatpush1.msra.mxu0 0.0
  %2419 = vmatprep.subr.mxu0 0.0
  %2420 = vmatpush1.msra.mxu0 0.0
  %2421 = vmatprep.subr.mxu0 0.0
  %2422 = vmatpush1.msra.mxu0 0.0
  %2423 = vmatprep.subr.mxu0 0.0
  %2424 = vmatpush1.msra.mxu0 0.0
  %2425 = vmatprep.subr.mxu0 0.0
  %2426 = vmatpush1.msra.mxu0 0.0
  %2427 = vmatprep.subr.mxu0 0.0
  %2428 = vmatpush1.msra.mxu0 0.0
  %2429 = vmatprep.subr.mxu0 0.0
  %2430 = vmatpush1.msra.mxu0 0.0
  %2431 = vmatprep.subr.mxu0 0.0
  %2432 = vmatpush1.msra.mxu0 0.0
  %2433 = vmatprep.subr.mxu0 0.0
  %2434 = vmatpush1.msra.mxu0 0.0
  %2435 = vmatprep.subr.mxu0 0.0
  %2436 = vmatpush1.msra.mxu0 0.0
  %2437 = vmatprep.mubr.f32.mxu0 0.0
  %2438 = vmatmul.mubr.f32.gmra.mrb[0].mxu0 %v2372
  %v2439 = vpop.f32.mrb[0].mxu0
  %v2440 = vadd.f32 0.0, %v2439
  %v2441 = vpop.f32.mrb[0].mxu0
  %2442 = vdwg.mxu0
  %v2443 = vmul.f32 %v2440, 0.001953125
  %s2444 = scalar_lea.vmem %s6, 2
  %v2445 = vld [vmem:[%s2444] sm:$0x1]
  %v2446 = vadd.f32 %v2443, 1e-05
  %v2447 = vrsqrt.pop %v2446
  %v2448 = vmul.f32 %v2445, %v2447
  %v2450 = vsel %vm694, %v2448, 0
  %2452 = vmatprep.subr.mxu0 0.0
  %2453 = vmatpush1.msra.mxu0 %v303
  %2454 = vmatprep.subr.mxu0 0.0
  %2455 = vmatpush1.msra.mxu0 0.0
  %2456 = vmatprep.subr.mxu0 0.0
  %2457 = vmatpush1.msra.mxu0 0.0
  %2458 = vmatprep.subr.mxu0 0.0
  %2459 = vmatpush1.msra.mxu0 0.0
  %2460 = vmatprep.subr.mxu0 0.0
  %2461 = vmatpush1.msra.mxu0 0.0
  %2462 = vmatprep.subr.mxu0 0.0
  %2463 = vmatpush1.msra.mxu0 0.0
  %2464 = vmatprep.subr.mxu0 0.0
  %2465 = vmatpush1.msra.mxu0 0.0
  %2466 = vmatprep.subr.mxu0 0.0
  %2467 = vmatpush1.msra.mxu0 0.0
  %2468 = vmatprep.subr.mxu0 0.0
  %2469 = vmatpush1.msra.mxu0 0.0
  %2470 = vmatprep.subr.mxu0 0.0
  %2471 = vmatpush1.msra.mxu0 0.0
  %2472 = vmatprep.subr.mxu0 0.0
  %2473 = vmatpush1.msra.mxu0 0.0
  %2474 = vmatprep.subr.mxu0 0.0
  %2475 = vmatpush1.msra.mxu0 0.0
  %2476 = vmatprep.subr.mxu0 0.0
  %2477 = vmatpush1.msra.mxu0 0.0
  %2478 = vmatprep.subr.mxu0 0.0
  %2479 = vmatpush1.msra.mxu0 0.0
  %2480 = vmatprep.subr.mxu0 0.0
  %2481 = vmatpush1.msra.mxu0 0.0
  %2482 = vmatprep.subr.mxu0 0.0
  %2483 = vmatpush1.msra.mxu0 0.0
  %2484 = vmatprep.subr.mxu0 0.0
  %2485 = vmatpush1.msra.mxu0 0.0
  %2486 = vmatprep.subr.mxu0 0.0
  %2487 = vmatpush1.msra.mxu0 0.0
  %2488 = vmatprep.subr.mxu0 0.0
  %2489 = vmatpush1.msra.mxu0 0.0
  %2490 = vmatprep.subr.mxu0 0.0
  %2491 = vmatpush1.msra.mxu0 0.0
  %2492 = vmatprep.subr.mxu0 0.0
  %2493 = vmatpush1.msra.mxu0 0.0
  %2494 = vmatprep.subr.mxu0 0.0
  %2495 = vmatpush1.msra.mxu0 0.0
  %2496 = vmatprep.subr.mxu0 0.0
  %2497 = vmatpush1.msra.mxu0 0.0
  %2498 = vmatprep.subr.mxu0 0.0
  %2499 = vmatpush1.msra.mxu0 0.0
  %2500 = vmatprep.subr.mxu0 0.0
  %2501 = vmatpush1.msra.mxu0 0.0
  %2502 = vmatprep.subr.mxu0 0.0
  %2503 = vmatpush1.msra.mxu0 0.0
  %2504 = vmatprep.subr.mxu0 0.0
  %2505 = vmatpush1.msra.mxu0 0.0
  %2506 = vmatprep.subr.mxu0 0.0
  %2507 = vmatpush1.msra.mxu0 0.0
  %2508 = vmatprep.subr.mxu0 0.0
  %2509 = vmatpush1.msra.mxu0 0.0
  %2510 = vmatprep.subr.mxu0 0.0
  %2511 = vmatpush1.msra.mxu0 0.0
  %2512 = vmatprep.subr.mxu0 0.0
  %2513 = vmatpush1.msra.mxu0 0.0
  %2514 = vmatprep.subr.mxu0 0.0
  %2515 = vmatpush1.msra.mxu0 0.0
  %2516 = vmatprep.mubr.f32.mxu0 0.0
  %2517 = vmatmul.mubr.f32.gmra.mrb[0].mxu0 %v2450
  %v2518 = vpop.f32.mrb[0].mxu0
  %v2519 = vadd.f32 0.0, %v2518
  %v2520 = vpop.f32.mrb[0].mxu0
  %2521 = vdwg.mxu0
  %v2522 = vlaneseq
  %v2523 = vshrl.u32 %v2522, 7
  %v2524 = vsub.s32 0, %v2523
  %v2525 = vrot.slane %v2519, %v2524
  %v2526 = vmul.f32 %v2356, %v2525
  %v2527 = vmul.f32 %v2357, %v2525
  %v2528 = vmul.f32 %v2358, %v2525
  %v2529 = vmul.f32 %v2359, %v2525
  %s2530 = scalar_lea.vmem %s7, 2
  %v2531 = vld [vmem:[%s2530] sm:$0x1]
  %v2533 = vsel %vm694, %v2531, 0
  %2535 = vmatprep.subr.mxu0 0.0
  %2536 = vmatpush1.msra.mxu0 %v303
  %2537 = vmatprep.subr.mxu0 0.0
  %2538 = vmatpush1.msra.mxu0 0.0
  %2539 = vmatprep.subr.mxu0 0.0
  %2540 = vmatpush1.msra.mxu0 0.0
  %2541 = vmatprep.subr.mxu0 0.0
  %2542 = vmatpush1.msra.mxu0 0.0
  %2543 = vmatprep.subr.mxu0 0.0
  %2544 = vmatpush1.msra.mxu0 0.0
  %2545 = vmatprep.subr.mxu0 0.0
  %2546 = vmatpush1.msra.mxu0 0.0
  %2547 = vmatprep.subr.mxu0 0.0
  %2548 = vmatpush1.msra.mxu0 0.0
  %2549 = vmatprep.subr.mxu0 0.0
  %2550 = vmatpush1.msra.mxu0 0.0
  %2551 = vmatprep.subr.mxu0 0.0
  %2552 = vmatpush1.msra.mxu0 0.0
  %2553 = vmatprep.subr.mxu0 0.0
  %2554 = vmatpush1.msra.mxu0 0.0
  %2555 = vmatprep.subr.mxu0 0.0
  %2556 = vmatpush1.msra.mxu0 0.0
  %2557 = vmatprep.subr.mxu0 0.0
  %2558 = vmatpush1.msra.mxu0 0.0
  %2559 = vmatprep.subr.mxu0 0.0
  %2560 = vmatpush1.msra.mxu0 0.0
  %2561 = vmatprep.subr.mxu0 0.0
  %2562 = vmatpush1.msra.mxu0 0.0
  %2563 = vmatprep.subr.mxu0 0.0
  %2564 = vmatpush1.msra.mxu0 0.0
  %2565 = vmatprep.subr.mxu0 0.0
  %2566 = vmatpush1.msra.mxu0 0.0
  %2567 = vmatprep.subr.mxu0 0.0
  %2568 = vmatpush1.msra.mxu0 0.0
  %2569 = vmatprep.subr.mxu0 0.0
  %2570 = vmatpush1.msra.mxu0 0.0
  %2571 = vmatprep.subr.mxu0 0.0
  %2572 = vmatpush1.msra.mxu0 0.0
  %2573 = vmatprep.subr.mxu0 0.0
  %2574 = vmatpush1.msra.mxu0 0.0
  %2575 = vmatprep.subr.mxu0 0.0
  %2576 = vmatpush1.msra.mxu0 0.0
  %2577 = vmatprep.subr.mxu0 0.0
  %2578 = vmatpush1.msra.mxu0 0.0
  %2579 = vmatprep.subr.mxu0 0.0
  %2580 = vmatpush1.msra.mxu0 0.0
  %2581 = vmatprep.subr.mxu0 0.0
  %2582 = vmatpush1.msra.mxu0 0.0
  %2583 = vmatprep.subr.mxu0 0.0
  %2584 = vmatpush1.msra.mxu0 0.0
  %2585 = vmatprep.subr.mxu0 0.0
  %2586 = vmatpush1.msra.mxu0 0.0
  %2587 = vmatprep.subr.mxu0 0.0
  %2588 = vmatpush1.msra.mxu0 0.0
  %2589 = vmatprep.subr.mxu0 0.0
  %2590 = vmatpush1.msra.mxu0 0.0
  %2591 = vmatprep.subr.mxu0 0.0
  %2592 = vmatpush1.msra.mxu0 0.0
  %2593 = vmatprep.subr.mxu0 0.0
  %2594 = vmatpush1.msra.mxu0 0.0
  %2595 = vmatprep.subr.mxu0 0.0
  %2596 = vmatpush1.msra.mxu0 0.0
  %2597 = vmatprep.subr.mxu0 0.0
  %2598 = vmatpush1.msra.mxu0 0.0
  %2599 = vmatprep.mubr.f32.mxu0 0.0
  %2600 = vmatmul.mubr.f32.gmra.mrb[0].mxu0 %v2533
  %v2601 = vpop.f32.mrb[0].mxu0
  %v2602 = vadd.f32 0.0, %v2601
  %v2603 = vpop.f32.mrb[0].mxu0
  %2604 = vdwg.mxu0
  %v2605 = vlaneseq
  %v2606 = vshrl.u32 %v2605, 7
  %v2607 = vsub.s32 0, %v2606
  %v2608 = vrot.slane %v2602, %v2607
  %v2609 = vadd.f32 %v2526, %v2608
  %v2610 = vadd.f32 %v2527, %v2608
  %v2611 = vadd.f32 %v2528, %v2608
  %v2612 = vadd.f32 %v2529, %v2608
  %vm2613 = vcmp.gt.f32.partialorder %v2609, 0.0
  %vm2614 = vcmp.gt.f32.partialorder %v2610, 0.0
  %vm2615 = vcmp.gt.f32.partialorder %v2611, 0.0
  %vm2616 = vcmp.gt.f32.partialorder %v2612, 0.0
  %v2617 = vmul.f32 %v2609, 0.2
  %v2618 = vmul.f32 %v2610, 0.2
  %v2619 = vmul.f32 %v2611, 0.2
  %v2620 = vmul.f32 %v2612, 0.2
  %v2621 = vsel %vm2613, %v2609, %v2617
  %v2622 = vsel %vm2614, %v2610, %v2618
  %v2623 = vsel %vm2615, %v2611, %v2619
  %v2624 = vsel %vm2616, %v2612, %v2620
  %2625 = vst [vmem:[#allocation3 + $0x1] sm:$0xff] %v2621
  %2626 = vst [vmem:[#allocation3 + $0x9] sm:$0xff] %v2622
  %2627 = vst [vmem:[#allocation3 + $0x13] sm:$0xff] %v2623
  %2628 = vst [vmem:[#allocation3 + $0x1b] sm:$0xff] %v2624
  %v2629 = vld [vmem:[#allocation3] sm:$0xff]
  %v2630 = vld [vmem:[#allocation3 + $0x8] sm:$0xff]
  %v2631 = vld [vmem:[#allocation3 + $0x12] sm:$0xff]
  %v2632 = vld [vmem:[#allocation3 + $0x1a] sm:$0xff]
  %v2633 = vpack.c.bf16 %v2630, %v2629
  %v2634 = vpack.c.bf16 %v2632, %v2631
  %v2635 = vld [vmem:[%s4] sm:$0xf]
  %v2636 = vld [vmem:[%s4 + $0x4] sm:$0xf]
  %v2637 = vld [vmem:[%s4 + $0x8] sm:$0xf]
  %v2638 = vld [vmem:[%s4 + $0xc] sm:$0xf]
  %v2639 = vld [vmem:[%s4 + $0x10] sm:$0xf]
  %v2640 = vld [vmem:[%s4 + $0x14] sm:$0xf]
  %v2641 = vld [vmem:[%s4 + $0x18] sm:$0xf]
  %v2642 = vld [vmem:[%s4 + $0x1c] sm:$0xf]
  %v2643 = vld [vmem:[%s4 + $0x20] sm:$0xf]
  %v2644 = vld [vmem:[%s4 + $0x24] sm:$0xf]
  %v2645 = vld [vmem:[%s4 + $0x28] sm:$0xf]
  %v2646 = vld [vmem:[%s4 + $0x2c] sm:$0xf]
  %v2647 = vld [vmem:[%s4 + $0x30] sm:$0xf]
  %v2648 = vld [vmem:[%s4 + $0x34] sm:$0xf]
  %v2649 = vld [vmem:[%s4 + $0x38] sm:$0xf]
  %v2650 = vld [vmem:[%s4 + $0x3c] sm:$0xf]
  %v2651 = vld [vmem:[#allocation3 + $0x1] sm:$0xff]
  %v2652 = vld [vmem:[#allocation3 + $0x9] sm:$0xff]
  %v2653 = vld [vmem:[#allocation3 + $0x13] sm:$0xff]
  %v2654 = vld [vmem:[#allocation3 + $0x1b] sm:$0xff]
  %v2655 = vpack.c.bf16 %v2652, %v2651
  %v2656 = vpack.c.bf16 %v2654, %v2653
  %s2657 = scalar_lea.vmem %s4, 64
  %v2658 = vld [vmem:[%s2657] sm:$0xf]
  %v2659 = vld [vmem:[%s2657 + $0x4] sm:$0xf]
  %v2660 = vld [vmem:[%s2657 + $0x8] sm:$0xf]
  %v2661 = vld [vmem:[%s2657 + $0xc] sm:$0xf]
  %v2662 = vld [vmem:[%s2657 + $0x10] sm:$0xf]
  %v2663 = vld [vmem:[%s2657 + $0x14] sm:$0xf]
  %v2664 = vld [vmem:[%s2657 + $0x18] sm:$0xf]
  %v2665 = vld [vmem:[%s2657 + $0x1c] sm:$0xf]
  %v2666 = vld [vmem:[%s2657 + $0x20] sm:$0xf]
  %v2667 = vld [vmem:[%s2657 + $0x24] sm:$0xf]
  %v2668 = vld [vmem:[%s2657 + $0x28] sm:$0xf]
  %v2669 = vld [vmem:[%s2657 + $0x2c] sm:$0xf]
  %v2670 = vld [vmem:[%s2657 + $0x30] sm:$0xf]
  %v2671 = vld [vmem:[%s2657 + $0x34] sm:$0xf]
  %v2672 = vld [vmem:[%s2657 + $0x38] sm:$0xf]
  %v2673 = vld [vmem:[%s2657 + $0x3c] sm:$0xf]
  %v2690 = vunpack.c.l.b16 %v2658
  %v2691 = vunpack.c.l.b16 %v2659
  %v2692 = vunpack.c.l.b16 %v2660
  %v2693 = vunpack.c.l.b16 %v2661
  %v2694 = vunpack.c.l.b16 %v2662
  %v2695 = vunpack.c.l.b16 %v2663
  %v2696 = vunpack.c.l.b16 %v2664
  %v2697 = vunpack.c.l.b16 %v2665
  %v2698 = vunpack.c.l.b16 %v2666
  %v2699 = vunpack.c.l.b16 %v2667
  %v2700 = vunpack.c.l.b16 %v2668
  %v2701 = vunpack.c.l.b16 %v2669
  %v2702 = vunpack.c.l.b16 %v2670
  %v2703 = vunpack.c.l.b16 %v2671
  %v2704 = vunpack.c.l.b16 %v2672
  %v2705 = vunpack.c.l.b16 %v2673
  %v2706 = vpack.c.b16 %v2691, %v2690
  %v2707 = vpack.c.b16 %v2693, %v2692
  %v2708 = vpack.c.b16 %v2695, %v2694
  %v2709 = vpack.c.b16 %v2697, %v2696
  %v2710 = vpack.c.b16 %v2699, %v2698
  %v2711 = vpack.c.b16 %v2701, %v2700
  %v2712 = vpack.c.b16 %v2703, %v2702
  %v2713 = vpack.c.b16 %v2705, %v2704
  %2722 = vmatprep.subr.bf16.mxu0 0
  %2723 = vmatpush1.bf16.msra.mxu0 %v2706
  %2724 = vmatprep.subr.bf16.mxu0 0
  %2725 = vmatpush1.bf16.msra.mxu0 %v2707
  %2726 = vmatprep.subr.bf16.mxu0 0
  %2727 = vmatpush1.bf16.msra.mxu0 %v2708
  %2728 = vmatprep.subr.bf16.mxu0 0
  %2729 = vmatpush1.bf16.msra.mxu0 %v2709
  %2730 = vmatprep.subr.bf16.mxu0 0
  %2731 = vmatpush1.bf16.msra.mxu0 %v2710
  %2732 = vmatprep.subr.bf16.mxu0 0
  %2733 = vmatpush1.bf16.msra.mxu0 %v2711
  %2734 = vmatprep.subr.bf16.mxu0 0
  %2735 = vmatpush1.bf16.msra.mxu0 %v2712
  %2736 = vmatprep.subr.bf16.mxu0 0
  %2737 = vmatpush1.bf16.msra.mxu0 %v2713
  %2738 = vmatprep.subr.bf16.mxu0 0
  %2739 = vmatpush1.bf16.msra.mxu0 0
  %2740 = vmatprep.subr.bf16.mxu0 0
  %2741 = vmatpush1.bf16.msra.mxu0 0
  %2742 = vmatprep.subr.bf16.mxu0 0
  %2743 = vmatpush1.bf16.msra.mxu0 0
  %2744 = vmatprep.subr.bf16.mxu0 0
  %2745 = vmatpush1.bf16.msra.mxu0 0
  %2746 = vmatprep.subr.bf16.mxu0 0
  %2747 = vmatpush1.bf16.msra.mxu0 0
  %2748 = vmatprep.subr.bf16.mxu0 0
  %2749 = vmatpush1.bf16.msra.mxu0 0
  %2750 = vmatprep.subr.bf16.mxu0 0
  %2751 = vmatpush1.bf16.msra.mxu0 0
  %2752 = vmatprep.subr.bf16.mxu0 0
  %2753 = vmatpush1.bf16.msra.mxu0 0
  %2754 = vmatprep.mubr.bf16.mxu0 0
  %2755 = vmatmul.mubr.bf16.gmra.mrb[0].mxu0 %v2655
  %v2756 = vpop.f32.mrb[0].mxu0
  %v2757 = vadd.f32 0.0, %v2756
  %v2758 = vpop.f32.mrb[0].mxu0
  %v2759 = vpop.f32.mrb[0].mxu0
  %v2760 = vadd.f32 0.0, %v2759
  %v2761 = vpop.f32.mrb[0].mxu0
  %2762 = vmatprep.mubr.bf16.mxu0 0
  %2763 = vmatmul.mubr.bf16.gmra.mrb[0].mxu0 %v2656
  %v2764 = vpop.f32.mrb[0].mxu0
  %v2765 = vadd.f32 0.0, %v2764
  %v2766 = vpop.f32.mrb[0].mxu0
  %v2767 = vpop.f32.mrb[0].mxu0
  %v2768 = vadd.f32 0.0, %v2767
  %v2769 = vpop.f32.mrb[0].mxu0
  %2770 = vdwg.mxu0
  %v2787 = vunpack.c.l.b16 %v2635
  %v2788 = vunpack.c.l.b16 %v2636
  %v2789 = vunpack.c.l.b16 %v2637
  %v2790 = vunpack.c.l.b16 %v2638
  %v2791 = vunpack.c.l.b16 %v2639
  %v2792 = vunpack.c.l.b16 %v2640
  %v2793 = vunpack.c.l.b16 %v2641
  %v2794 = vunpack.c.l.b16 %v2642
  %v2795 = vunpack.c.l.b16 %v2643
  %v2796 = vunpack.c.l.b16 %v2644
  %v2797 = vunpack.c.l.b16 %v2645
  %v2798 = vunpack.c.l.b16 %v2646
  %v2799 = vunpack.c.l.b16 %v2647
  %v2800 = vunpack.c.l.b16 %v2648
  %v2801 = vunpack.c.l.b16 %v2649
  %v2802 = vunpack.c.l.b16 %v2650
  %v2803 = vpack.c.b16 %v2788, %v2787
  %v2804 = vpack.c.b16 %v2790, %v2789
  %v2805 = vpack.c.b16 %v2792, %v2791
  %v2806 = vpack.c.b16 %v2794, %v2793
  %v2807 = vpack.c.b16 %v2796, %v2795
  %v2808 = vpack.c.b16 %v2798, %v2797
  %v2809 = vpack.c.b16 %v2800, %v2799
  %v2810 = vpack.c.b16 %v2802, %v2801
  %2819 = vmatprep.subr.bf16.mxu0 0
  %2820 = vmatpush1.bf16.msra.mxu0 %v2803
  %2821 = vmatprep.subr.bf16.mxu0 0
  %2822 = vmatpush1.bf16.msra.mxu0 %v2804
  %2823 = vmatprep.subr.bf16.mxu0 0
  %2824 = vmatpush1.bf16.msra.mxu0 %v2805
  %2825 = vmatprep.subr.bf16.mxu0 0
  %2826 = vmatpush1.bf16.msra.mxu0 %v2806
  %2827 = vmatprep.subr.bf16.mxu0 0
  %2828 = vmatpush1.bf16.msra.mxu0 %v2807
  %2829 = vmatprep.subr.bf16.mxu0 0
  %2830 = vmatpush1.bf16.msra.mxu0 %v2808
  %2831 = vmatprep.subr.bf16.mxu0 0
  %2832 = vmatpush1.bf16.msra.mxu0 %v2809
  %2833 = vmatprep.subr.bf16.mxu0 0
  %2834 = vmatpush1.bf16.msra.mxu0 %v2810
  %2835 = vmatprep.subr.bf16.mxu0 0
  %2836 = vmatpush1.bf16.msra.mxu0 0
  %2837 = vmatprep.subr.bf16.mxu0 0
  %2838 = vmatpush1.bf16.msra.mxu0 0
  %2839 = vmatprep.subr.bf16.mxu0 0
  %2840 = vmatpush1.bf16.msra.mxu0 0
  %2841 = vmatprep.subr.bf16.mxu0 0
  %2842 = vmatpush1.bf16.msra.mxu0 0
  %2843 = vmatprep.subr.bf16.mxu0 0
  %2844 = vmatpush1.bf16.msra.mxu0 0
  %2845 = vmatprep.subr.bf16.mxu0 0
  %2846 = vmatpush1.bf16.msra.mxu0 0
  %2847 = vmatprep.subr.bf16.mxu0 0
  %2848 = vmatpush1.bf16.msra.mxu0 0
  %2849 = vmatprep.subr.bf16.mxu0 0
  %2850 = vmatpush1.bf16.msra.mxu0 0
  %2851 = vmatprep.mubr.bf16.mxu0 0
  %2852 = vmatmul.mubr.bf16.gmra.mrb[0].mxu0 %v2633
  %v2853 = vpop.f32.mrb[0].mxu0
  %v2854 = vadd.f32 %v2757, %v2853
  %v2855 = vpop.f32.mrb[0].mxu0
  %v2856 = vpop.f32.mrb[0].mxu0
  %v2857 = vadd.f32 %v2760, %v2856
  %v2858 = vpop.f32.mrb[0].mxu0
  %2859 = vmatprep.mubr.bf16.mxu0 0
  %2860 = vmatmul.mubr.bf16.gmra.mrb[0].mxu0 %v2634
  %v2861 = vpop.f32.mrb[0].mxu0
  %v2862 = vadd.f32 %v2765, %v2861
  %v2863 = vpop.f32.mrb[0].mxu0
  %v2864 = vpop.f32.mrb[0].mxu0
  %v2865 = vadd.f32 %v2768, %v2864
  %v2866 = vpop.f32.mrb[0].mxu0
  %2867 = vdwg.mxu0
  %v2868 = vld [vmem:[#allocation3 + $0x2] sm:$0xff]
  %v2869 = vld [vmem:[#allocation3 + $0xa] sm:$0xff]
  %v2870 = vld [vmem:[#allocation3 + $0x14] sm:$0xff]
  %v2871 = vld [vmem:[#allocation3 + $0x1c] sm:$0xff]
  %v2872 = vpack.c.bf16 %v2869, %v2868
  %v2873 = vpack.c.bf16 %v2871, %v2870
  %s2874 = scalar_lea.vmem %s4, 128
  %v2875 = vld [vmem:[%s2874] sm:$0xf]
  %v2876 = vld [vmem:[%s2874 + $0x4] sm:$0xf]
  %v2877 = vld [vmem:[%s2874 + $0x8] sm:$0xf]
  %v2878 = vld [vmem:[%s2874 + $0xc] sm:$0xf]
  %v2879 = vld [vmem:[%s2874 + $0x10] sm:$0xf]
  %v2880 = vld [vmem:[%s2874 + $0x14] sm:$0xf]
  %v2881 = vld [vmem:[%s2874 + $0x18] sm:$0xf]
  %v2882 = vld [vmem:[%s2874 + $0x1c] sm:$0xf]
  %v2883 = vld [vmem:[%s2874 + $0x20] sm:$0xf]
  %v2884 = vld [vmem:[%s2874 + $0x24] sm:$0xf]
  %v2885 = vld [vmem:[%s2874 + $0x28] sm:$0xf]
  %v2886 = vld [vmem:[%s2874 + $0x2c] sm:$0xf]
  %v2887 = vld [vmem:[%s2874 + $0x30] sm:$0xf]
  %v2888 = vld [vmem:[%s2874 + $0x34] sm:$0xf]
  %v2889 = vld [vmem:[%s2874 + $0x38] sm:$0xf]
  %v2890 = vld [vmem:[%s2874 + $0x3c] sm:$0xf]
  %v2907 = vunpack.c.l.b16 %v2875
  %v2908 = vunpack.c.l.b16 %v2876
  %v2909 = vunpack.c.l.b16 %v2877
  %v2910 = vunpack.c.l.b16 %v2878
  %v2911 = vunpack.c.l.b16 %v2879
  %v2912 = vunpack.c.l.b16 %v2880
  %v2913 = vunpack.c.l.b16 %v2881
  %v2914 = vunpack.c.l.b16 %v2882
  %v2915 = vunpack.c.l.b16 %v2883
  %v2916 = vunpack.c.l.b16 %v2884
  %v2917 = vunpack.c.l.b16 %v2885
  %v2918 = vunpack.c.l.b16 %v2886
  %v2919 = vunpack.c.l.b16 %v2887
  %v2920 = vunpack.c.l.b16 %v2888
  %v2921 = vunpack.c.l.b16 %v2889
  %v2922 = vunpack.c.l.b16 %v2890
  %v2923 = vpack.c.b16 %v2908, %v2907
  %v2924 = vpack.c.b16 %v2910, %v2909
  %v2925 = vpack.c.b16 %v2912, %v2911
  %v2926 = vpack.c.b16 %v2914, %v2913
  %v2927 = vpack.c.b16 %v2916, %v2915
  %v2928 = vpack.c.b16 %v2918, %v2917
  %v2929 = vpack.c.b16 %v2920, %v2919
  %v2930 = vpack.c.b16 %v2922, %v2921
  %2939 = vmatprep.subr.bf16.mxu0 0
  %2940 = vmatpush1.bf16.msra.mxu0 %v2923
  %2941 = vmatprep.subr.bf16.mxu0 0
  %2942 = vmatpush1.bf16.msra.mxu0 %v2924
  %2943 = vmatprep.subr.bf16.mxu0 0
  %2944 = vmatpush1.bf16.msra.mxu0 %v2925
  %2945 = vmatprep.subr.bf16.mxu0 0
  %2946 = vmatpush1.bf16.msra.mxu0 %v2926
  %2947 = vmatprep.subr.bf16.mxu0 0
  %2948 = vmatpush1.bf16.msra.mxu0 %v2927
  %2949 = vmatprep.subr.bf16.mxu0 0
  %2950 = vmatpush1.bf16.msra.mxu0 %v2928
  %2951 = vmatprep.subr.bf16.mxu0 0
  %2952 = vmatpush1.bf16.msra.mxu0 %v2929
  %2953 = vmatprep.subr.bf16.mxu0 0
  %2954 = vmatpush1.bf16.msra.mxu0 %v2930
  %2955 = vmatprep.subr.bf16.mxu0 0
  %2956 = vmatpush1.bf16.msra.mxu0 0
  %2957 = vmatprep.subr.bf16.mxu0 0
  %2958 = vmatpush1.bf16.msra.mxu0 0
  %2959 = vmatprep.subr.bf16.mxu0 0
  %2960 = vmatpush1.bf16.msra.mxu0 0
  %2961 = vmatprep.subr.bf16.mxu0 0
  %2962 = vmatpush1.bf16.msra.mxu0 0
  %2963 = vmatprep.subr.bf16.mxu0 0
  %2964 = vmatpush1.bf16.msra.mxu0 0
  %2965 = vmatprep.subr.bf16.mxu0 0
  %2966 = vmatpush1.bf16.msra.mxu0 0
  %2967 = vmatprep.subr.bf16.mxu0 0
  %2968 = vmatpush1.bf16.msra.mxu0 0
  %2969 = vmatprep.subr.bf16.mxu0 0
  %2970 = vmatpush1.bf16.msra.mxu0 0
  %2971 = vmatprep.mubr.bf16.mxu0 0
  %2972 = vmatmul.mubr.bf16.gmra.mrb[0].mxu0 %v2872
  %v2973 = vpop.f32.mrb[0].mxu0
  %v2974 = vadd.f32 0.0, %v2973
  %v2975 = vpop.f32.mrb[0].mxu0
  %v2976 = vpop.f32.mrb[0].mxu0
  %v2977 = vadd.f32 0.0, %v2976
  %v2978 = vpop.f32.mrb[0].mxu0
  %2979 = vmatprep.mubr.bf16.mxu0 0
  %2980 = vmatmul.mubr.bf16.gmra.mrb[0].mxu0 %v2873
  %v2981 = vpop.f32.mrb[0].mxu0
  %v2982 = vadd.f32 0.0, %v2981
  %v2983 = vpop.f32.mrb[0].mxu0
  %v2984 = vpop.f32.mrb[0].mxu0
  %v2985 = vadd.f32 0.0, %v2984
  %v2986 = vpop.f32.mrb[0].mxu0
  %2987 = vdwg.mxu0
  %v2988 = vadd.f32 %v2854, %v2974
  %v2989 = vadd.f32 %v2857, %v2977
  %v2990 = vadd.f32 %v2862, %v2982
  %v2991 = vadd.f32 %v2865, %v2985
  %v2992 = vadd.f32 %v2988, %v2989
  %v2993 = vadd.f32 %v2992, %v2990
  %v2994 = vadd.f32 %v2993, %v2991
  %v2995 = vrot.slane %v2994, 4
  %v2996 = vadd.f32 %v2994, %v2995
  %v2997 = vrot.slane %v2996, 2
  %v2998 = vadd.f32 %v2996, %v2997
  %v2999 = vrot.slane %v2998, 1
  %v3000 = vadd.f32 %v2998, %v2999
  %3001 = vmatprep.subr.mxu0 0.0
  %3002 = vmatpush1.msra.mxu0 %v273
  %3003 = vmatprep.subr.mxu0 0.0
  %3004 = vmatpush1.msra.mxu0 %v274
  %3005 = vmatprep.subr.mxu0 0.0
  %3006 = vmatpush1.msra.mxu0 %v275
  %3007 = vmatprep.subr.mxu0 0.0
  %3008 = vmatpush1.msra.mxu0 %v276
  %3009 = vmatprep.subr.mxu0 0.0
  %3010 = vmatpush1.msra.mxu0 %v277
  %3011 = vmatprep.subr.mxu0 0.0
  %3012 = vmatpush1.msra.mxu0 %v278
  %3013 = vmatprep.subr.mxu0 0.0
  %3014 = vmatpush1.msra.mxu0 %v279
  %3015 = vmatprep.subr.mxu0 0.0
  %3016 = vmatpush1.msra.mxu0 %v280
  %3017 = vmatprep.subr.mxu0 0.0
  %3018 = vmatpush1.msra.mxu0 %v281
  %3019 = vmatprep.subr.mxu0 0.0
  %3020 = vmatpush1.msra.mxu0 %v282
  %3021 = vmatprep.subr.mxu0 0.0
  %3022 = vmatpush1.msra.mxu0 %v283
  %3023 = vmatprep.subr.mxu0 0.0
  %3024 = vmatpush1.msra.mxu0 %v284
  %3025 = vmatprep.subr.mxu0 0.0
  %3026 = vmatpush1.msra.mxu0 %v285
  %3027 = vmatprep.subr.mxu0 0.0
  %3028 = vmatpush1.msra.mxu0 %v286
  %3029 = vmatprep.subr.mxu0 0.0
  %3030 = vmatpush1.msra.mxu0 %v287
  %3031 = vmatprep.subr.mxu0 0.0
  %3032 = vmatpush1.msra.mxu0 %v288
  %3033 = vmatprep.subr.mxu0 0.0
  %3034 = vmatpush1.msra.mxu0 0.0
  %3035 = vmatprep.subr.mxu0 0.0
  %3036 = vmatpush1.msra.mxu0 0.0
  %3037 = vmatprep.subr.mxu0 0.0
  %3038 = vmatpush1.msra.mxu0 0.0
  %3039 = vmatprep.subr.mxu0 0.0
  %3040 = vmatpush1.msra.mxu0 0.0
  %3041 = vmatprep.subr.mxu0 0.0
  %3042 = vmatpush1.msra.mxu0 0.0
  %3043 = vmatprep.subr.mxu0 0.0
  %3044 = vmatpush1.msra.mxu0 0.0
  %3045 = vmatprep.subr.mxu0 0.0
  %3046 = vmatpush1.msra.mxu0 0.0
  %3047 = vmatprep.subr.mxu0 0.0
  %3048 = vmatpush1.msra.mxu0 0.0
  %3049 = vmatprep.subr.mxu0 0.0
  %3050 = vmatpush1.msra.mxu0 0.0
  %3051 = vmatprep.subr.mxu0 0.0
  %3052 = vmatpush1.msra.mxu0 0.0
  %3053 = vmatprep.subr.mxu0 0.0
  %3054 = vmatpush1.msra.mxu0 0.0
  %3055 = vmatprep.subr.mxu0 0.0
  %3056 = vmatpush1.msra.mxu0 0.0
  %3057 = vmatprep.subr.mxu0 0.0
  %3058 = vmatpush1.msra.mxu0 0.0
  %3059 = vmatprep.subr.mxu0 0.0
  %3060 = vmatpush1.msra.mxu0 0.0
  %3061 = vmatprep.subr.mxu0 0.0
  %3062 = vmatpush1.msra.mxu0 0.0
  %3063 = vmatprep.subr.mxu0 0.0
  %3064 = vmatpush1.msra.mxu0 0.0
  %3065 = vmatprep.mubr.f32.mxu0 0.0
  %3066 = vmatmul.mubr.f32.gmra.mrb[0].mxu0 %v3000
  %v3067 = vpop.f32.mrb[0].mxu0
  %v3068 = vadd.f32 0.0, %v3067
  %v3069 = vpop.f32.mrb[0].mxu0
  %3070 = vdwg.mxu0
  %v3071 = vmul.f32 %v3068, 0.001953125
  %v3073 = vsel %vm694, %v3071, 0
  %3075 = vmatprep.subr.mxu0 0.0
  %3076 = vmatpush1.msra.mxu0 %v303
  %3077 = vmatprep.subr.mxu0 0.0
  %3078 = vmatpush1.msra.mxu0 0.0
  %3079 = vmatprep.subr.mxu0 0.0
  %3080 = vmatpush1.msra.mxu0 0.0
  %3081 = vmatprep.subr.mxu0 0.0
  %3082 = vmatpush1.msra.mxu0 0.0
  %3083 = vmatprep.subr.mxu0 0.0
  %3084 = vmatpush1.msra.mxu0 0.0
  %3085 = vmatprep.subr.mxu0 0.0
  %3086 = vmatpush1.msra.mxu0 0.0
  %3087 = vmatprep.subr.mxu0 0.0
  %3088 = vmatpush1.msra.mxu0 0.0
  %3089 = vmatprep.subr.mxu0 0.0
  %3090 = vmatpush1.msra.mxu0 0.0
  %3091 = vmatprep.subr.mxu0 0.0
  %3092 = vmatpush1.msra.mxu0 0.0
  %3093 = vmatprep.subr.mxu0 0.0
  %3094 = vmatpush1.msra.mxu0 0.0
  %3095 = vmatprep.subr.mxu0 0.0
  %3096 = vmatpush1.msra.mxu0 0.0
  %3097 = vmatprep.subr.mxu0 0.0
  %3098 = vmatpush1.msra.mxu0 0.0
  %3099 = vmatprep.subr.mxu0 0.0
  %3100 = vmatpush1.msra.mxu0 0.0
  %3101 = vmatprep.subr.mxu0 0.0
  %3102 = vmatpush1.msra.mxu0 0.0
  %3103 = vmatprep.subr.mxu0 0.0
  %3104 = vmatpush1.msra.mxu0 0.0
  %3105 = vmatprep.subr.mxu0 0.0
  %3106 = vmatpush1.msra.mxu0 0.0
  %3107 = vmatprep.subr.mxu0 0.0
  %3108 = vmatpush1.msra.mxu0 0.0
  %3109 = vmatprep.subr.mxu0 0.0
  %3110 = vmatpush1.msra.mxu0 0.0
  %3111 = vmatprep.subr.mxu0 0.0
  %3112 = vmatpush1.msra.mxu0 0.0
  %3113 = vmatprep.subr.mxu0 0.0
  %3114 = vmatpush1.msra.mxu0 0.0
  %3115 = vmatprep.subr.mxu0 0.0
  %3116 = vmatpush1.msra.mxu0 0.0
  %3117 = vmatprep.subr.mxu0 0.0
  %3118 = vmatpush1.msra.mxu0 0.0
  %3119 = vmatprep.subr.mxu0 0.0
  %3120 = vmatpush1.msra.mxu0 0.0
  %3121 = vmatprep.subr.mxu0 0.0
  %3122 = vmatpush1.msra.mxu0 0.0
  %3123 = vmatprep.subr.mxu0 0.0
  %3124 = vmatpush1.msra.mxu0 0.0
  %3125 = vmatprep.subr.mxu0 0.0
  %3126 = vmatpush1.msra.mxu0 0.0
  %3127 = vmatprep.subr.mxu0 0.0
  %3128 = vmatpush1.msra.mxu0 0.0
  %3129 = vmatprep.subr.mxu0 0.0
  %3130 = vmatpush1.msra.mxu0 0.0
  %3131 = vmatprep.subr.mxu0 0.0
  %3132 = vmatpush1.msra.mxu0 0.0
  %3133 = vmatprep.subr.mxu0 0.0
  %3134 = vmatpush1.msra.mxu0 0.0
  %3135 = vmatprep.subr.mxu0 0.0
  %3136 = vmatpush1.msra.mxu0 0.0
  %3137 = vmatprep.subr.mxu0 0.0
  %3138 = vmatpush1.msra.mxu0 0.0
  %3139 = vmatprep.mubr.f32.mxu0 0.0
  %3140 = vmatmul.mubr.f32.gmra.mrb[0].mxu0 %v3073
  %v3141 = vpop.f32.mrb[0].mxu0
  %v3142 = vadd.f32 0.0, %v3141
  %v3143 = vpop.f32.mrb[0].mxu0
  %3144 = vdwg.mxu0
  %v3145 = vlaneseq
  %v3146 = vshrl.u32 %v3145, 7
  %v3147 = vsub.s32 0, %v3146
  %v3148 = vrot.slane %v3142, %v3147
  %v3149 = vsub.f32 %v2988, %v3148
  %v3150 = vsub.f32 %v2989, %v3148
  %v3151 = vsub.f32 %v2990, %v3148
  %v3152 = vsub.f32 %v2991, %v3148
  %v3153 = vmul.f32 %v3149, %v3149
  %v3154 = vmul.f32 %v3150, %v3150
  %v3155 = vmul.f32 %v3151, %v3151
  %v3156 = vmul.f32 %v3152, %v3152
  %v3157 = vadd.f32 %v3153, %v3154
  %v3158 = vadd.f32 %v3157, %v3155
  %v3159 = vadd.f32 %v3158, %v3156
  %v3160 = vrot.slane %v3159, 4
  %v3161 = vadd.f32 %v3159, %v3160
  %v3162 = vrot.slane %v3161, 2
  %v3163 = vadd.f32 %v3161, %v3162
  %v3164 = vrot.slane %v3163, 1
  %v3165 = vadd.f32 %v3163, %v3164
  %3166 = vmatprep.subr.mxu0 0.0
  %3167 = vmatpush1.msra.mxu0 %v273
  %3168 = vmatprep.subr.mxu0 0.0
  %3169 = vmatpush1.msra.mxu0 %v274
  %3170 = vmatprep.subr.mxu0 0.0
  %3171 = vmatpush1.msra.mxu0 %v275
  %3172 = vmatprep.subr.mxu0 0.0
  %3173 = vmatpush1.msra.mxu0 %v276
  %3174 = vmatprep.subr.mxu0 0.0
  %3175 = vmatpush1.msra.mxu0 %v277
  %3176 = vmatprep.subr.mxu0 0.0
  %3177 = vmatpush1.msra.mxu0 %v278
  %3178 = vmatprep.subr.mxu0 0.0
  %3179 = vmatpush1.msra.mxu0 %v279
  %3180 = vmatprep.subr.mxu0 0.0
  %3181 = vmatpush1.msra.mxu0 %v280
  %3182 = vmatprep.subr.mxu0 0.0
  %3183 = vmatpush1.msra.mxu0 %v281
  %3184 = vmatprep.subr.mxu0 0.0
  %3185 = vmatpush1.msra.mxu0 %v282
  %3186 = vmatprep.subr.mxu0 0.0
  %3187 = vmatpush1.msra.mxu0 %v283
  %3188 = vmatprep.subr.mxu0 0.0
  %3189 = vmatpush1.msra.mxu0 %v284
  %3190 = vmatprep.subr.mxu0 0.0
  %3191 = vmatpush1.msra.mxu0 %v285
  %3192 = vmatprep.subr.mxu0 0.0
  %3193 = vmatpush1.msra.mxu0 %v286
  %3194 = vmatprep.subr.mxu0 0.0
  %3195 = vmatpush1.msra.mxu0 %v287
  %3196 = vmatprep.subr.mxu0 0.0
  %3197 = vmatpush1.msra.mxu0 %v288
  %3198 = vmatprep.subr.mxu0 0.0
  %3199 = vmatpush1.msra.mxu0 0.0
  %3200 = vmatprep.subr.mxu0 0.0
  %3201 = vmatpush1.msra.mxu0 0.0
  %3202 = vmatprep.subr.mxu0 0.0
  %3203 = vmatpush1.msra.mxu0 0.0
  %3204 = vmatprep.subr.mxu0 0.0
  %3205 = vmatpush1.msra.mxu0 0.0
  %3206 = vmatprep.subr.mxu0 0.0
  %3207 = vmatpush1.msra.mxu0 0.0
  %3208 = vmatprep.subr.mxu0 0.0
  %3209 = vmatpush1.msra.mxu0 0.0
  %3210 = vmatprep.subr.mxu0 0.0
  %3211 = vmatpush1.msra.mxu0 0.0
  %3212 = vmatprep.subr.mxu0 0.0
  %3213 = vmatpush1.msra.mxu0 0.0
  %3214 = vmatprep.subr.mxu0 0.0
  %3215 = vmatpush1.msra.mxu0 0.0
  %3216 = vmatprep.subr.mxu0 0.0
  %3217 = vmatpush1.msra.mxu0 0.0
  %3218 = vmatprep.subr.mxu0 0.0
  %3219 = vmatpush1.msra.mxu0 0.0
  %3220 = vmatprep.subr.mxu0 0.0
  %3221 = vmatpush1.msra.mxu0 0.0
  %3222 = vmatprep.subr.mxu0 0.0
  %3223 = vmatpush1.msra.mxu0 0.0
  %3224 = vmatprep.subr.mxu0 0.0
  %3225 = vmatpush1.msra.mxu0 0.0
  %3226 = vmatprep.subr.mxu0 0.0
  %3227 = vmatpush1.msra.mxu0 0.0
  %3228 = vmatprep.subr.mxu0 0.0
  %3229 = vmatpush1.msra.mxu0 0.0
  %3230 = vmatprep.mubr.f32.mxu0 0.0
  %3231 = vmatmul.mubr.f32.gmra.mrb[0].mxu0 %v3165
  %v3232 = vpop.f32.mrb[0].mxu0
  %v3233 = vadd.f32 0.0, %v3232
  %v3234 = vpop.f32.mrb[0].mxu0
  %3235 = vdwg.mxu0
  %v3236 = vmul.f32 %v3233, 0.001953125
  %s3237 = scalar_lea.vmem %s6, 3
  %v3238 = vld [vmem:[%s3237] sm:$0x1]
  %v3239 = vadd.f32 %v3236, 1e-05
  %v3240 = vrsqrt.pop %v3239
  %v3241 = vmul.f32 %v3238, %v3240
  %v3243 = vsel %vm694, %v3241, 0
  %3245 = vmatprep.subr.mxu0 0.0
  %3246 = vmatpush1.msra.mxu0 %v303
  %3247 = vmatprep.subr.mxu0 0.0
  %3248 = vmatpush1.msra.mxu0 0.0
  %3249 = vmatprep.subr.mxu0 0.0
  %3250 = vmatpush1.msra.mxu0 0.0
  %3251 = vmatprep.subr.mxu0 0.0
  %3252 = vmatpush1.msra.mxu0 0.0
  %3253 = vmatprep.subr.mxu0 0.0
  %3254 = vmatpush1.msra.mxu0 0.0
  %3255 = vmatprep.subr.mxu0 0.0
  %3256 = vmatpush1.msra.mxu0 0.0
  %3257 = vmatprep.subr.mxu0 0.0
  %3258 = vmatpush1.msra.mxu0 0.0
  %3259 = vmatprep.subr.mxu0 0.0
  %3260 = vmatpush1.msra.mxu0 0.0
  %3261 = vmatprep.subr.mxu0 0.0
  %3262 = vmatpush1.msra.mxu0 0.0
  %3263 = vmatprep.subr.mxu0 0.0
  %3264 = vmatpush1.msra.mxu0 0.0
  %3265 = vmatprep.subr.mxu0 0.0
  %3266 = vmatpush1.msra.mxu0 0.0
  %3267 = vmatprep.subr.mxu0 0.0
  %3268 = vmatpush1.msra.mxu0 0.0
  %3269 = vmatprep.subr.mxu0 0.0
  %3270 = vmatpush1.msra.mxu0 0.0
  %3271 = vmatprep.subr.mxu0 0.0
  %3272 = vmatpush1.msra.mxu0 0.0
  %3273 = vmatprep.subr.mxu0 0.0
  %3274 = vmatpush1.msra.mxu0 0.0
  %3275 = vmatprep.subr.mxu0 0.0
  %3276 = vmatpush1.msra.mxu0 0.0
  %3277 = vmatprep.subr.mxu0 0.0
  %3278 = vmatpush1.msra.mxu0 0.0
  %3279 = vmatprep.subr.mxu0 0.0
  %3280 = vmatpush1.msra.mxu0 0.0
  %3281 = vmatprep.subr.mxu0 0.0
  %3282 = vmatpush1.msra.mxu0 0.0
  %3283 = vmatprep.subr.mxu0 0.0
  %3284 = vmatpush1.msra.mxu0 0.0
  %3285 = vmatprep.subr.mxu0 0.0
  %3286 = vmatpush1.msra.mxu0 0.0
  %3287 = vmatprep.subr.mxu0 0.0
  %3288 = vmatpush1.msra.mxu0 0.0
  %3289 = vmatprep.subr.mxu0 0.0
  %3290 = vmatpush1.msra.mxu0 0.0
  %3291 = vmatprep.subr.mxu0 0.0
  %3292 = vmatpush1.msra.mxu0 0.0
  %3293 = vmatprep.subr.mxu0 0.0
  %3294 = vmatpush1.msra.mxu0 0.0
  %3295 = vmatprep.subr.mxu0 0.0
  %3296 = vmatpush1.msra.mxu0 0.0
  %3297 = vmatprep.subr.mxu0 0.0
  %3298 = vmatpush1.msra.mxu0 0.0
  %3299 = vmatprep.subr.mxu0 0.0
  %3300 = vmatpush1.msra.mxu0 0.0
  %3301 = vmatprep.subr.mxu0 0.0
  %3302 = vmatpush1.msra.mxu0 0.0
  %3303 = vmatprep.subr.mxu0 0.0
  %3304 = vmatpush1.msra.mxu0 0.0
  %3305 = vmatprep.subr.mxu0 0.0
  %3306 = vmatpush1.msra.mxu0 0.0
  %3307 = vmatprep.subr.mxu0 0.0
  %3308 = vmatpush1.msra.mxu0 0.0
  %3309 = vmatprep.mubr.f32.mxu0 0.0
  %3310 = vmatmul.mubr.f32.gmra.mrb[0].mxu0 %v3243
  %v3311 = vpop.f32.mrb[0].mxu0
  %v3312 = vadd.f32 0.0, %v3311
  %v3313 = vpop.f32.mrb[0].mxu0
  %3314 = vdwg.mxu0
  %v3315 = vlaneseq
  %v3316 = vshrl.u32 %v3315, 7
  %v3317 = vsub.s32 0, %v3316
  %v3318 = vrot.slane %v3312, %v3317
  %v3319 = vmul.f32 %v3149, %v3318
  %v3320 = vmul.f32 %v3150, %v3318
  %v3321 = vmul.f32 %v3151, %v3318
  %v3322 = vmul.f32 %v3152, %v3318
  %s3323 = scalar_lea.vmem %s7, 3
  %v3324 = vld [vmem:[%s3323] sm:$0x1]
  %v3326 = vsel %vm694, %v3324, 0
  %3328 = vmatprep.subr.mxu0 0.0
  %3329 = vmatpush1.msra.mxu0 %v303
  %3330 = vmatprep.subr.mxu0 0.0
  %3331 = vmatpush1.msra.mxu0 0.0
  %3332 = vmatprep.subr.mxu0 0.0
  %3333 = vmatpush1.msra.mxu0 0.0
  %3334 = vmatprep.subr.mxu0 0.0
  %3335 = vmatpush1.msra.mxu0 0.0
  %3336 = vmatprep.subr.mxu0 0.0
  %3337 = vmatpush1.msra.mxu0 0.0
  %3338 = vmatprep.subr.mxu0 0.0
  %3339 = vmatpush1.msra.mxu0 0.0
  %3340 = vmatprep.subr.mxu0 0.0
  %3341 = vmatpush1.msra.mxu0 0.0
  %3342 = vmatprep.subr.mxu0 0.0
  %3343 = vmatpush1.msra.mxu0 0.0
  %3344 = vmatprep.subr.mxu0 0.0
  %3345 = vmatpush1.msra.mxu0 0.0
  %3346 = vmatprep.subr.mxu0 0.0
  %3347 = vmatpush1.msra.mxu0 0.0
  %3348 = vmatprep.subr.mxu0 0.0
  %3349 = vmatpush1.msra.mxu0 0.0
  %3350 = vmatprep.subr.mxu0 0.0
  %3351 = vmatpush1.msra.mxu0 0.0
  %3352 = vmatprep.subr.mxu0 0.0
  %3353 = vmatpush1.msra.mxu0 0.0
  %3354 = vmatprep.subr.mxu0 0.0
  %3355 = vmatpush1.msra.mxu0 0.0
  %3356 = vmatprep.subr.mxu0 0.0
  %3357 = vmatpush1.msra.mxu0 0.0
  %3358 = vmatprep.subr.mxu0 0.0
  %3359 = vmatpush1.msra.mxu0 0.0
  %3360 = vmatprep.subr.mxu0 0.0
  %3361 = vmatpush1.msra.mxu0 0.0
  %3362 = vmatprep.subr.mxu0 0.0
  %3363 = vmatpush1.msra.mxu0 0.0
  %3364 = vmatprep.subr.mxu0 0.0
  %3365 = vmatpush1.msra.mxu0 0.0
  %3366 = vmatprep.subr.mxu0 0.0
  %3367 = vmatpush1.msra.mxu0 0.0
  %3368 = vmatprep.subr.mxu0 0.0
  %3369 = vmatpush1.msra.mxu0 0.0
  %3370 = vmatprep.subr.mxu0 0.0
  %3371 = vmatpush1.msra.mxu0 0.0
  %3372 = vmatprep.subr.mxu0 0.0
  %3373 = vmatpush1.msra.mxu0 0.0
  %3374 = vmatprep.subr.mxu0 0.0
  %3375 = vmatpush1.msra.mxu0 0.0
  %3376 = vmatprep.subr.mxu0 0.0
  %3377 = vmatpush1.msra.mxu0 0.0
  %3378 = vmatprep.subr.mxu0 0.0
  %3379 = vmatpush1.msra.mxu0 0.0
  %3380 = vmatprep.subr.mxu0 0.0
  %3381 = vmatpush1.msra.mxu0 0.0
  %3382 = vmatprep.subr.mxu0 0.0
  %3383 = vmatpush1.msra.mxu0 0.0
  %3384 = vmatprep.subr.mxu0 0.0
  %3385 = vmatpush1.msra.mxu0 0.0
  %3386 = vmatprep.subr.mxu0 0.0
  %3387 = vmatpush1.msra.mxu0 0.0
  %3388 = vmatprep.subr.mxu0 0.0
  %3389 = vmatpush1.msra.mxu0 0.0
  %3390 = vmatprep.subr.mxu0 0.0
  %3391 = vmatpush1.msra.mxu0 0.0
  %3392 = vmatprep.mubr.f32.mxu0 0.0
  %3393 = vmatmul.mubr.f32.gmra.mrb[0].mxu0 %v3326
  %v3394 = vpop.f32.mrb[0].mxu0
  %v3395 = vadd.f32 0.0, %v3394
  %v3396 = vpop.f32.mrb[0].mxu0
  %3397 = vdwg.mxu0
  %v3398 = vlaneseq
  %v3399 = vshrl.u32 %v3398, 7
  %v3400 = vsub.s32 0, %v3399
  %v3401 = vrot.slane %v3395, %v3400
  %v3402 = vadd.f32 %v3319, %v3401
  %v3403 = vadd.f32 %v3320, %v3401
  %v3404 = vadd.f32 %v3321, %v3401
  %v3405 = vadd.f32 %v3322, %v3401
  %v3406 = vadd.f32 %v1035, %v3402
  %v3407 = vadd.f32 %v1036, %v3403
  %v3408 = vadd.f32 %v1037, %v3404
  %v3409 = vadd.f32 %v1038, %v3405
  %3410 = vst [vmem:[#allocation4 + $0x1] sm:$0xff] %v3406
  %3411 = vst [vmem:[#allocation4 + $0x9] sm:$0xff] %v3407
  %3412 = vst [vmem:[#allocation4 + $0x13] sm:$0xff] %v3408
  %3413 = vst [vmem:[#allocation4 + $0x1b] sm:$0xff] %v3409
  %v3414 = vld [vmem:[#allocation4] sm:$0xff]
  %v3415 = vld [vmem:[#allocation4 + $0x8] sm:$0xff]
  %v3416 = vld [vmem:[#allocation4 + $0x12] sm:$0xff]
  %v3417 = vld [vmem:[#allocation4 + $0x1a] sm:$0xff]
  %v3418 = vpack.c.bf16 %v3415, %v3414
  %v3419 = vpack.c.bf16 %v3417, %v3416
  %v3420 = vld [vmem:[%s5] sm:$0xf]
  %v3421 = vld [vmem:[%s5 + $0x4] sm:$0xf]
  %v3422 = vld [vmem:[%s5 + $0x8] sm:$0xf]
  %v3423 = vld [vmem:[%s5 + $0xc] sm:$0xf]
  %v3424 = vld [vmem:[%s5 + $0x10] sm:$0xf]
  %v3425 = vld [vmem:[%s5 + $0x14] sm:$0xf]
  %v3426 = vld [vmem:[%s5 + $0x18] sm:$0xf]
  %v3427 = vld [vmem:[%s5 + $0x1c] sm:$0xf]
  %v3428 = vld [vmem:[%s5 + $0x20] sm:$0xf]
  %v3429 = vld [vmem:[%s5 + $0x24] sm:$0xf]
  %v3430 = vld [vmem:[%s5 + $0x28] sm:$0xf]
  %v3431 = vld [vmem:[%s5 + $0x2c] sm:$0xf]
  %v3432 = vld [vmem:[%s5 + $0x30] sm:$0xf]
  %v3433 = vld [vmem:[%s5 + $0x34] sm:$0xf]
  %v3434 = vld [vmem:[%s5 + $0x38] sm:$0xf]
  %v3435 = vld [vmem:[%s5 + $0x3c] sm:$0xf]
  %v3436 = vld [vmem:[#allocation4 + $0x1] sm:$0xff]
  %v3437 = vld [vmem:[#allocation4 + $0x9] sm:$0xff]
  %v3438 = vld [vmem:[#allocation4 + $0x13] sm:$0xff]
  %v3439 = vld [vmem:[#allocation4 + $0x1b] sm:$0xff]
  %v3440 = vpack.c.bf16 %v3437, %v3436
  %v3441 = vpack.c.bf16 %v3439, %v3438
  %s3442 = scalar_lea.vmem %s5, 64
  %v3443 = vld [vmem:[%s3442] sm:$0xf]
  %v3444 = vld [vmem:[%s3442 + $0x4] sm:$0xf]
  %v3445 = vld [vmem:[%s3442 + $0x8] sm:$0xf]
  %v3446 = vld [vmem:[%s3442 + $0xc] sm:$0xf]
  %v3447 = vld [vmem:[%s3442 + $0x10] sm:$0xf]
  %v3448 = vld [vmem:[%s3442 + $0x14] sm:$0xf]
  %v3449 = vld [vmem:[%s3442 + $0x18] sm:$0xf]
  %v3450 = vld [vmem:[%s3442 + $0x1c] sm:$0xf]
  %v3451 = vld [vmem:[%s3442 + $0x20] sm:$0xf]
  %v3452 = vld [vmem:[%s3442 + $0x24] sm:$0xf]
  %v3453 = vld [vmem:[%s3442 + $0x28] sm:$0xf]
  %v3454 = vld [vmem:[%s3442 + $0x2c] sm:$0xf]
  %v3455 = vld [vmem:[%s3442 + $0x30] sm:$0xf]
  %v3456 = vld [vmem:[%s3442 + $0x34] sm:$0xf]
  %v3457 = vld [vmem:[%s3442 + $0x38] sm:$0xf]
  %v3458 = vld [vmem:[%s3442 + $0x3c] sm:$0xf]
  %v3475 = vunpack.c.l.b16 %v3443
  %v3476 = vunpack.c.l.b16 %v3444
  %v3477 = vunpack.c.l.b16 %v3445
  %v3478 = vunpack.c.l.b16 %v3446
  %v3479 = vunpack.c.l.b16 %v3447
  %v3480 = vunpack.c.l.b16 %v3448
  %v3481 = vunpack.c.l.b16 %v3449
  %v3482 = vunpack.c.l.b16 %v3450
  %v3483 = vunpack.c.l.b16 %v3451
  %v3484 = vunpack.c.l.b16 %v3452
  %v3485 = vunpack.c.l.b16 %v3453
  %v3486 = vunpack.c.l.b16 %v3454
  %v3487 = vunpack.c.l.b16 %v3455
  %v3488 = vunpack.c.l.b16 %v3456
  %v3489 = vunpack.c.l.b16 %v3457
  %v3490 = vunpack.c.l.b16 %v3458
  %v3491 = vpack.c.b16 %v3476, %v3475
  %v3492 = vpack.c.b16 %v3478, %v3477
  %v3493 = vpack.c.b16 %v3480, %v3479
  %v3494 = vpack.c.b16 %v3482, %v3481
  %v3495 = vpack.c.b16 %v3484, %v3483
  %v3496 = vpack.c.b16 %v3486, %v3485
  %v3497 = vpack.c.b16 %v3488, %v3487
  %v3498 = vpack.c.b16 %v3490, %v3489
  %3507 = vmatprep.subr.bf16.mxu0 0
  %3508 = vmatpush1.bf16.msra.mxu0 %v3491
  %3509 = vmatprep.subr.bf16.mxu0 0
  %3510 = vmatpush1.bf16.msra.mxu0 %v3492
  %3511 = vmatprep.subr.bf16.mxu0 0
  %3512 = vmatpush1.bf16.msra.mxu0 %v3493
  %3513 = vmatprep.subr.bf16.mxu0 0
  %3514 = vmatpush1.bf16.msra.mxu0 %v3494
  %3515 = vmatprep.subr.bf16.mxu0 0
  %3516 = vmatpush1.bf16.msra.mxu0 %v3495
  %3517 = vmatprep.subr.bf16.mxu0 0
  %3518 = vmatpush1.bf16.msra.mxu0 %v3496
  %3519 = vmatprep.subr.bf16.mxu0 0
  %3520 = vmatpush1.bf16.msra.mxu0 %v3497
  %3521 = vmatprep.subr.bf16.mxu0 0
  %3522 = vmatpush1.bf16.msra.mxu0 %v3498
  %3523 = vmatprep.subr.bf16.mxu0 0
  %3524 = vmatpush1.bf16.msra.mxu0 0
  %3525 = vmatprep.subr.bf16.mxu0 0
  %3526 = vmatpush1.bf16.msra.mxu0 0
  %3527 = vmatprep.subr.bf16.mxu0 0
  %3528 = vmatpush1.bf16.msra.mxu0 0
  %3529 = vmatprep.subr.bf16.mxu0 0
  %3530 = vmatpush1.bf16.msra.mxu0 0
  %3531 = vmatprep.subr.bf16.mxu0 0
  %3532 = vmatpush1.bf16.msra.mxu0 0
  %3533 = vmatprep.subr.bf16.mxu0 0
  %3534 = vmatpush1.bf16.msra.mxu0 0
  %3535 = vmatprep.subr.bf16.mxu0 0
  %3536 = vmatpush1.bf16.msra.mxu0 0
  %3537 = vmatprep.subr.bf16.mxu0 0
  %3538 = vmatpush1.bf16.msra.mxu0 0
  %3539 = vmatprep.mubr.bf16.mxu0 0
  %3540 = vmatmul.mubr.bf16.gmra.mrb[0].mxu0 %v3440
  %v3541 = vpop.f32.mrb[0].mxu0
  %v3542 = vadd.f32 0.0, %v3541
  %v3543 = vpop.f32.mrb[0].mxu0
  %v3544 = vpop.f32.mrb[0].mxu0
  %v3545 = vadd.f32 0.0, %v3544
  %v3546 = vpop.f32.mrb[0].mxu0
  %3547 = vmatprep.mubr.bf16.mxu0 0
  %3548 = vmatmul.mubr.bf16.gmra.mrb[0].mxu0 %v3441
  %v3549 = vpop.f32.mrb[0].mxu0
  %v3550 = vadd.f32 0.0, %v3549
  %v3551 = vpop.f32.mrb[0].mxu0
  %v3552 = vpop.f32.mrb[0].mxu0
  %v3553 = vadd.f32 0.0, %v3552
  %v3554 = vpop.f32.mrb[0].mxu0
  %3555 = vdwg.mxu0
  %v3572 = vunpack.c.l.b16 %v3420
  %v3573 = vunpack.c.l.b16 %v3421
  %v3574 = vunpack.c.l.b16 %v3422
  %v3575 = vunpack.c.l.b16 %v3423
  %v3576 = vunpack.c.l.b16 %v3424
  %v3577 = vunpack.c.l.b16 %v3425
  %v3578 = vunpack.c.l.b16 %v3426
  %v3579 = vunpack.c.l.b16 %v3427
  %v3580 = vunpack.c.l.b16 %v3428
  %v3581 = vunpack.c.l.b16 %v3429
  %v3582 = vunpack.c.l.b16 %v3430
  %v3583 = vunpack.c.l.b16 %v3431
  %v3584 = vunpack.c.l.b16 %v3432
  %v3585 = vunpack.c.l.b16 %v3433
  %v3586 = vunpack.c.l.b16 %v3434
  %v3587 = vunpack.c.l.b16 %v3435
  %v3588 = vpack.c.b16 %v3573, %v3572
  %v3589 = vpack.c.b16 %v3575, %v3574
  %v3590 = vpack.c.b16 %v3577, %v3576
  %v3591 = vpack.c.b16 %v3579, %v3578
  %v3592 = vpack.c.b16 %v3581, %v3580
  %v3593 = vpack.c.b16 %v3583, %v3582
  %v3594 = vpack.c.b16 %v3585, %v3584
  %v3595 = vpack.c.b16 %v3587, %v3586
  %3604 = vmatprep.subr.bf16.mxu0 0
  %3605 = vmatpush1.bf16.msra.mxu0 %v3588
  %3606 = vmatprep.subr.bf16.mxu0 0
  %3607 = vmatpush1.bf16.msra.mxu0 %v3589
  %3608 = vmatprep.subr.bf16.mxu0 0
  %3609 = vmatpush1.bf16.msra.mxu0 %v3590
  %3610 = vmatprep.subr.bf16.mxu0 0
  %3611 = vmatpush1.bf16.msra.mxu0 %v3591
  %3612 = vmatprep.subr.bf16.mxu0 0
  %3613 = vmatpush1.bf16.msra.mxu0 %v3592
  %3614 = vmatprep.subr.bf16.mxu0 0
  %3615 = vmatpush1.bf16.msra.mxu0 %v3593
  %3616 = vmatprep.subr.bf16.mxu0 0
  %3617 = vmatpush1.bf16.msra.mxu0 %v3594
  %3618 = vmatprep.subr.bf16.mxu0 0
  %3619 = vmatpush1.bf16.msra.mxu0 %v3595
  %3620 = vmatprep.subr.bf16.mxu0 0
  %3621 = vmatpush1.bf16.msra.mxu0 0
  %3622 = vmatprep.subr.bf16.mxu0 0
  %3623 = vmatpush1.bf16.msra.mxu0 0
  %3624 = vmatprep.subr.bf16.mxu0 0
  %3625 = vmatpush1.bf16.msra.mxu0 0
  %3626 = vmatprep.subr.bf16.mxu0 0
  %3627 = vmatpush1.bf16.msra.mxu0 0
  %3628 = vmatprep.subr.bf16.mxu0 0
  %3629 = vmatpush1.bf16.msra.mxu0 0
  %3630 = vmatprep.subr.bf16.mxu0 0
  %3631 = vmatpush1.bf16.msra.mxu0 0
  %3632 = vmatprep.subr.bf16.mxu0 0
  %3633 = vmatpush1.bf16.msra.mxu0 0
  %3634 = vmatprep.subr.bf16.mxu0 0
  %3635 = vmatpush1.bf16.msra.mxu0 0
  %3636 = vmatprep.mubr.bf16.mxu0 0
  %3637 = vmatmul.mubr.bf16.gmra.mrb[0].mxu0 %v3418
  %v3638 = vpop.f32.mrb[0].mxu0
  %v3639 = vadd.f32 %v3542, %v3638
  %v3640 = vpop.f32.mrb[0].mxu0
  %v3641 = vpop.f32.mrb[0].mxu0
  %v3642 = vadd.f32 %v3545, %v3641
  %v3643 = vpop.f32.mrb[0].mxu0
  %3644 = vmatprep.mubr.bf16.mxu0 0
  %3645 = vmatmul.mubr.bf16.gmra.mrb[0].mxu0 %v3419
  %v3646 = vpop.f32.mrb[0].mxu0
  %v3647 = vadd.f32 %v3550, %v3646
  %v3648 = vpop.f32.mrb[0].mxu0
  %v3649 = vpop.f32.mrb[0].mxu0
  %v3650 = vadd.f32 %v3553, %v3649
  %v3651 = vpop.f32.mrb[0].mxu0
  %3652 = vdwg.mxu0
  %v3653 = vld [vmem:[#allocation4 + $0x2] sm:$0xff]
  %v3654 = vld [vmem:[#allocation4 + $0xa] sm:$0xff]
  %v3655 = vld [vmem:[#allocation4 + $0x14] sm:$0xff]
  %v3656 = vld [vmem:[#allocation4 + $0x1c] sm:$0xff]
  %v3657 = vpack.c.bf16 %v3654, %v3653
  %v3658 = vpack.c.bf16 %v3656, %v3655
  %s3659 = scalar_lea.vmem %s5, 128
  %v3660 = vld [vmem:[%s3659] sm:$0xf]
  %v3661 = vld [vmem:[%s3659 + $0x4] sm:$0xf]
  %v3662 = vld [vmem:[%s3659 + $0x8] sm:$0xf]
  %v3663 = vld [vmem:[%s3659 + $0xc] sm:$0xf]
  %v3664 = vld [vmem:[%s3659 + $0x10] sm:$0xf]
  %v3665 = vld [vmem:[%s3659 + $0x14] sm:$0xf]
  %v3666 = vld [vmem:[%s3659 + $0x18] sm:$0xf]
  %v3667 = vld [vmem:[%s3659 + $0x1c] sm:$0xf]
  %v3668 = vld [vmem:[%s3659 + $0x20] sm:$0xf]
  %v3669 = vld [vmem:[%s3659 + $0x24] sm:$0xf]
  %v3670 = vld [vmem:[%s3659 + $0x28] sm:$0xf]
  %v3671 = vld [vmem:[%s3659 + $0x2c] sm:$0xf]
  %v3672 = vld [vmem:[%s3659 + $0x30] sm:$0xf]
  %v3673 = vld [vmem:[%s3659 + $0x34] sm:$0xf]
  %v3674 = vld [vmem:[%s3659 + $0x38] sm:$0xf]
  %v3675 = vld [vmem:[%s3659 + $0x3c] sm:$0xf]
  %v3692 = vunpack.c.l.b16 %v3660
  %v3693 = vunpack.c.l.b16 %v3661
  %v3694 = vunpack.c.l.b16 %v3662
  %v3695 = vunpack.c.l.b16 %v3663
  %v3696 = vunpack.c.l.b16 %v3664
  %v3697 = vunpack.c.l.b16 %v3665
  %v3698 = vunpack.c.l.b16 %v3666
  %v3699 = vunpack.c.l.b16 %v3667
  %v3700 = vunpack.c.l.b16 %v3668
  %v3701 = vunpack.c.l.b16 %v3669
  %v3702 = vunpack.c.l.b16 %v3670
  %v3703 = vunpack.c.l.b16 %v3671
  %v3704 = vunpack.c.l.b16 %v3672
  %v3705 = vunpack.c.l.b16 %v3673
  %v3706 = vunpack.c.l.b16 %v3674
  %v3707 = vunpack.c.l.b16 %v3675
  %v3708 = vpack.c.b16 %v3693, %v3692
  %v3709 = vpack.c.b16 %v3695, %v3694
  %v3710 = vpack.c.b16 %v3697, %v3696
  %v3711 = vpack.c.b16 %v3699, %v3698
  %v3712 = vpack.c.b16 %v3701, %v3700
  %v3713 = vpack.c.b16 %v3703, %v3702
  %v3714 = vpack.c.b16 %v3705, %v3704
  %v3715 = vpack.c.b16 %v3707, %v3706
  %3724 = vmatprep.subr.bf16.mxu0 0
  %3725 = vmatpush1.bf16.msra.mxu0 %v3708
  %3726 = vmatprep.subr.bf16.mxu0 0
  %3727 = vmatpush1.bf16.msra.mxu0 %v3709
  %3728 = vmatprep.subr.bf16.mxu0 0
  %3729 = vmatpush1.bf16.msra.mxu0 %v3710
  %3730 = vmatprep.subr.bf16.mxu0 0
  %3731 = vmatpush1.bf16.msra.mxu0 %v3711
  %3732 = vmatprep.subr.bf16.mxu0 0
  %3733 = vmatpush1.bf16.msra.mxu0 %v3712
  %3734 = vmatprep.subr.bf16.mxu0 0
  %3735 = vmatpush1.bf16.msra.mxu0 %v3713
  %3736 = vmatprep.subr.bf16.mxu0 0
  %3737 = vmatpush1.bf16.msra.mxu0 %v3714
  %3738 = vmatprep.subr.bf16.mxu0 0
  %3739 = vmatpush1.bf16.msra.mxu0 %v3715
  %3740 = vmatprep.subr.bf16.mxu0 0
  %3741 = vmatpush1.bf16.msra.mxu0 0
  %3742 = vmatprep.subr.bf16.mxu0 0
  %3743 = vmatpush1.bf16.msra.mxu0 0
  %3744 = vmatprep.subr.bf16.mxu0 0
  %3745 = vmatpush1.bf16.msra.mxu0 0
  %3746 = vmatprep.subr.bf16.mxu0 0
  %3747 = vmatpush1.bf16.msra.mxu0 0
  %3748 = vmatprep.subr.bf16.mxu0 0
  %3749 = vmatpush1.bf16.msra.mxu0 0
  %3750 = vmatprep.subr.bf16.mxu0 0
  %3751 = vmatpush1.bf16.msra.mxu0 0
  %3752 = vmatprep.subr.bf16.mxu0 0
  %3753 = vmatpush1.bf16.msra.mxu0 0
  %3754 = vmatprep.subr.bf16.mxu0 0
  %3755 = vmatpush1.bf16.msra.mxu0 0
  %3756 = vmatprep.mubr.bf16.mxu0 0
  %3757 = vmatmul.mubr.bf16.gmra.mrb[0].mxu0 %v3657
  %v3758 = vpop.f32.mrb[0].mxu0
  %v3759 = vadd.f32 0.0, %v3758
  %v3760 = vpop.f32.mrb[0].mxu0
  %v3761 = vpop.f32.mrb[0].mxu0
  %v3762 = vadd.f32 0.0, %v3761
  %v3763 = vpop.f32.mrb[0].mxu0
  %3764 = vmatprep.mubr.bf16.mxu0 0
  %3765 = vmatmul.mubr.bf16.gmra.mrb[0].mxu0 %v3658
  %v3766 = vpop.f32.mrb[0].mxu0
  %v3767 = vadd.f32 0.0, %v3766
  %v3768 = vpop.f32.mrb[0].mxu0
  %v3769 = vpop.f32.mrb[0].mxu0
  %v3770 = vadd.f32 0.0, %v3769
  %v3771 = vpop.f32.mrb[0].mxu0
  %3772 = vdwg.mxu0
  %v3773 = vadd.f32 %v3639, %v3759
  %v3774 = vadd.f32 %v3642, %v3762
  %v3775 = vadd.f32 %v3647, %v3767
  %v3776 = vadd.f32 %v3650, %v3770
  %v3777 = vadd.f32 %v3773, %v3774
  %v3778 = vadd.f32 %v3777, %v3775
  %v3779 = vadd.f32 %v3778, %v3776
  %v3780 = vrot.slane %v3779, 4
  %v3781 = vadd.f32 %v3779, %v3780
  %v3782 = vrot.slane %v3781, 2
  %v3783 = vadd.f32 %v3781, %v3782
  %v3784 = vrot.slane %v3783, 1
  %v3785 = vadd.f32 %v3783, %v3784
  %3786 = vmatprep.subr.mxu0 0.0
  %3787 = vmatpush1.msra.mxu0 %v273
  %3788 = vmatprep.subr.mxu0 0.0
  %3789 = vmatpush1.msra.mxu0 %v274
  %3790 = vmatprep.subr.mxu0 0.0
  %3791 = vmatpush1.msra.mxu0 %v275
  %3792 = vmatprep.subr.mxu0 0.0
  %3793 = vmatpush1.msra.mxu0 %v276
  %3794 = vmatprep.subr.mxu0 0.0
  %3795 = vmatpush1.msra.mxu0 %v277
  %3796 = vmatprep.subr.mxu0 0.0
  %3797 = vmatpush1.msra.mxu0 %v278
  %3798 = vmatprep.subr.mxu0 0.0
  %3799 = vmatpush1.msra.mxu0 %v279
  %3800 = vmatprep.subr.mxu0 0.0
  %3801 = vmatpush1.msra.mxu0 %v280
  %3802 = vmatprep.subr.mxu0 0.0
  %3803 = vmatpush1.msra.mxu0 %v281
  %3804 = vmatprep.subr.mxu0 0.0
  %3805 = vmatpush1.msra.mxu0 %v282
  %3806 = vmatprep.subr.mxu0 0.0
  %3807 = vmatpush1.msra.mxu0 %v283
  %3808 = vmatprep.subr.mxu0 0.0
  %3809 = vmatpush1.msra.mxu0 %v284
  %3810 = vmatprep.subr.mxu0 0.0
  %3811 = vmatpush1.msra.mxu0 %v285
  %3812 = vmatprep.subr.mxu0 0.0
  %3813 = vmatpush1.msra.mxu0 %v286
  %3814 = vmatprep.subr.mxu0 0.0
  %3815 = vmatpush1.msra.mxu0 %v287
  %3816 = vmatprep.subr.mxu0 0.0
  %3817 = vmatpush1.msra.mxu0 %v288
  %3818 = vmatprep.subr.mxu0 0.0
  %3819 = vmatpush1.msra.mxu0 0.0
  %3820 = vmatprep.subr.mxu0 0.0
  %3821 = vmatpush1.msra.mxu0 0.0
  %3822 = vmatprep.subr.mxu0 0.0
  %3823 = vmatpush1.msra.mxu0 0.0
  %3824 = vmatprep.subr.mxu0 0.0
  %3825 = vmatpush1.msra.mxu0 0.0
  %3826 = vmatprep.subr.mxu0 0.0
  %3827 = vmatpush1.msra.mxu0 0.0
  %3828 = vmatprep.subr.mxu0 0.0
  %3829 = vmatpush1.msra.mxu0 0.0
  %3830 = vmatprep.subr.mxu0 0.0
  %3831 = vmatpush1.msra.mxu0 0.0
  %3832 = vmatprep.subr.mxu0 0.0
  %3833 = vmatpush1.msra.mxu0 0.0
  %3834 = vmatprep.subr.mxu0 0.0
  %3835 = vmatpush1.msra.mxu0 0.0
  %3836 = vmatprep.subr.mxu0 0.0
  %3837 = vmatpush1.msra.mxu0 0.0
  %3838 = vmatprep.subr.mxu0 0.0
  %3839 = vmatpush1.msra.mxu0 0.0
  %3840 = vmatprep.subr.mxu0 0.0
  %3841 = vmatpush1.msra.mxu0 0.0
  %3842 = vmatprep.subr.mxu0 0.0
  %3843 = vmatpush1.msra.mxu0 0.0
  %3844 = vmatprep.subr.mxu0 0.0
  %3845 = vmatpush1.msra.mxu0 0.0
  %3846 = vmatprep.subr.mxu0 0.0
  %3847 = vmatpush1.msra.mxu0 0.0
  %3848 = vmatprep.subr.mxu0 0.0
  %3849 = vmatpush1.msra.mxu0 0.0
  %3850 = vmatprep.mubr.f32.mxu0 0.0
  %3851 = vmatmul.mubr.f32.gmra.mrb[0].mxu0 %v3785
  %v3852 = vpop.f32.mrb[0].mxu0
  %v3853 = vadd.f32 0.0, %v3852
  %v3854 = vpop.f32.mrb[0].mxu0
  %3855 = vdwg.mxu0
  %v3856 = vmul.f32 %v3853, 0.001953125
  %v3858 = vsel %vm694, %v3856, 0
  %3860 = vmatprep.subr.mxu0 0.0
  %3861 = vmatpush1.msra.mxu0 %v303
  %3862 = vmatprep.subr.mxu0 0.0
  %3863 = vmatpush1.msra.mxu0 0.0
  %3864 = vmatprep.subr.mxu0 0.0
  %3865 = vmatpush1.msra.mxu0 0.0
  %3866 = vmatprep.subr.mxu0 0.0
  %3867 = vmatpush1.msra.mxu0 0.0
  %3868 = vmatprep.subr.mxu0 0.0
  %3869 = vmatpush1.msra.mxu0 0.0
  %3870 = vmatprep.subr.mxu0 0.0
  %3871 = vmatpush1.msra.mxu0 0.0
  %3872 = vmatprep.subr.mxu0 0.0
  %3873 = vmatpush1.msra.mxu0 0.0
  %3874 = vmatprep.subr.mxu0 0.0
  %3875 = vmatpush1.msra.mxu0 0.0
  %3876 = vmatprep.subr.mxu0 0.0
  %3877 = vmatpush1.msra.mxu0 0.0
  %3878 = vmatprep.subr.mxu0 0.0
  %3879 = vmatpush1.msra.mxu0 0.0
  %3880 = vmatprep.subr.mxu0 0.0
  %3881 = vmatpush1.msra.mxu0 0.0
  %3882 = vmatprep.subr.mxu0 0.0
  %3883 = vmatpush1.msra.mxu0 0.0
  %3884 = vmatprep.subr.mxu0 0.0
  %3885 = vmatpush1.msra.mxu0 0.0
  %3886 = vmatprep.subr.mxu0 0.0
  %3887 = vmatpush1.msra.mxu0 0.0
  %3888 = vmatprep.subr.mxu0 0.0
  %3889 = vmatpush1.msra.mxu0 0.0
  %3890 = vmatprep.subr.mxu0 0.0
  %3891 = vmatpush1.msra.mxu0 0.0
  %3892 = vmatprep.subr.mxu0 0.0
  %3893 = vmatpush1.msra.mxu0 0.0
  %3894 = vmatprep.subr.mxu0 0.0
  %3895 = vmatpush1.msra.mxu0 0.0
  %3896 = vmatprep.subr.mxu0 0.0
  %3897 = vmatpush1.msra.mxu0 0.0
  %3898 = vmatprep.subr.mxu0 0.0
  %3899 = vmatpush1.msra.mxu0 0.0
  %3900 = vmatprep.subr.mxu0 0.0
  %3901 = vmatpush1.msra.mxu0 0.0
  %3902 = vmatprep.subr.mxu0 0.0
  %3903 = vmatpush1.msra.mxu0 0.0
  %3904 = vmatprep.subr.mxu0 0.0
  %3905 = vmatpush1.msra.mxu0 0.0
  %3906 = vmatprep.subr.mxu0 0.0
  %3907 = vmatpush1.msra.mxu0 0.0
  %3908 = vmatprep.subr.mxu0 0.0
  %3909 = vmatpush1.msra.mxu0 0.0
  %3910 = vmatprep.subr.mxu0 0.0
  %3911 = vmatpush1.msra.mxu0 0.0
  %3912 = vmatprep.subr.mxu0 0.0
  %3913 = vmatpush1.msra.mxu0 0.0
  %3914 = vmatprep.subr.mxu0 0.0
  %3915 = vmatpush1.msra.mxu0 0.0
  %3916 = vmatprep.subr.mxu0 0.0
  %3917 = vmatpush1.msra.mxu0 0.0
  %3918 = vmatprep.subr.mxu0 0.0
  %3919 = vmatpush1.msra.mxu0 0.0
  %3920 = vmatprep.subr.mxu0 0.0
  %3921 = vmatpush1.msra.mxu0 0.0
  %3922 = vmatprep.subr.mxu0 0.0
  %3923 = vmatpush1.msra.mxu0 0.0
  %3924 = vmatprep.mubr.f32.mxu0 0.0
  %3925 = vmatmul.mubr.f32.gmra.mrb[0].mxu0 %v3858
  %v3926 = vpop.f32.mrb[0].mxu0
  %v3927 = vadd.f32 0.0, %v3926
  %v3928 = vpop.f32.mrb[0].mxu0
  %3929 = vdwg.mxu0
  %v3930 = vlaneseq
  %v3931 = vshrl.u32 %v3930, 7
  %v3932 = vsub.s32 0, %v3931
  %v3933 = vrot.slane %v3927, %v3932
  %v3934 = vsub.f32 %v3773, %v3933
  %v3935 = vsub.f32 %v3774, %v3933
  %v3936 = vsub.f32 %v3775, %v3933
  %v3937 = vsub.f32 %v3776, %v3933
  %v3938 = vmul.f32 %v3934, %v3934
  %v3939 = vmul.f32 %v3935, %v3935
  %v3940 = vmul.f32 %v3936, %v3936
  %v3941 = vmul.f32 %v3937, %v3937
  %v3942 = vadd.f32 %v3938, %v3939
  %v3943 = vadd.f32 %v3942, %v3940
  %v3944 = vadd.f32 %v3943, %v3941
  %v3945 = vrot.slane %v3944, 4
  %v3946 = vadd.f32 %v3944, %v3945
  %v3947 = vrot.slane %v3946, 2
  %v3948 = vadd.f32 %v3946, %v3947
  %v3949 = vrot.slane %v3948, 1
  %v3950 = vadd.f32 %v3948, %v3949
  %3951 = vmatprep.subr.mxu0 0.0
  %3952 = vmatpush1.msra.mxu0 %v273
  %3953 = vmatprep.subr.mxu0 0.0
  %3954 = vmatpush1.msra.mxu0 %v274
  %3955 = vmatprep.subr.mxu0 0.0
  %3956 = vmatpush1.msra.mxu0 %v275
  %3957 = vmatprep.subr.mxu0 0.0
  %3958 = vmatpush1.msra.mxu0 %v276
  %3959 = vmatprep.subr.mxu0 0.0
  %3960 = vmatpush1.msra.mxu0 %v277
  %3961 = vmatprep.subr.mxu0 0.0
  %3962 = vmatpush1.msra.mxu0 %v278
  %3963 = vmatprep.subr.mxu0 0.0
  %3964 = vmatpush1.msra.mxu0 %v279
  %3965 = vmatprep.subr.mxu0 0.0
  %3966 = vmatpush1.msra.mxu0 %v280
  %3967 = vmatprep.subr.mxu0 0.0
  %3968 = vmatpush1.msra.mxu0 %v281
  %3969 = vmatprep.subr.mxu0 0.0
  %3970 = vmatpush1.msra.mxu0 %v282
  %3971 = vmatprep.subr.mxu0 0.0
  %3972 = vmatpush1.msra.mxu0 %v283
  %3973 = vmatprep.subr.mxu0 0.0
  %3974 = vmatpush1.msra.mxu0 %v284
  %3975 = vmatprep.subr.mxu0 0.0
  %3976 = vmatpush1.msra.mxu0 %v285
  %3977 = vmatprep.subr.mxu0 0.0
  %3978 = vmatpush1.msra.mxu0 %v286
  %3979 = vmatprep.subr.mxu0 0.0
  %3980 = vmatpush1.msra.mxu0 %v287
  %3981 = vmatprep.subr.mxu0 0.0
  %3982 = vmatpush1.msra.mxu0 %v288
  %3983 = vmatprep.subr.mxu0 0.0
  %3984 = vmatpush1.msra.mxu0 0.0
  %3985 = vmatprep.subr.mxu0 0.0
  %3986 = vmatpush1.msra.mxu0 0.0
  %3987 = vmatprep.subr.mxu0 0.0
  %3988 = vmatpush1.msra.mxu0 0.0
  %3989 = vmatprep.subr.mxu0 0.0
  %3990 = vmatpush1.msra.mxu0 0.0
  %3991 = vmatprep.subr.mxu0 0.0
  %3992 = vmatpush1.msra.mxu0 0.0
  %3993 = vmatprep.subr.mxu0 0.0
  %3994 = vmatpush1.msra.mxu0 0.0
  %3995 = vmatprep.subr.mxu0 0.0
  %3996 = vmatpush1.msra.mxu0 0.0
  %3997 = vmatprep.subr.mxu0 0.0
  %3998 = vmatpush1.msra.mxu0 0.0
  %3999 = vmatprep.subr.mxu0 0.0
  %4000 = vmatpush1.msra.mxu0 0.0
  %4001 = vmatprep.subr.mxu0 0.0
  %4002 = vmatpush1.msra.mxu0 0.0
  %4003 = vmatprep.subr.mxu0 0.0
  %4004 = vmatpush1.msra.mxu0 0.0
  %4005 = vmatprep.subr.mxu0 0.0
  %4006 = vmatpush1.msra.mxu0 0.0
  %4007 = vmatprep.subr.mxu0 0.0
  %4008 = vmatpush1.msra.mxu0 0.0
  %4009 = vmatprep.subr.mxu0 0.0
  %4010 = vmatpush1.msra.mxu0 0.0
  %4011 = vmatprep.subr.mxu0 0.0
  %4012 = vmatpush1.msra.mxu0 0.0
  %4013 = vmatprep.subr.mxu0 0.0
  %4014 = vmatpush1.msra.mxu0 0.0
  %4015 = vmatprep.mubr.f32.mxu0 0.0
  %4016 = vmatmul.mubr.f32.gmra.mrb[0].mxu0 %v3950
  %v4017 = vpop.f32.mrb[0].mxu0
  %v4018 = vadd.f32 0.0, %v4017
  %v4019 = vpop.f32.mrb[0].mxu0
  %4020 = vdwg.mxu0
  %v4021 = vmul.f32 %v4018, 0.001953125
  %s4022 = scalar_lea.vmem %s6, 4
  %v4023 = vld [vmem:[%s4022] sm:$0x1]
  %v4024 = vadd.f32 %v4021, 1e-05
  %v4025 = vrsqrt.pop %v4024
  %v4026 = vmul.f32 %v4023, %v4025
  %v4028 = vsel %vm694, %v4026, 0
  %4030 = vmatprep.subr.mxu0 0.0
  %4031 = vmatpush1.msra.mxu0 %v303
  %4032 = vmatprep.subr.mxu0 0.0
  %4033 = vmatpush1.msra.mxu0 0.0
  %4034 = vmatprep.subr.mxu0 0.0
  %4035 = vmatpush1.msra.mxu0 0.0
  %4036 = vmatprep.subr.mxu0 0.0
  %4037 = vmatpush1.msra.mxu0 0.0
  %4038 = vmatprep.subr.mxu0 0.0
  %4039 = vmatpush1.msra.mxu0 0.0
  %4040 = vmatprep.subr.mxu0 0.0
  %4041 = vmatpush1.msra.mxu0 0.0
  %4042 = vmatprep.subr.mxu0 0.0
  %4043 = vmatpush1.msra.mxu0 0.0
  %4044 = vmatprep.subr.mxu0 0.0
  %4045 = vmatpush1.msra.mxu0 0.0
  %4046 = vmatprep.subr.mxu0 0.0
  %4047 = vmatpush1.msra.mxu0 0.0
  %4048 = vmatprep.subr.mxu0 0.0
  %4049 = vmatpush1.msra.mxu0 0.0
  %4050 = vmatprep.subr.mxu0 0.0
  %4051 = vmatpush1.msra.mxu0 0.0
  %4052 = vmatprep.subr.mxu0 0.0
  %4053 = vmatpush1.msra.mxu0 0.0
  %4054 = vmatprep.subr.mxu0 0.0
  %4055 = vmatpush1.msra.mxu0 0.0
  %4056 = vmatprep.subr.mxu0 0.0
  %4057 = vmatpush1.msra.mxu0 0.0
  %4058 = vmatprep.subr.mxu0 0.0
  %4059 = vmatpush1.msra.mxu0 0.0
  %4060 = vmatprep.subr.mxu0 0.0
  %4061 = vmatpush1.msra.mxu0 0.0
  %4062 = vmatprep.subr.mxu0 0.0
  %4063 = vmatpush1.msra.mxu0 0.0
  %4064 = vmatprep.subr.mxu0 0.0
  %4065 = vmatpush1.msra.mxu0 0.0
  %4066 = vmatprep.subr.mxu0 0.0
  %4067 = vmatpush1.msra.mxu0 0.0
  %4068 = vmatprep.subr.mxu0 0.0
  %4069 = vmatpush1.msra.mxu0 0.0
  %4070 = vmatprep.subr.mxu0 0.0
  %4071 = vmatpush1.msra.mxu0 0.0
  %4072 = vmatprep.subr.mxu0 0.0
  %4073 = vmatpush1.msra.mxu0 0.0
  %4074 = vmatprep.subr.mxu0 0.0
  %4075 = vmatpush1.msra.mxu0 0.0
  %4076 = vmatprep.subr.mxu0 0.0
  %4077 = vmatpush1.msra.mxu0 0.0
  %4078 = vmatprep.subr.mxu0 0.0
  %4079 = vmatpush1.msra.mxu0 0.0
  %4080 = vmatprep.subr.mxu0 0.0
  %4081 = vmatpush1.msra.mxu0 0.0
  %4082 = vmatprep.subr.mxu0 0.0
  %4083 = vmatpush1.msra.mxu0 0.0
  %4084 = vmatprep.subr.mxu0 0.0
  %4085 = vmatpush1.msra.mxu0 0.0
  %4086 = vmatprep.subr.mxu0 0.0
  %4087 = vmatpush1.msra.mxu0 0.0
  %4088 = vmatprep.subr.mxu0 0.0
  %4089 = vmatpush1.msra.mxu0 0.0
  %4090 = vmatprep.subr.mxu0 0.0
  %4091 = vmatpush1.msra.mxu0 0.0
  %4092 = vmatprep.subr.mxu0 0.0
  %4093 = vmatpush1.msra.mxu0 0.0
  %4094 = vmatprep.mubr.f32.mxu0 0.0
  %4095 = vmatmul.mubr.f32.gmra.mrb[0].mxu0 %v4028
  %v4096 = vpop.f32.mrb[0].mxu0
  %v4097 = vadd.f32 0.0, %v4096
  %v4098 = vpop.f32.mrb[0].mxu0
  %4099 = vdwg.mxu0
  %v4100 = vlaneseq
  %v4101 = vshrl.u32 %v4100, 7
  %v4102 = vsub.s32 0, %v4101
  %v4103 = vrot.slane %v4097, %v4102
  %v4104 = vmul.f32 %v3934, %v4103
  %v4105 = vmul.f32 %v3935, %v4103
  %v4106 = vmul.f32 %v3936, %v4103
  %v4107 = vmul.f32 %v3937, %v4103
  %s4108 = scalar_lea.vmem %s7, 4
  %v4109 = vld [vmem:[%s4108] sm:$0x1]
  %v4111 = vsel %vm694, %v4109, 0
  %4113 = vmatprep.subr.mxu0 0.0
  %4114 = vmatpush1.msra.mxu0 %v303
  %4115 = vmatprep.subr.mxu0 0.0
  %4116 = vmatpush1.msra.mxu0 0.0
  %4117 = vmatprep.subr.mxu0 0.0
  %4118 = vmatpush1.msra.mxu0 0.0
  %4119 = vmatprep.subr.mxu0 0.0
  %4120 = vmatpush1.msra.mxu0 0.0
  %4121 = vmatprep.subr.mxu0 0.0
  %4122 = vmatpush1.msra.mxu0 0.0
  %4123 = vmatprep.subr.mxu0 0.0
  %4124 = vmatpush1.msra.mxu0 0.0
  %4125 = vmatprep.subr.mxu0 0.0
  %4126 = vmatpush1.msra.mxu0 0.0
  %4127 = vmatprep.subr.mxu0 0.0
  %4128 = vmatpush1.msra.mxu0 0.0
  %4129 = vmatprep.subr.mxu0 0.0
  %4130 = vmatpush1.msra.mxu0 0.0
  %4131 = vmatprep.subr.mxu0 0.0
  %4132 = vmatpush1.msra.mxu0 0.0
  %4133 = vmatprep.subr.mxu0 0.0
  %4134 = vmatpush1.msra.mxu0 0.0
  %4135 = vmatprep.subr.mxu0 0.0
  %4136 = vmatpush1.msra.mxu0 0.0
  %4137 = vmatprep.subr.mxu0 0.0
  %4138 = vmatpush1.msra.mxu0 0.0
  %4139 = vmatprep.subr.mxu0 0.0
  %4140 = vmatpush1.msra.mxu0 0.0
  %4141 = vmatprep.subr.mxu0 0.0
  %4142 = vmatpush1.msra.mxu0 0.0
  %4143 = vmatprep.subr.mxu0 0.0
  %4144 = vmatpush1.msra.mxu0 0.0
  %4145 = vmatprep.subr.mxu0 0.0
  %4146 = vmatpush1.msra.mxu0 0.0
  %4147 = vmatprep.subr.mxu0 0.0
  %4148 = vmatpush1.msra.mxu0 0.0
  %4149 = vmatprep.subr.mxu0 0.0
  %4150 = vmatpush1.msra.mxu0 0.0
  %4151 = vmatprep.subr.mxu0 0.0
  %4152 = vmatpush1.msra.mxu0 0.0
  %4153 = vmatprep.subr.mxu0 0.0
  %4154 = vmatpush1.msra.mxu0 0.0
  %4155 = vmatprep.subr.mxu0 0.0
  %4156 = vmatpush1.msra.mxu0 0.0
  %4157 = vmatprep.subr.mxu0 0.0
  %4158 = vmatpush1.msra.mxu0 0.0
  %4159 = vmatprep.subr.mxu0 0.0
  %4160 = vmatpush1.msra.mxu0 0.0
  %4161 = vmatprep.subr.mxu0 0.0
  %4162 = vmatpush1.msra.mxu0 0.0
  %4163 = vmatprep.subr.mxu0 0.0
  %4164 = vmatpush1.msra.mxu0 0.0
  %4165 = vmatprep.subr.mxu0 0.0
  %4166 = vmatpush1.msra.mxu0 0.0
  %4167 = vmatprep.subr.mxu0 0.0
  %4168 = vmatpush1.msra.mxu0 0.0
  %4169 = vmatprep.subr.mxu0 0.0
  %4170 = vmatpush1.msra.mxu0 0.0
  %4171 = vmatprep.subr.mxu0 0.0
  %4172 = vmatpush1.msra.mxu0 0.0
  %4173 = vmatprep.subr.mxu0 0.0
  %4174 = vmatpush1.msra.mxu0 0.0
  %4175 = vmatprep.subr.mxu0 0.0
  %4176 = vmatpush1.msra.mxu0 0.0
  %4177 = vmatprep.mubr.f32.mxu0 0.0
  %4178 = vmatmul.mubr.f32.gmra.mrb[0].mxu0 %v4111
  %v4179 = vpop.f32.mrb[0].mxu0
  %v4180 = vadd.f32 0.0, %v4179
  %v4181 = vpop.f32.mrb[0].mxu0
  %4182 = vdwg.mxu0
  %v4183 = vlaneseq
  %v4184 = vshrl.u32 %v4183, 7
  %v4185 = vsub.s32 0, %v4184
  %v4186 = vrot.slane %v4180, %v4185
  %v4187 = vadd.f32 %v4104, %v4186
  %v4188 = vadd.f32 %v4105, %v4186
  %v4189 = vadd.f32 %v4106, %v4186
  %v4190 = vadd.f32 %v4107, %v4186
  %vm4191 = vcmp.gt.f32.partialorder %v4187, 0.0
  %vm4192 = vcmp.gt.f32.partialorder %v4188, 0.0
  %vm4193 = vcmp.gt.f32.partialorder %v4189, 0.0
  %vm4194 = vcmp.gt.f32.partialorder %v4190, 0.0
  %v4195 = vmul.f32 %v4187, 0.2
  %v4196 = vmul.f32 %v4188, 0.2
  %v4197 = vmul.f32 %v4189, 0.2
  %v4198 = vmul.f32 %v4190, 0.2
  %v4199 = vsel %vm4191, %v4187, %v4195
  %v4200 = vsel %vm4192, %v4188, %v4196
  %v4201 = vsel %vm4193, %v4189, %v4197
  %v4202 = vsel %vm4194, %v4190, %v4198
  %4203 = vst [vmem:[%s8] sm:$0xff] %v4199
  %4204 = vst [vmem:[%s8 + $0x8] sm:$0xff] %v4200
  %4205 = vst [vmem:[%s8 + $0x10] sm:$0xff] %v4201
  %4206 = vst [vmem:[%s8 + $0x18] sm:$0xff] %v4202
  // Predicated region
  $region34: #{conv_residual_conv.1} parent=0 // pred_check
    _
  $region35: #{conv_residual_conv.1} parent=0 // pred_check_branch
    %4208 = sbr.rel (0) target = $region37
  $region36: #{conv_residual_conv.1} parent=0 // pred_region
    _
  $region37: #{conv_residual_conv.1} parent=0 // pred_fallthru
    _
  // Predicated region
  $region38: #{conv_residual_conv.1} parent=0 // pred_check
    _
  $region39: #{conv_residual_conv.1} parent=0 // pred_check_branch
    %4210 = sbr.rel (0) target = $region41
  $region40: #{conv_residual_conv.1} parent=0 // pred_region
    _
  $region41: #{conv_residual_conv.1} parent=0 // pred_fallthru
    _

</llo_original>
